<compile_context>
chip_gen: v5e
topology: v5e:2x2
jax: 0.10.0
libtpu: 0.0.40
codegen_flags: <defaults>
</compile_context>

<pallas_src>
import functools

import jax
import jax.numpy as jnp
from jax.experimental import pallas as pl
from jax.experimental.pallas import tpu as pltpu


def _round_up(x, m):
    return ((x + m - 1) // m) * m


def _make_kernel(seq_len, batch_pad, h_pad, apply_softmax):
    # Full unroll only for short sequences; partial unroll keeps code size bounded
    # without hiding the dependency chain from the scheduler.
    unroll = True if seq_len <= 16 else 8

    def kernel(ids_ref,    # SMEM (B_pad, S) int32 token ids
               tbl_ref,    # VMEM (V, 1, 3*H_pad)   emb @ W_i + fused biases
               w_h_ref,    # VMEM (H_pad, 3*H_pad)  fused [W_hr | W_hz | W_hn]
               b_hn_ref,   # VMEM (1, H_pad)
               w_fc_ref,   # VMEM (H_pad, V_pad)
               b_fc_ref,   # VMEM (1, V_pad)        padded vocab cols pre-set to -1e30
               o_ref,      # VMEM (S*B_pad, V_pad)  logits / probs, lane-dense slab
               gi_ref,     # scratch (S*B_pad, 3*H_pad)  gathered input-gate rows
               hs_ref):    # scratch (S*B_pad, H_pad)    stacked hidden states
        # --- 1) Gather fused input-gate rows for every (t, b).  Independent of h, so it
        #        stays off the serial recurrence critical path.  Static unroll (S*B_pad
        #        is small); only the table row index is dynamic.
        for t in range(seq_len):
            for b in range(batch_pad):
                gi_ref[pl.ds(t * batch_pad + b, 1), :] = tbl_ref[ids_ref[b, t]]

        # --- 2) Serial GRU recurrence: only h @ W_h is on the critical path.
        #        w_h / b_hn are read from VMEM at point of use (no vreg-file-sized hoist).
        def step(t, h):
            row = pl.multiple_of(t * batch_pad, batch_pad)
            gi = gi_ref[pl.ds(row, batch_pad), :]                      # (B_pad, 3*H_pad)
            gh = jnp.dot(h, w_h_ref[...], preferred_element_type=jnp.float32)
            r = jax.nn.sigmoid(gi[:, 0:h_pad] + gh[:, 0:h_pad])
            z = jax.nn.sigmoid(gi[:, h_pad:2 * h_pad] + gh[:, h_pad:2 * h_pad])
            n = jnp.tanh(gi[:, 2 * h_pad:] + r * (gh[:, 2 * h_pad:] + b_hn_ref[...]))
            h_new = n + z * (h - n)                                    # == (1-z)*n + z*h
            hs_ref[pl.ds(row, batch_pad), :] = h_new
            return h_new

        h0 = jnp.zeros((batch_pad, h_pad), jnp.float32)                # GRU default h0 = 0
        jax.lax.fori_loop(0, seq_len, step, h0, unroll=unroll)

        # --- 3) FC head over all (time, batch) rows at once (dropout == identity, see TODO).
        logits = (jnp.dot(hs_ref[...], w_fc_ref[...],
                          preferred_element_type=jnp.float32) + b_fc_ref[...])
        if apply_softmax:
            # Vocab-padding mask is already in b_fc (-1e30) -> exp underflows to 0.
            m = jnp.max(logits, axis=-1, keepdims=True)
            e = jnp.exp(logits - m)
            logits = e * pl.reciprocal(jnp.sum(e, axis=-1, keepdims=True), approx=True)
        o_ref[...] = logits.astype(o_ref.dtype)

    return kernel


def make_params(key, char_vocab_size, char_embedding_size, rnn_hidden_size, padding_idx=0):
    """Raw (PyTorch-layout) parameters. GRU weights stored transposed for the x @ W form."""
    V, E, H = char_vocab_size, char_embedding_size, rnn_hidden_size
    ks = jax.random.split(key, 16)
    u = lambda k, shape, s: jax.random.uniform(k, shape, jnp.float32, -s, s)

    emb = jax.random.normal(ks[0], (V, E), jnp.float32)
    emb = emb.at[padding_idx].set(0.0)                  # nn.Embedding padding_idx row

    s = 1.0 / jnp.sqrt(H)
    w_ir, w_iz, w_in = (u(ks[i], (E, H), s) for i in (1, 2, 3))
    w_hr, w_hz, w_hn = (u(ks[i], (H, H), s) for i in (4, 5, 6))
    b_ir, b_iz, b_in = (u(ks[i], (1, H), s) for i in (7, 8, 9))
    b_hr, b_hz, b_hn = (u(ks[i], (1, H), s) for i in (10, 11, 12))

    w_fc = u(ks[13], (H, V), s)
    b_fc = u(ks[14], (1, V), s)

    return dict(emb=emb,
                w_ir=w_ir, w_iz=w_iz, w_in=w_in,
                w_hr=w_hr, w_hz=w_hz, w_hn=w_hn,
                b_ir=b_ir, b_iz=b_iz, b_in=b_in,
                b_hr=b_hr, b_hz=b_hz, b_hn=b_hn,
                w_fc=w_fc, b_fc=b_fc)


def prepare_padded_params(params):
    """One-time prep: fold embedding & input projection into a gather table, fuse the
    hidden-gate matrices, pre-fold biases, and zero-pad lane dims to 128."""
    E, H = params["w_ir"].shape
    V = params["w_fc"].shape[1]
    H_p, V_p = _round_up(H, 128), _round_up(V, 128)

    def pad2(a, rows, cols):
        return jnp.pad(a, ((0, rows - a.shape[0]), (0, cols - a.shape[1])))

    emb = params["emb"]
    # gi_table[v] = emb[v] @ [W_ir|W_iz|W_in] + [b_ir+b_hr | b_iz+b_hz | b_in]
    # (b_hn cannot be folded: it sits inside r * (h @ W_hn + b_hn)).
    gi_r = emb @ params["w_ir"] + params["b_ir"] + params["b_hr"]
    gi_z = emb @ params["w_iz"] + params["b_iz"] + params["b_hz"]
    gi_n = emb @ params["w_in"] + params["b_in"]
    gi_table = jnp.concatenate(
        [pad2(gi_r, V, H_p), pad2(gi_z, V, H_p), pad2(gi_n, V, H_p)], axis=1)
    gi_table = gi_table.reshape(V, 1, 3 * H_p)   # leading axis is gathered in-kernel

    w_h = jnp.concatenate([pad2(params["w_hr"], H_p, H_p),
                           pad2(params["w_hz"], H_p, H_p),
                           pad2(params["w_hn"], H_p, H_p)], axis=1)   # (H_p, 3*H_p)

    # Bake the vocab-padding softmax mask into the FC bias (padded cols -> -1e30);
    # for the logits path those columns are sliced away in the wrapper anyway.
    b_fc = jnp.pad(params["b_fc"], ((0, 0), (0, V_p - V)), constant_values=-1e30)

    return dict(gi_table=gi_table,
                w_h=w_h,
                b_hn=pad2(params["b_hn"], 1, H_p),
                w_fc=pad2(params["w_fc"], H_p, V_p),
                b_fc=b_fc)


@functools.partial(jax.jit, static_argnames=("apply_softmax",))
def surname_generation_forward(x_in, padded_params, apply_softmax=False):
    """x_in: (B, S) int32 token ids.  Returns (B, S, V) float32 logits or probs."""
    pp = padded_params
    B, S = x_in.shape
    V = pp["gi_table"].shape[0]
    H_p = pp["w_h"].shape[0]
    V_p = pp["w_fc"].shape[1]
    B_p = _round_up(B, 8)

    # Only wrapper-side prep: pad the token-id batch (padded rows use token 0 and are
    # sliced away below).  The embedding/input-projection gather happens in the kernel.
    ids = jnp.pad(x_in.astype(jnp.int32), ((0, B_p - B), (0, 0)))      # (B_p, S)

    smem = pl.BlockSpec(memory_space=pltpu.MemorySpace.SMEM)
    vmem = pl.BlockSpec(memory_space=pltpu.MemorySpace.VMEM)
    # VMEM footprint is < 1 MiB at these sizes; re-tile over time (grid) before S / V_pad
    # push this past a few MiB (v7x has 64 MiB physical / 32 MiB default scoped VMEM).
    # TODO(synk): for large batches on v7x, add a leading batch grid axis with
    # dimension_semantics=("parallel",) so both TensorCores run independent batch shards.
    out_flat = pl.pallas_call(
        _make_kernel(S, B_p, H_p, apply_softmax),
        out_shape=jax.ShapeDtypeStruct((S * B_p, V_p), jnp.float32),
        in_specs=[smem, vmem, vmem, vmem, vmem, vmem],
        out_specs=vmem,
        scratch_shapes=[pltpu.VMEM((S * B_p, 3 * H_p), jnp.float32),
                        pltpu.VMEM((S * B_p, H_p), jnp.float32)],
    )(ids, pp["gi_table"], pp["w_h"], pp["b_hn"], pp["w_fc"], pp["b_fc"])

    out = out_flat.reshape(S, B_p, V_p)[:, :B, :V]                     # (S, B, V)
    return jnp.transpose(out, (1, 0, 2))                               # (B, S, V)


def reference_forward(x_in, params, apply_softmax=False):
    """Pure-JAX reference of the PyTorch forward (dropout as identity)."""
    x_emb = jnp.take(params["emb"], x_in, axis=0)        # (B, S, E)
    B = x_emb.shape[0]
    H = params["w_hr"].shape[0]

    def step(h, x_t):
        r = jax.nn.sigmoid(x_t @ params["w_ir"] + params["b_ir"]
                           + h @ params["w_hr"] + params["b_hr"])
        z = jax.nn.sigmoid(x_t @ params["w_iz"] + params["b_iz"]
                           + h @ params["w_hz"] + params["b_hz"])
        n = jnp.tanh(x_t @ params["w_in"] + params["b_in"]
                     + r * (h @ params["w_hn"] + params["b_hn"]))
        h_new = (1.0 - z) * n + z * h
        return h_new, h_new

    h0 = jnp.zeros((B, H), jnp.float32)
    _, hs = jax.lax.scan(step, h0, jnp.transpose(x_emb, (1, 0, 2)))    # (S, B, H)
    y = jnp.einsum("sbh,hv->sbv", hs, params["w_fc"]) + params["b_fc"]
    if apply_softmax:
        y = jax.nn.softmax(y, axis=-1)
    return jnp.transpose(y, (1, 0, 2))                                 # (B, S, V)


if __name__ == "__main__":
    batch, seq = 2, 8
    char_vocab_size, char_embedding_size, rnn_hidden_size = 32, 16, 32

    key = jax.random.PRNGKey(0)
    k_tok, k_par = jax.random.split(key)
    params = make_params(k_par, char_vocab_size, char_embedding_size, rnn_hidden_size)
    padded = prepare_padded_params(params)
    x_in = jax.random.randint(k_tok, (batch, seq), 0, char_vocab_size, dtype=jnp.int32)

    # Logits path (apply_softmax=False, as used with cross-entropy losses).
    y = jax.block_until_ready(surname_generation_forward(x_in, padded, apply_softmax=False))
    y_ref = reference_forward(x_in, params, apply_softmax=False)
    assert y.shape == (batch, seq, char_vocab_size)
    assert jnp.allclose(y, y_ref, rtol=1e-4, atol=1e-4), "logits mismatch vs reference"

    # Softmax path (tolerance loosened slightly: denominator uses the EUP approx reciprocal).
    p = jax.block_until_ready(surname_generation_forward(x_in, padded, apply_softmax=True))
    p_ref = reference_forward(x_in, params, apply_softmax=True)
    assert jnp.allclose(p, p_ref, rtol=2e-3, atol=2e-3), "softmax mismatch vs reference"

    print("KERNEL_OK")
</pallas_src>

<mosaic_0001>
module attributes {stable_mosaic.version = 11 : i64} {
  func.func @kernel(%arg0: memref<8x8xi32, #tpu.memory_space<smem>>, %arg1: memref<32x1x384xf32, #tpu.memory_space<vmem>>, %arg2: memref<128x384xf32, #tpu.memory_space<vmem>>, %arg3: memref<1x128xf32, #tpu.memory_space<vmem>>, %arg4: memref<128x128xf32, #tpu.memory_space<vmem>>, %arg5: memref<1x128xf32, #tpu.memory_space<vmem>>, %arg6: memref<64x128xf32, #tpu.memory_space<vmem>>, %arg7: memref<64x384xf32, #tpu.memory_space<vmem>>, %arg8: memref<64x128xf32, #tpu.memory_space<vmem>>) attributes {dimension_semantics = [], scalar_prefetch = 0 : i64, scratch_operands = 2 : i64, tpu.core_type = #tpu.core_type<tc>} {
    %c0 = arith.constant 0 : index
    %c0_0 = arith.constant 0 : index
    %0 = memref.load %arg0[%c0, %c0_0] : memref<8x8xi32, #tpu.memory_space<smem>>
    %1 = arith.index_cast %0 : i32 to index
    %c0_1 = arith.constant 0 : index
    %c0_2 = arith.constant 0 : index
    %2 = vector.load %arg1[%1, %c0_1, %c0_2] : memref<32x1x384xf32, #tpu.memory_space<vmem>>, vector<1x1x384xf32>
    %3 = vector.shape_cast %2 : vector<1x1x384xf32> to vector<1x384xf32>
    %c0_3 = arith.constant 0 : index
    %c0_4 = arith.constant 0 : index
    %4 = vector.load %arg7[%c0_3, %c0_4] : memref<64x384xf32, #tpu.memory_space<vmem>>, vector<1x384xf32>
    tpu.vector_store %arg7[%c0_3, %c0_4], %3 {strides = array<i32>} : memref<64x384xf32, #tpu.memory_space<vmem>>, vector<1x384xf32>,
    %c1 = arith.constant 1 : index
    %c0_5 = arith.constant 0 : index
    %5 = memref.load %arg0[%c1, %c0_5] : memref<8x8xi32, #tpu.memory_space<smem>>
    %6 = arith.index_cast %5 : i32 to index
    %c0_6 = arith.constant 0 : index
    %c0_7 = arith.constant 0 : index
    %7 = vector.load %arg1[%6, %c0_6, %c0_7] : memref<32x1x384xf32, #tpu.memory_space<vmem>>, vector<1x1x384xf32>
    %8 = vector.shape_cast %7 : vector<1x1x384xf32> to vector<1x384xf32>
    %c1_8 = arith.constant 1 : index
    %c0_9 = arith.constant 0 : index
    %9 = vector.load %arg7[%c1_8, %c0_9] : memref<64x384xf32, #tpu.memory_space<vmem>>, vector<1x384xf32>
    tpu.vector_store %arg7[%c1_8, %c0_9], %8 {strides = array<i32>} : memref<64x384xf32, #tpu.memory_space<vmem>>, vector<1x384xf32>,
    %c2 = arith.constant 2 : index
    %c0_10 = arith.constant 0 : index
    %10 = memref.load %arg0[%c2, %c0_10] : memref<8x8xi32, #tpu.memory_space<smem>>
    %11 = arith.index_cast %10 : i32 to index
    %c0_11 = arith.constant 0 : index
    %c0_12 = arith.constant 0 : index
    %12 = vector.load %arg1[%11, %c0_11, %c0_12] : memref<32x1x384xf32, #tpu.memory_space<vmem>>, vector<1x1x384xf32>
    %13 = vector.shape_cast %12 : vector<1x1x384xf32> to vector<1x384xf32>
    %c2_13 = arith.constant 2 : index
    %c0_14 = arith.constant 0 : index
    %14 = vector.load %arg7[%c2_13, %c0_14] : memref<64x384xf32, #tpu.memory_space<vmem>>, vector<1x384xf32>
    tpu.vector_store %arg7[%c2_13, %c0_14], %13 {strides = array<i32>} : memref<64x384xf32, #tpu.memory_space<vmem>>, vector<1x384xf32>,
    %c3 = arith.constant 3 : index
    %c0_15 = arith.constant 0 : index
    %15 = memref.load %arg0[%c3, %c0_15] : memref<8x8xi32, #tpu.memory_space<smem>>
    %16 = arith.index_cast %15 : i32 to index
    %c0_16 = arith.constant 0 : index
    %c0_17 = arith.constant 0 : index
    %17 = vector.load %arg1[%16, %c0_16, %c0_17] : memref<32x1x384xf32, #tpu.memory_space<vmem>>, vector<1x1x384xf32>
    %18 = vector.shape_cast %17 : vector<1x1x384xf32> to vector<1x384xf32>
    %c3_18 = arith.constant 3 : index
    %c0_19 = arith.constant 0 : index
    %19 = vector.load %arg7[%c3_18, %c0_19] : memref<64x384xf32, #tpu.memory_space<vmem>>, vector<1x384xf32>
    tpu.vector_store %arg7[%c3_18, %c0_19], %18 {strides = array<i32>} : memref<64x384xf32, #tpu.memory_space<vmem>>, vector<1x384xf32>,
    %c4 = arith.constant 4 : index
    %c0_20 = arith.constant 0 : index
    %20 = memref.load %arg0[%c4, %c0_20] : memref<8x8xi32, #tpu.memory_space<smem>>
    %21 = arith.index_cast %20 : i32 to index
    %c0_21 = arith.constant 0 : index
    %c0_22 = arith.constant 0 : index
    %22 = vector.load %arg1[%21, %c0_21, %c0_22] : memref<32x1x384xf32, #tpu.memory_space<vmem>>, vector<1x1x384xf32>
    %23 = vector.shape_cast %22 : vector<1x1x384xf32> to vector<1x384xf32>
    %c4_23 = arith.constant 4 : index
    %c0_24 = arith.constant 0 : index
    %24 = vector.load %arg7[%c4_23, %c0_24] : memref<64x384xf32, #tpu.memory_space<vmem>>, vector<1x384xf32>
    tpu.vector_store %arg7[%c4_23, %c0_24], %23 {strides = array<i32>} : memref<64x384xf32, #tpu.memory_space<vmem>>, vector<1x384xf32>,
    %c5 = arith.constant 5 : index
    %c0_25 = arith.constant 0 : index
    %25 = memref.load %arg0[%c5, %c0_25] : memref<8x8xi32, #tpu.memory_space<smem>>
    %26 = arith.index_cast %25 : i32 to index
    %c0_26 = arith.constant 0 : index
    %c0_27 = arith.constant 0 : index
    %27 = vector.load %arg1[%26, %c0_26, %c0_27] : memref<32x1x384xf32, #tpu.memory_space<vmem>>, vector<1x1x384xf32>
    %28 = vector.shape_cast %27 : vector<1x1x384xf32> to vector<1x384xf32>
    %c5_28 = arith.constant 5 : index
    %c0_29 = arith.constant 0 : index
    %29 = vector.load %arg7[%c5_28, %c0_29] : memref<64x384xf32, #tpu.memory_space<vmem>>, vector<1x384xf32>
    tpu.vector_store %arg7[%c5_28, %c0_29], %28 {strides = array<i32>} : memref<64x384xf32, #tpu.memory_space<vmem>>, vector<1x384xf32>,
    %c6 = arith.constant 6 : index
    %c0_30 = arith.constant 0 : index
    %30 = memref.load %arg0[%c6, %c0_30] : memref<8x8xi32, #tpu.memory_space<smem>>
    %31 = arith.index_cast %30 : i32 to index
    %c0_31 = arith.constant 0 : index
    %c0_32 = arith.constant 0 : index
    %32 = vector.load %arg1[%31, %c0_31, %c0_32] : memref<32x1x384xf32, #tpu.memory_space<vmem>>, vector<1x1x384xf32>
    %33 = vector.shape_cast %32 : vector<1x1x384xf32> to vector<1x384xf32>
    %c6_33 = arith.constant 6 : index
    %c0_34 = arith.constant 0 : index
    %34 = vector.load %arg7[%c6_33, %c0_34] : memref<64x384xf32, #tpu.memory_space<vmem>>, vector<1x384xf32>
    tpu.vector_store %arg7[%c6_33, %c0_34], %33 {strides = array<i32>} : memref<64x384xf32, #tpu.memory_space<vmem>>, vector<1x384xf32>,
    %c7 = arith.constant 7 : index
    %c0_35 = arith.constant 0 : index
    %35 = memref.load %arg0[%c7, %c0_35] : memref<8x8xi32, #tpu.memory_space<smem>>
    %36 = arith.index_cast %35 : i32 to index
    %c0_36 = arith.constant 0 : index
    %c0_37 = arith.constant 0 : index
    %37 = vector.load %arg1[%36, %c0_36, %c0_37] : memref<32x1x384xf32, #tpu.memory_space<vmem>>, vector<1x1x384xf32>
    %38 = vector.shape_cast %37 : vector<1x1x384xf32> to vector<1x384xf32>
    %c7_38 = arith.constant 7 : index
    %c0_39 = arith.constant 0 : index
    %39 = vector.load %arg7[%c7_38, %c0_39] : memref<64x384xf32, #tpu.memory_space<vmem>>, vector<1x384xf32>
    tpu.vector_store %arg7[%c7_38, %c0_39], %38 {strides = array<i32>} : memref<64x384xf32, #tpu.memory_space<vmem>>, vector<1x384xf32>,
    %c0_40 = arith.constant 0 : index
    %c1_41 = arith.constant 1 : index
    %40 = memref.load %arg0[%c0_40, %c1_41] : memref<8x8xi32, #tpu.memory_space<smem>>
    %41 = arith.index_cast %40 : i32 to index
    %c0_42 = arith.constant 0 : index
    %c0_43 = arith.constant 0 : index
    %42 = vector.load %arg1[%41, %c0_42, %c0_43] : memref<32x1x384xf32, #tpu.memory_space<vmem>>, vector<1x1x384xf32>
    %43 = vector.shape_cast %42 : vector<1x1x384xf32> to vector<1x384xf32>
    %c8 = arith.constant 8 : index
    %c0_44 = arith.constant 0 : index
    %44 = vector.load %arg7[%c8, %c0_44] : memref<64x384xf32, #tpu.memory_space<vmem>>, vector<1x384xf32>
    tpu.vector_store %arg7[%c8, %c0_44], %43 {strides = array<i32>} : memref<64x384xf32, #tpu.memory_space<vmem>>, vector<1x384xf32>,
    %c1_45 = arith.constant 1 : index
    %c1_46 = arith.constant 1 : index
    %45 = memref.load %arg0[%c1_45, %c1_46] : memref<8x8xi32, #tpu.memory_space<smem>>
    %46 = arith.index_cast %45 : i32 to index
    %c0_47 = arith.constant 0 : index
    %c0_48 = arith.constant 0 : index
    %47 = vector.load %arg1[%46, %c0_47, %c0_48] : memref<32x1x384xf32, #tpu.memory_space<vmem>>, vector<1x1x384xf32>
    %48 = vector.shape_cast %47 : vector<1x1x384xf32> to vector<1x384xf32>
    %c9 = arith.constant 9 : index
    %c0_49 = arith.constant 0 : index
    %49 = vector.load %arg7[%c9, %c0_49] : memref<64x384xf32, #tpu.memory_space<vmem>>, vector<1x384xf32>
    tpu.vector_store %arg7[%c9, %c0_49], %48 {strides = array<i32>} : memref<64x384xf32, #tpu.memory_space<vmem>>, vector<1x384xf32>,
    %c2_50 = arith.constant 2 : index
    %c1_51 = arith.constant 1 : index
    %50 = memref.load %arg0[%c2_50, %c1_51] : memref<8x8xi32, #tpu.memory_space<smem>>
    %51 = arith.index_cast %50 : i32 to index
    %c0_52 = arith.constant 0 : index
    %c0_53 = arith.constant 0 : index
    %52 = vector.load %arg1[%51, %c0_52, %c0_53] : memref<32x1x384xf32, #tpu.memory_space<vmem>>, vector<1x1x384xf32>
    %53 = vector.shape_cast %52 : vector<1x1x384xf32> to vector<1x384xf32>
    %c10 = arith.constant 10 : index
    %c0_54 = arith.constant 0 : index
    %54 = vector.load %arg7[%c10, %c0_54] : memref<64x384xf32, #tpu.memory_space<vmem>>, vector<1x384xf32>
    tpu.vector_store %arg7[%c10, %c0_54], %53 {strides = array<i32>} : memref<64x384xf32, #tpu.memory_space<vmem>>, vector<1x384xf32>,
    %c3_55 = arith.constant 3 : index
    %c1_56 = arith.constant 1 : index
    %55 = memref.load %arg0[%c3_55, %c1_56] : memref<8x8xi32, #tpu.memory_space<smem>>
    %56 = arith.index_cast %55 : i32 to index
    %c0_57 = arith.constant 0 : index
    %c0_58 = arith.constant 0 : index
    %57 = vector.load %arg1[%56, %c0_57, %c0_58] : memref<32x1x384xf32, #tpu.memory_space<vmem>>, vector<1x1x384xf32>
    %58 = vector.shape_cast %57 : vector<1x1x384xf32> to vector<1x384xf32>
    %c11 = arith.constant 11 : index
    %c0_59 = arith.constant 0 : index
    %59 = vector.load %arg7[%c11, %c0_59] : memref<64x384xf32, #tpu.memory_space<vmem>>, vector<1x384xf32>
    tpu.vector_store %arg7[%c11, %c0_59], %58 {strides = array<i32>} : memref<64x384xf32, #tpu.memory_space<vmem>>, vector<1x384xf32>,
    %c4_60 = arith.constant 4 : index
    %c1_61 = arith.constant 1 : index
    %60 = memref.load %arg0[%c4_60, %c1_61] : memref<8x8xi32, #tpu.memory_space<smem>>
    %61 = arith.index_cast %60 : i32 to index
    %c0_62 = arith.constant 0 : index
    %c0_63 = arith.constant 0 : index
    %62 = vector.load %arg1[%61, %c0_62, %c0_63] : memref<32x1x384xf32, #tpu.memory_space<vmem>>, vector<1x1x384xf32>
    %63 = vector.shape_cast %62 : vector<1x1x384xf32> to vector<1x384xf32>
    %c12 = arith.constant 12 : index
    %c0_64 = arith.constant 0 : index
    %64 = vector.load %arg7[%c12, %c0_64] : memref<64x384xf32, #tpu.memory_space<vmem>>, vector<1x384xf32>
    tpu.vector_store %arg7[%c12, %c0_64], %63 {strides = array<i32>} : memref<64x384xf32, #tpu.memory_space<vmem>>, vector<1x384xf32>,
    %c5_65 = arith.constant 5 : index
    %c1_66 = arith.constant 1 : index
    %65 = memref.load %arg0[%c5_65, %c1_66] : memref<8x8xi32, #tpu.memory_space<smem>>
    %66 = arith.index_cast %65 : i32 to index
    %c0_67 = arith.constant 0 : index
    %c0_68 = arith.constant 0 : index
    %67 = vector.load %arg1[%66, %c0_67, %c0_68] : memref<32x1x384xf32, #tpu.memory_space<vmem>>, vector<1x1x384xf32>
    %68 = vector.shape_cast %67 : vector<1x1x384xf32> to vector<1x384xf32>
    %c13 = arith.constant 13 : index
    %c0_69 = arith.constant 0 : index
    %69 = vector.load %arg7[%c13, %c0_69] : memref<64x384xf32, #tpu.memory_space<vmem>>, vector<1x384xf32>
    tpu.vector_store %arg7[%c13, %c0_69], %68 {strides = array<i32>} : memref<64x384xf32, #tpu.memory_space<vmem>>, vector<1x384xf32>,
    %c6_70 = arith.constant 6 : index
    %c1_71 = arith.constant 1 : index
    %70 = memref.load %arg0[%c6_70, %c1_71] : memref<8x8xi32, #tpu.memory_space<smem>>
    %71 = arith.index_cast %70 : i32 to index
    %c0_72 = arith.constant 0 : index
    %c0_73 = arith.constant 0 : index
    %72 = vector.load %arg1[%71, %c0_72, %c0_73] : memref<32x1x384xf32, #tpu.memory_space<vmem>>, vector<1x1x384xf32>
    %73 = vector.shape_cast %72 : vector<1x1x384xf32> to vector<1x384xf32>
    %c14 = arith.constant 14 : index
    %c0_74 = arith.constant 0 : index
    %74 = vector.load %arg7[%c14, %c0_74] : memref<64x384xf32, #tpu.memory_space<vmem>>, vector<1x384xf32>
    tpu.vector_store %arg7[%c14, %c0_74], %73 {strides = array<i32>} : memref<64x384xf32, #tpu.memory_space<vmem>>, vector<1x384xf32>,
    %c7_75 = arith.constant 7 : index
    %c1_76 = arith.constant 1 : index
    %75 = memref.load %arg0[%c7_75, %c1_76] : memref<8x8xi32, #tpu.memory_space<smem>>
    %76 = arith.index_cast %75 : i32 to index
    %c0_77 = arith.constant 0 : index
    %c0_78 = arith.constant 0 : index
    %77 = vector.load %arg1[%76, %c0_77, %c0_78] : memref<32x1x384xf32, #tpu.memory_space<vmem>>, vector<1x1x384xf32>
    %78 = vector.shape_cast %77 : vector<1x1x384xf32> to vector<1x384xf32>
    %c15 = arith.constant 15 : index
    %c0_79 = arith.constant 0 : index
    %79 = vector.load %arg7[%c15, %c0_79] : memref<64x384xf32, #tpu.memory_space<vmem>>, vector<1x384xf32>
    tpu.vector_store %arg7[%c15, %c0_79], %78 {strides = array<i32>} : memref<64x384xf32, #tpu.memory_space<vmem>>, vector<1x384xf32>,
    %c0_80 = arith.constant 0 : index
    %c2_81 = arith.constant 2 : index
    %80 = memref.load %arg0[%c0_80, %c2_81] : memref<8x8xi32, #tpu.memory_space<smem>>
    %81 = arith.index_cast %80 : i32 to index
    %c0_82 = arith.constant 0 : index
    %c0_83 = arith.constant 0 : index
    %82 = vector.load %arg1[%81, %c0_82, %c0_83] : memref<32x1x384xf32, #tpu.memory_space<vmem>>, vector<1x1x384xf32>
    %83 = vector.shape_cast %82 : vector<1x1x384xf32> to vector<1x384xf32>
    %c16 = arith.constant 16 : index
    %c0_84 = arith.constant 0 : index
    %84 = vector.load %arg7[%c16, %c0_84] : memref<64x384xf32, #tpu.memory_space<vmem>>, vector<1x384xf32>
    tpu.vector_store %arg7[%c16, %c0_84], %83 {strides = array<i32>} : memref<64x384xf32, #tpu.memory_space<vmem>>, vector<1x384xf32>,
    %c1_85 = arith.constant 1 : index
    %c2_86 = arith.constant 2 : index
    %85 = memref.load %arg0[%c1_85, %c2_86] : memref<8x8xi32, #tpu.memory_space<smem>>
    %86 = arith.index_cast %85 : i32 to index
    %c0_87 = arith.constant 0 : index
    %c0_88 = arith.constant 0 : index
    %87 = vector.load %arg1[%86, %c0_87, %c0_88] : memref<32x1x384xf32, #tpu.memory_space<vmem>>, vector<1x1x384xf32>
    %88 = vector.shape_cast %87 : vector<1x1x384xf32> to vector<1x384xf32>
    %c17 = arith.constant 17 : index
    %c0_89 = arith.constant 0 : index
    %89 = vector.load %arg7[%c17, %c0_89] : memref<64x384xf32, #tpu.memory_space<vmem>>, vector<1x384xf32>
    tpu.vector_store %arg7[%c17, %c0_89], %88 {strides = array<i32>} : memref<64x384xf32, #tpu.memory_space<vmem>>, vector<1x384xf32>,
    %c2_90 = arith.constant 2 : index
    %c2_91 = arith.constant 2 : index
    %90 = memref.load %arg0[%c2_90, %c2_91] : memref<8x8xi32, #tpu.memory_space<smem>>
    %91 = arith.index_cast %90 : i32 to index
    %c0_92 = arith.constant 0 : index
    %c0_93 = arith.constant 0 : index
    %92 = vector.load %arg1[%91, %c0_92, %c0_93] : memref<32x1x384xf32, #tpu.memory_space<vmem>>, vector<1x1x384xf32>
    %93 = vector.shape_cast %92 : vector<1x1x384xf32> to vector<1x384xf32>
    %c18 = arith.constant 18 : index
    %c0_94 = arith.constant 0 : index
    %94 = vector.load %arg7[%c18, %c0_94] : memref<64x384xf32, #tpu.memory_space<vmem>>, vector<1x384xf32>
    tpu.vector_store %arg7[%c18, %c0_94], %93 {strides = array<i32>} : memref<64x384xf32, #tpu.memory_space<vmem>>, vector<1x384xf32>,
    %c3_95 = arith.constant 3 : index
    %c2_96 = arith.constant 2 : index
    %95 = memref.load %arg0[%c3_95, %c2_96] : memref<8x8xi32, #tpu.memory_space<smem>>
    %96 = arith.index_cast %95 : i32 to index
    %c0_97 = arith.constant 0 : index
    %c0_98 = arith.constant 0 : index
    %97 = vector.load %arg1[%96, %c0_97, %c0_98] : memref<32x1x384xf32, #tpu.memory_space<vmem>>, vector<1x1x384xf32>
    %98 = vector.shape_cast %97 : vector<1x1x384xf32> to vector<1x384xf32>
    %c19 = arith.constant 19 : index
    %c0_99 = arith.constant 0 : index
    %99 = vector.load %arg7[%c19, %c0_99] : memref<64x384xf32, #tpu.memory_space<vmem>>, vector<1x384xf32>
    tpu.vector_store %arg7[%c19, %c0_99], %98 {strides = array<i32>} : memref<64x384xf32, #tpu.memory_space<vmem>>, vector<1x384xf32>,
    %c4_100 = arith.constant 4 : index
    %c2_101 = arith.constant 2 : index
    %100 = memref.load %arg0[%c4_100, %c2_101] : memref<8x8xi32, #tpu.memory_space<smem>>
    %101 = arith.index_cast %100 : i32 to index
    %c0_102 = arith.constant 0 : index
    %c0_103 = arith.constant 0 : index
    %102 = vector.load %arg1[%101, %c0_102, %c0_103] : memref<32x1x384xf32, #tpu.memory_space<vmem>>, vector<1x1x384xf32>
    %103 = vector.shape_cast %102 : vector<1x1x384xf32> to vector<1x384xf32>
    %c20 = arith.constant 20 : index
    %c0_104 = arith.constant 0 : index
    %104 = vector.load %arg7[%c20, %c0_104] : memref<64x384xf32, #tpu.memory_space<vmem>>, vector<1x384xf32>
    tpu.vector_store %arg7[%c20, %c0_104], %103 {strides = array<i32>} : memref<64x384xf32, #tpu.memory_space<vmem>>, vector<1x384xf32>,
    %c5_105 = arith.constant 5 : index
    %c2_106 = arith.constant 2 : index
    %105 = memref.load %arg0[%c5_105, %c2_106] : memref<8x8xi32, #tpu.memory_space<smem>>
    %106 = arith.index_cast %105 : i32 to index
    %c0_107 = arith.constant 0 : index
    %c0_108 = arith.constant 0 : index
    %107 = vector.load %arg1[%106, %c0_107, %c0_108] : memref<32x1x384xf32, #tpu.memory_space<vmem>>, vector<1x1x384xf32>
    %108 = vector.shape_cast %107 : vector<1x1x384xf32> to vector<1x384xf32>
    %c21 = arith.constant 21 : index
    %c0_109 = arith.constant 0 : index
    %109 = vector.load %arg7[%c21, %c0_109] : memref<64x384xf32, #tpu.memory_space<vmem>>, vector<1x384xf32>
    tpu.vector_store %arg7[%c21, %c0_109], %108 {strides = array<i32>} : memref<64x384xf32, #tpu.memory_space<vmem>>, vector<1x384xf32>,
    %c6_110 = arith.constant 6 : index
    %c2_111 = arith.constant 2 : index
    %110 = memref.load %arg0[%c6_110, %c2_111] : memref<8x8xi32, #tpu.memory_space<smem>>
    %111 = arith.index_cast %110 : i32 to index
    %c0_112 = arith.constant 0 : index
    %c0_113 = arith.constant 0 : index
    %112 = vector.load %arg1[%111, %c0_112, %c0_113] : memref<32x1x384xf32, #tpu.memory_space<vmem>>, vector<1x1x384xf32>
    %113 = vector.shape_cast %112 : vector<1x1x384xf32> to vector<1x384xf32>
    %c22 = arith.constant 22 : index
    %c0_114 = arith.constant 0 : index
    %114 = vector.load %arg7[%c22, %c0_114] : memref<64x384xf32, #tpu.memory_space<vmem>>, vector<1x384xf32>
    tpu.vector_store %arg7[%c22, %c0_114], %113 {strides = array<i32>} : memref<64x384xf32, #tpu.memory_space<vmem>>, vector<1x384xf32>,
    %c7_115 = arith.constant 7 : index
    %c2_116 = arith.constant 2 : index
    %115 = memref.load %arg0[%c7_115, %c2_116] : memref<8x8xi32, #tpu.memory_space<smem>>
    %116 = arith.index_cast %115 : i32 to index
    %c0_117 = arith.constant 0 : index
    %c0_118 = arith.constant 0 : index
    %117 = vector.load %arg1[%116, %c0_117, %c0_118] : memref<32x1x384xf32, #tpu.memory_space<vmem>>, vector<1x1x384xf32>
    %118 = vector.shape_cast %117 : vector<1x1x384xf32> to vector<1x384xf32>
    %c23 = arith.constant 23 : index
    %c0_119 = arith.constant 0 : index
    %119 = vector.load %arg7[%c23, %c0_119] : memref<64x384xf32, #tpu.memory_space<vmem>>, vector<1x384xf32>
    tpu.vector_store %arg7[%c23, %c0_119], %118 {strides = array<i32>} : memref<64x384xf32, #tpu.memory_space<vmem>>, vector<1x384xf32>,
    %c0_120 = arith.constant 0 : index
    %c3_121 = arith.constant 3 : index
    %120 = memref.load %arg0[%c0_120, %c3_121] : memref<8x8xi32, #tpu.memory_space<smem>>
    %121 = arith.index_cast %120 : i32 to index
    %c0_122 = arith.constant 0 : index
    %c0_123 = arith.constant 0 : index
    %122 = vector.load %arg1[%121, %c0_122, %c0_123] : memref<32x1x384xf32, #tpu.memory_space<vmem>>, vector<1x1x384xf32>
    %123 = vector.shape_cast %122 : vector<1x1x384xf32> to vector<1x384xf32>
    %c24 = arith.constant 24 : index
    %c0_124 = arith.constant 0 : index
    %124 = vector.load %arg7[%c24, %c0_124] : memref<64x384xf32, #tpu.memory_space<vmem>>, vector<1x384xf32>
    tpu.vector_store %arg7[%c24, %c0_124], %123 {strides = array<i32>} : memref<64x384xf32, #tpu.memory_space<vmem>>, vector<1x384xf32>,
    %c1_125 = arith.constant 1 : index
    %c3_126 = arith.constant 3 : index
    %125 = memref.load %arg0[%c1_125, %c3_126] : memref<8x8xi32, #tpu.memory_space<smem>>
    %126 = arith.index_cast %125 : i32 to index
    %c0_127 = arith.constant 0 : index
    %c0_128 = arith.constant 0 : index
    %127 = vector.load %arg1[%126, %c0_127, %c0_128] : memref<32x1x384xf32, #tpu.memory_space<vmem>>, vector<1x1x384xf32>
    %128 = vector.shape_cast %127 : vector<1x1x384xf32> to vector<1x384xf32>
    %c25 = arith.constant 25 : index
    %c0_129 = arith.constant 0 : index
    %129 = vector.load %arg7[%c25, %c0_129] : memref<64x384xf32, #tpu.memory_space<vmem>>, vector<1x384xf32>
    tpu.vector_store %arg7[%c25, %c0_129], %128 {strides = array<i32>} : memref<64x384xf32, #tpu.memory_space<vmem>>, vector<1x384xf32>,
    %c2_130 = arith.constant 2 : index
    %c3_131 = arith.constant 3 : index
    %130 = memref.load %arg0[%c2_130, %c3_131] : memref<8x8xi32, #tpu.memory_space<smem>>
    %131 = arith.index_cast %130 : i32 to index
    %c0_132 = arith.constant 0 : index
    %c0_133 = arith.constant 0 : index
    %132 = vector.load %arg1[%131, %c0_132, %c0_133] : memref<32x1x384xf32, #tpu.memory_space<vmem>>, vector<1x1x384xf32>
    %133 = vector.shape_cast %132 : vector<1x1x384xf32> to vector<1x384xf32>
    %c26 = arith.constant 26 : index
    %c0_134 = arith.constant 0 : index
    %134 = vector.load %arg7[%c26, %c0_134] : memref<64x384xf32, #tpu.memory_space<vmem>>, vector<1x384xf32>
    tpu.vector_store %arg7[%c26, %c0_134], %133 {strides = array<i32>} : memref<64x384xf32, #tpu.memory_space<vmem>>, vector<1x384xf32>,
    %c3_135 = arith.constant 3 : index
    %c3_136 = arith.constant 3 : index
    %135 = memref.load %arg0[%c3_135, %c3_136] : memref<8x8xi32, #tpu.memory_space<smem>>
    %136 = arith.index_cast %135 : i32 to index
    %c0_137 = arith.constant 0 : index
    %c0_138 = arith.constant 0 : index
    %137 = vector.load %arg1[%136, %c0_137, %c0_138] : memref<32x1x384xf32, #tpu.memory_space<vmem>>, vector<1x1x384xf32>
    %138 = vector.shape_cast %137 : vector<1x1x384xf32> to vector<1x384xf32>
    %c27 = arith.constant 27 : index
    %c0_139 = arith.constant 0 : index
    %139 = vector.load %arg7[%c27, %c0_139] : memref<64x384xf32, #tpu.memory_space<vmem>>, vector<1x384xf32>
    tpu.vector_store %arg7[%c27, %c0_139], %138 {strides = array<i32>} : memref<64x384xf32, #tpu.memory_space<vmem>>, vector<1x384xf32>,
    %c4_140 = arith.constant 4 : index
    %c3_141 = arith.constant 3 : index
    %140 = memref.load %arg0[%c4_140, %c3_141] : memref<8x8xi32, #tpu.memory_space<smem>>
    %141 = arith.index_cast %140 : i32 to index
    %c0_142 = arith.constant 0 : index
    %c0_143 = arith.constant 0 : index
    %142 = vector.load %arg1[%141, %c0_142, %c0_143] : memref<32x1x384xf32, #tpu.memory_space<vmem>>, vector<1x1x384xf32>
    %143 = vector.shape_cast %142 : vector<1x1x384xf32> to vector<1x384xf32>
    %c28 = arith.constant 28 : index
    %c0_144 = arith.constant 0 : index
    %144 = vector.load %arg7[%c28, %c0_144] : memref<64x384xf32, #tpu.memory_space<vmem>>, vector<1x384xf32>
    tpu.vector_store %arg7[%c28, %c0_144], %143 {strides = array<i32>} : memref<64x384xf32, #tpu.memory_space<vmem>>, vector<1x384xf32>,
    %c5_145 = arith.constant 5 : index
    %c3_146 = arith.constant 3 : index
    %145 = memref.load %arg0[%c5_145, %c3_146] : memref<8x8xi32, #tpu.memory_space<smem>>
    %146 = arith.index_cast %145 : i32 to index
    %c0_147 = arith.constant 0 : index
    %c0_148 = arith.constant 0 : index
    %147 = vector.load %arg1[%146, %c0_147, %c0_148] : memref<32x1x384xf32, #tpu.memory_space<vmem>>, vector<1x1x384xf32>
    %148 = vector.shape_cast %147 : vector<1x1x384xf32> to vector<1x384xf32>
    %c29 = arith.constant 29 : index
    %c0_149 = arith.constant 0 : index
    %149 = vector.load %arg7[%c29, %c0_149] : memref<64x384xf32, #tpu.memory_space<vmem>>, vector<1x384xf32>
    tpu.vector_store %arg7[%c29, %c0_149], %148 {strides = array<i32>} : memref<64x384xf32, #tpu.memory_space<vmem>>, vector<1x384xf32>,
    %c6_150 = arith.constant 6 : index
    %c3_151 = arith.constant 3 : index
    %150 = memref.load %arg0[%c6_150, %c3_151] : memref<8x8xi32, #tpu.memory_space<smem>>
    %151 = arith.index_cast %150 : i32 to index
    %c0_152 = arith.constant 0 : index
    %c0_153 = arith.constant 0 : index
    %152 = vector.load %arg1[%151, %c0_152, %c0_153] : memref<32x1x384xf32, #tpu.memory_space<vmem>>, vector<1x1x384xf32>
    %153 = vector.shape_cast %152 : vector<1x1x384xf32> to vector<1x384xf32>
    %c30 = arith.constant 30 : index
    %c0_154 = arith.constant 0 : index
    %154 = vector.load %arg7[%c30, %c0_154] : memref<64x384xf32, #tpu.memory_space<vmem>>, vector<1x384xf32>
    tpu.vector_store %arg7[%c30, %c0_154], %153 {strides = array<i32>} : memref<64x384xf32, #tpu.memory_space<vmem>>, vector<1x384xf32>,
    %c7_155 = arith.constant 7 : index
    %c3_156 = arith.constant 3 : index
    %155 = memref.load %arg0[%c7_155, %c3_156] : memref<8x8xi32, #tpu.memory_space<smem>>
    %156 = arith.index_cast %155 : i32 to index
    %c0_157 = arith.constant 0 : index
    %c0_158 = arith.constant 0 : index
    %157 = vector.load %arg1[%156, %c0_157, %c0_158] : memref<32x1x384xf32, #tpu.memory_space<vmem>>, vector<1x1x384xf32>
    %158 = vector.shape_cast %157 : vector<1x1x384xf32> to vector<1x384xf32>
    %c31 = arith.constant 31 : index
    %c0_159 = arith.constant 0 : index
    %159 = vector.load %arg7[%c31, %c0_159] : memref<64x384xf32, #tpu.memory_space<vmem>>, vector<1x384xf32>
    tpu.vector_store %arg7[%c31, %c0_159], %158 {strides = array<i32>} : memref<64x384xf32, #tpu.memory_space<vmem>>, vector<1x384xf32>,
    %c0_160 = arith.constant 0 : index
    %c4_161 = arith.constant 4 : index
    %160 = memref.load %arg0[%c0_160, %c4_161] : memref<8x8xi32, #tpu.memory_space<smem>>
    %161 = arith.index_cast %160 : i32 to index
    %c0_162 = arith.constant 0 : index
    %c0_163 = arith.constant 0 : index
    %162 = vector.load %arg1[%161, %c0_162, %c0_163] : memref<32x1x384xf32, #tpu.memory_space<vmem>>, vector<1x1x384xf32>
    %163 = vector.shape_cast %162 : vector<1x1x384xf32> to vector<1x384xf32>
    %c32 = arith.constant 32 : index
    %c0_164 = arith.constant 0 : index
    %164 = vector.load %arg7[%c32, %c0_164] : memref<64x384xf32, #tpu.memory_space<vmem>>, vector<1x384xf32>
    tpu.vector_store %arg7[%c32, %c0_164], %163 {strides = array<i32>} : memref<64x384xf32, #tpu.memory_space<vmem>>, vector<1x384xf32>,
    %c1_165 = arith.constant 1 : index
    %c4_166 = arith.constant 4 : index
    %165 = memref.load %arg0[%c1_165, %c4_166] : memref<8x8xi32, #tpu.memory_space<smem>>
    %166 = arith.index_cast %165 : i32 to index
    %c0_167 = arith.constant 0 : index
    %c0_168 = arith.constant 0 : index
    %167 = vector.load %arg1[%166, %c0_167, %c0_168] : memref<32x1x384xf32, #tpu.memory_space<vmem>>, vector<1x1x384xf32>
    %168 = vector.shape_cast %167 : vector<1x1x384xf32> to vector<1x384xf32>
    %c33 = arith.constant 33 : index
    %c0_169 = arith.constant 0 : index
    %169 = vector.load %arg7[%c33, %c0_169] : memref<64x384xf32, #tpu.memory_space<vmem>>, vector<1x384xf32>
    tpu.vector_store %arg7[%c33, %c0_169], %168 {strides = array<i32>} : memref<64x384xf32, #tpu.memory_space<vmem>>, vector<1x384xf32>,
    %c2_170 = arith.constant 2 : index
    %c4_171 = arith.constant 4 : index
    %170 = memref.load %arg0[%c2_170, %c4_171] : memref<8x8xi32, #tpu.memory_space<smem>>
    %171 = arith.index_cast %170 : i32 to index
    %c0_172 = arith.constant 0 : index
    %c0_173 = arith.constant 0 : index
    %172 = vector.load %arg1[%171, %c0_172, %c0_173] : memref<32x1x384xf32, #tpu.memory_space<vmem>>, vector<1x1x384xf32>
    %173 = vector.shape_cast %172 : vector<1x1x384xf32> to vector<1x384xf32>
    %c34 = arith.constant 34 : index
    %c0_174 = arith.constant 0 : index
    %174 = vector.load %arg7[%c34, %c0_174] : memref<64x384xf32, #tpu.memory_space<vmem>>, vector<1x384xf32>
    tpu.vector_store %arg7[%c34, %c0_174], %173 {strides = array<i32>} : memref<64x384xf32, #tpu.memory_space<vmem>>, vector<1x384xf32>,
    %c3_175 = arith.constant 3 : index
    %c4_176 = arith.constant 4 : index
    %175 = memref.load %arg0[%c3_175, %c4_176] : memref<8x8xi32, #tpu.memory_space<smem>>
    %176 = arith.index_cast %175 : i32 to index
    %c0_177 = arith.constant 0 : index
    %c0_178 = arith.constant 0 : index
    %177 = vector.load %arg1[%176, %c0_177, %c0_178] : memref<32x1x384xf32, #tpu.memory_space<vmem>>, vector<1x1x384xf32>
    %178 = vector.shape_cast %177 : vector<1x1x384xf32> to vector<1x384xf32>
    %c35 = arith.constant 35 : index
    %c0_179 = arith.constant 0 : index
    %179 = vector.load %arg7[%c35, %c0_179] : memref<64x384xf32, #tpu.memory_space<vmem>>, vector<1x384xf32>
    tpu.vector_store %arg7[%c35, %c0_179], %178 {strides = array<i32>} : memref<64x384xf32, #tpu.memory_space<vmem>>, vector<1x384xf32>,
    %c4_180 = arith.constant 4 : index
    %c4_181 = arith.constant 4 : index
    %180 = memref.load %arg0[%c4_180, %c4_181] : memref<8x8xi32, #tpu.memory_space<smem>>
    %181 = arith.index_cast %180 : i32 to index
    %c0_182 = arith.constant 0 : index
    %c0_183 = arith.constant 0 : index
    %182 = vector.load %arg1[%181, %c0_182, %c0_183] : memref<32x1x384xf32, #tpu.memory_space<vmem>>, vector<1x1x384xf32>
    %183 = vector.shape_cast %182 : vector<1x1x384xf32> to vector<1x384xf32>
    %c36 = arith.constant 36 : index
    %c0_184 = arith.constant 0 : index
    %184 = vector.load %arg7[%c36, %c0_184] : memref<64x384xf32, #tpu.memory_space<vmem>>, vector<1x384xf32>
    tpu.vector_store %arg7[%c36, %c0_184], %183 {strides = array<i32>} : memref<64x384xf32, #tpu.memory_space<vmem>>, vector<1x384xf32>,
    %c5_185 = arith.constant 5 : index
    %c4_186 = arith.constant 4 : index
    %185 = memref.load %arg0[%c5_185, %c4_186] : memref<8x8xi32, #tpu.memory_space<smem>>
    %186 = arith.index_cast %185 : i32 to index
    %c0_187 = arith.constant 0 : index
    %c0_188 = arith.constant 0 : index
    %187 = vector.load %arg1[%186, %c0_187, %c0_188] : memref<32x1x384xf32, #tpu.memory_space<vmem>>, vector<1x1x384xf32>
    %188 = vector.shape_cast %187 : vector<1x1x384xf32> to vector<1x384xf32>
    %c37 = arith.constant 37 : index
    %c0_189 = arith.constant 0 : index
    %189 = vector.load %arg7[%c37, %c0_189] : memref<64x384xf32, #tpu.memory_space<vmem>>, vector<1x384xf32>
    tpu.vector_store %arg7[%c37, %c0_189], %188 {strides = array<i32>} : memref<64x384xf32, #tpu.memory_space<vmem>>, vector<1x384xf32>,
    %c6_190 = arith.constant 6 : index
    %c4_191 = arith.constant 4 : index
    %190 = memref.load %arg0[%c6_190, %c4_191] : memref<8x8xi32, #tpu.memory_space<smem>>
    %191 = arith.index_cast %190 : i32 to index
    %c0_192 = arith.constant 0 : index
    %c0_193 = arith.constant 0 : index
    %192 = vector.load %arg1[%191, %c0_192, %c0_193] : memref<32x1x384xf32, #tpu.memory_space<vmem>>, vector<1x1x384xf32>
    %193 = vector.shape_cast %192 : vector<1x1x384xf32> to vector<1x384xf32>
    %c38 = arith.constant 38 : index
    %c0_194 = arith.constant 0 : index
    %194 = vector.load %arg7[%c38, %c0_194] : memref<64x384xf32, #tpu.memory_space<vmem>>, vector<1x384xf32>
    tpu.vector_store %arg7[%c38, %c0_194], %193 {strides = array<i32>} : memref<64x384xf32, #tpu.memory_space<vmem>>, vector<1x384xf32>,
    %c7_195 = arith.constant 7 : index
    %c4_196 = arith.constant 4 : index
    %195 = memref.load %arg0[%c7_195, %c4_196] : memref<8x8xi32, #tpu.memory_space<smem>>
    %196 = arith.index_cast %195 : i32 to index
    %c0_197 = arith.constant 0 : index
    %c0_198 = arith.constant 0 : index
    %197 = vector.load %arg1[%196, %c0_197, %c0_198] : memref<32x1x384xf32, #tpu.memory_space<vmem>>, vector<1x1x384xf32>
    %198 = vector.shape_cast %197 : vector<1x1x384xf32> to vector<1x384xf32>
    %c39 = arith.constant 39 : index
    %c0_199 = arith.constant 0 : index
    %199 = vector.load %arg7[%c39, %c0_199] : memref<64x384xf32, #tpu.memory_space<vmem>>, vector<1x384xf32>
    tpu.vector_store %arg7[%c39, %c0_199], %198 {strides = array<i32>} : memref<64x384xf32, #tpu.memory_space<vmem>>, vector<1x384xf32>,
    %c0_200 = arith.constant 0 : index
    %c5_201 = arith.constant 5 : index
    %200 = memref.load %arg0[%c0_200, %c5_201] : memref<8x8xi32, #tpu.memory_space<smem>>
    %201 = arith.index_cast %200 : i32 to index
    %c0_202 = arith.constant 0 : index
    %c0_203 = arith.constant 0 : index
    %202 = vector.load %arg1[%201, %c0_202, %c0_203] : memref<32x1x384xf32, #tpu.memory_space<vmem>>, vector<1x1x384xf32>
    %203 = vector.shape_cast %202 : vector<1x1x384xf32> to vector<1x384xf32>
    %c40 = arith.constant 40 : index
    %c0_204 = arith.constant 0 : index
    %204 = vector.load %arg7[%c40, %c0_204] : memref<64x384xf32, #tpu.memory_space<vmem>>, vector<1x384xf32>
    tpu.vector_store %arg7[%c40, %c0_204], %203 {strides = array<i32>} : memref<64x384xf32, #tpu.memory_space<vmem>>, vector<1x384xf32>,
    %c1_205 = arith.constant 1 : index
    %c5_206 = arith.constant 5 : index
    %205 = memref.load %arg0[%c1_205, %c5_206] : memref<8x8xi32, #tpu.memory_space<smem>>
    %206 = arith.index_cast %205 : i32 to index
    %c0_207 = arith.constant 0 : index
    %c0_208 = arith.constant 0 : index
    %207 = vector.load %arg1[%206, %c0_207, %c0_208] : memref<32x1x384xf32, #tpu.memory_space<vmem>>, vector<1x1x384xf32>
    %208 = vector.shape_cast %207 : vector<1x1x384xf32> to vector<1x384xf32>
    %c41 = arith.constant 41 : index
    %c0_209 = arith.constant 0 : index
    %209 = vector.load %arg7[%c41, %c0_209] : memref<64x384xf32, #tpu.memory_space<vmem>>, vector<1x384xf32>
    tpu.vector_store %arg7[%c41, %c0_209], %208 {strides = array<i32>} : memref<64x384xf32, #tpu.memory_space<vmem>>, vector<1x384xf32>,
    %c2_210 = arith.constant 2 : index
    %c5_211 = arith.constant 5 : index
    %210 = memref.load %arg0[%c2_210, %c5_211] : memref<8x8xi32, #tpu.memory_space<smem>>
    %211 = arith.index_cast %210 : i32 to index
    %c0_212 = arith.constant 0 : index
    %c0_213 = arith.constant 0 : index
    %212 = vector.load %arg1[%211, %c0_212, %c0_213] : memref<32x1x384xf32, #tpu.memory_space<vmem>>, vector<1x1x384xf32>
    %213 = vector.shape_cast %212 : vector<1x1x384xf32> to vector<1x384xf32>
    %c42 = arith.constant 42 : index
    %c0_214 = arith.constant 0 : index
    %214 = vector.load %arg7[%c42, %c0_214] : memref<64x384xf32, #tpu.memory_space<vmem>>, vector<1x384xf32>
    tpu.vector_store %arg7[%c42, %c0_214], %213 {strides = array<i32>} : memref<64x384xf32, #tpu.memory_space<vmem>>, vector<1x384xf32>,
    %c3_215 = arith.constant 3 : index
    %c5_216 = arith.constant 5 : index
    %215 = memref.load %arg0[%c3_215, %c5_216] : memref<8x8xi32, #tpu.memory_space<smem>>
    %216 = arith.index_cast %215 : i32 to index
    %c0_217 = arith.constant 0 : index
    %c0_218 = arith.constant 0 : index
    %217 = vector.load %arg1[%216, %c0_217, %c0_218] : memref<32x1x384xf32, #tpu.memory_space<vmem>>, vector<1x1x384xf32>
    %218 = vector.shape_cast %217 : vector<1x1x384xf32> to vector<1x384xf32>
    %c43 = arith.constant 43 : index
    %c0_219 = arith.constant 0 : index
    %219 = vector.load %arg7[%c43, %c0_219] : memref<64x384xf32, #tpu.memory_space<vmem>>, vector<1x384xf32>
    tpu.vector_store %arg7[%c43, %c0_219], %218 {strides = array<i32>} : memref<64x384xf32, #tpu.memory_space<vmem>>, vector<1x384xf32>,
    %c4_220 = arith.constant 4 : index
    %c5_221 = arith.constant 5 : index
    %220 = memref.load %arg0[%c4_220, %c5_221] : memref<8x8xi32, #tpu.memory_space<smem>>
    %221 = arith.index_cast %220 : i32 to index
    %c0_222 = arith.constant 0 : index
    %c0_223 = arith.constant 0 : index
    %222 = vector.load %arg1[%221, %c0_222, %c0_223] : memref<32x1x384xf32, #tpu.memory_space<vmem>>, vector<1x1x384xf32>
    %223 = vector.shape_cast %222 : vector<1x1x384xf32> to vector<1x384xf32>
    %c44 = arith.constant 44 : index
    %c0_224 = arith.constant 0 : index
    %224 = vector.load %arg7[%c44, %c0_224] : memref<64x384xf32, #tpu.memory_space<vmem>>, vector<1x384xf32>
    tpu.vector_store %arg7[%c44, %c0_224], %223 {strides = array<i32>} : memref<64x384xf32, #tpu.memory_space<vmem>>, vector<1x384xf32>,
    %c5_225 = arith.constant 5 : index
    %c5_226 = arith.constant 5 : index
    %225 = memref.load %arg0[%c5_225, %c5_226] : memref<8x8xi32, #tpu.memory_space<smem>>
    %226 = arith.index_cast %225 : i32 to index
    %c0_227 = arith.constant 0 : index
    %c0_228 = arith.constant 0 : index
    %227 = vector.load %arg1[%226, %c0_227, %c0_228] : memref<32x1x384xf32, #tpu.memory_space<vmem>>, vector<1x1x384xf32>
    %228 = vector.shape_cast %227 : vector<1x1x384xf32> to vector<1x384xf32>
    %c45 = arith.constant 45 : index
    %c0_229 = arith.constant 0 : index
    %229 = vector.load %arg7[%c45, %c0_229] : memref<64x384xf32, #tpu.memory_space<vmem>>, vector<1x384xf32>
    tpu.vector_store %arg7[%c45, %c0_229], %228 {strides = array<i32>} : memref<64x384xf32, #tpu.memory_space<vmem>>, vector<1x384xf32>,
    %c6_230 = arith.constant 6 : index
    %c5_231 = arith.constant 5 : index
    %230 = memref.load %arg0[%c6_230, %c5_231] : memref<8x8xi32, #tpu.memory_space<smem>>
    %231 = arith.index_cast %230 : i32 to index
    %c0_232 = arith.constant 0 : index
    %c0_233 = arith.constant 0 : index
    %232 = vector.load %arg1[%231, %c0_232, %c0_233] : memref<32x1x384xf32, #tpu.memory_space<vmem>>, vector<1x1x384xf32>
    %233 = vector.shape_cast %232 : vector<1x1x384xf32> to vector<1x384xf32>
    %c46 = arith.constant 46 : index
    %c0_234 = arith.constant 0 : index
    %234 = vector.load %arg7[%c46, %c0_234] : memref<64x384xf32, #tpu.memory_space<vmem>>, vector<1x384xf32>
    tpu.vector_store %arg7[%c46, %c0_234], %233 {strides = array<i32>} : memref<64x384xf32, #tpu.memory_space<vmem>>, vector<1x384xf32>,
    %c7_235 = arith.constant 7 : index
    %c5_236 = arith.constant 5 : index
    %235 = memref.load %arg0[%c7_235, %c5_236] : memref<8x8xi32, #tpu.memory_space<smem>>
    %236 = arith.index_cast %235 : i32 to index
    %c0_237 = arith.constant 0 : index
    %c0_238 = arith.constant 0 : index
    %237 = vector.load %arg1[%236, %c0_237, %c0_238] : memref<32x1x384xf32, #tpu.memory_space<vmem>>, vector<1x1x384xf32>
    %238 = vector.shape_cast %237 : vector<1x1x384xf32> to vector<1x384xf32>
    %c47 = arith.constant 47 : index
    %c0_239 = arith.constant 0 : index
    %239 = vector.load %arg7[%c47, %c0_239] : memref<64x384xf32, #tpu.memory_space<vmem>>, vector<1x384xf32>
    tpu.vector_store %arg7[%c47, %c0_239], %238 {strides = array<i32>} : memref<64x384xf32, #tpu.memory_space<vmem>>, vector<1x384xf32>,
    %c0_240 = arith.constant 0 : index
    %c6_241 = arith.constant 6 : index
    %240 = memref.load %arg0[%c0_240, %c6_241] : memref<8x8xi32, #tpu.memory_space<smem>>
    %241 = arith.index_cast %240 : i32 to index
    %c0_242 = arith.constant 0 : index
    %c0_243 = arith.constant 0 : index
    %242 = vector.load %arg1[%241, %c0_242, %c0_243] : memref<32x1x384xf32, #tpu.memory_space<vmem>>, vector<1x1x384xf32>
    %243 = vector.shape_cast %242 : vector<1x1x384xf32> to vector<1x384xf32>
    %c48 = arith.constant 48 : index
    %c0_244 = arith.constant 0 : index
    %244 = vector.load %arg7[%c48, %c0_244] : memref<64x384xf32, #tpu.memory_space<vmem>>, vector<1x384xf32>
    tpu.vector_store %arg7[%c48, %c0_244], %243 {strides = array<i32>} : memref<64x384xf32, #tpu.memory_space<vmem>>, vector<1x384xf32>,
    %c1_245 = arith.constant 1 : index
    %c6_246 = arith.constant 6 : index
    %245 = memref.load %arg0[%c1_245, %c6_246] : memref<8x8xi32, #tpu.memory_space<smem>>
    %246 = arith.index_cast %245 : i32 to index
    %c0_247 = arith.constant 0 : index
    %c0_248 = arith.constant 0 : index
    %247 = vector.load %arg1[%246, %c0_247, %c0_248] : memref<32x1x384xf32, #tpu.memory_space<vmem>>, vector<1x1x384xf32>
    %248 = vector.shape_cast %247 : vector<1x1x384xf32> to vector<1x384xf32>
    %c49 = arith.constant 49 : index
    %c0_249 = arith.constant 0 : index
    %249 = vector.load %arg7[%c49, %c0_249] : memref<64x384xf32, #tpu.memory_space<vmem>>, vector<1x384xf32>
    tpu.vector_store %arg7[%c49, %c0_249], %248 {strides = array<i32>} : memref<64x384xf32, #tpu.memory_space<vmem>>, vector<1x384xf32>,
    %c2_250 = arith.constant 2 : index
    %c6_251 = arith.constant 6 : index
    %250 = memref.load %arg0[%c2_250, %c6_251] : memref<8x8xi32, #tpu.memory_space<smem>>
    %251 = arith.index_cast %250 : i32 to index
    %c0_252 = arith.constant 0 : index
    %c0_253 = arith.constant 0 : index
    %252 = vector.load %arg1[%251, %c0_252, %c0_253] : memref<32x1x384xf32, #tpu.memory_space<vmem>>, vector<1x1x384xf32>
    %253 = vector.shape_cast %252 : vector<1x1x384xf32> to vector<1x384xf32>
    %c50 = arith.constant 50 : index
    %c0_254 = arith.constant 0 : index
    %254 = vector.load %arg7[%c50, %c0_254] : memref<64x384xf32, #tpu.memory_space<vmem>>, vector<1x384xf32>
    tpu.vector_store %arg7[%c50, %c0_254], %253 {strides = array<i32>} : memref<64x384xf32, #tpu.memory_space<vmem>>, vector<1x384xf32>,
    %c3_255 = arith.constant 3 : index
    %c6_256 = arith.constant 6 : index
    %255 = memref.load %arg0[%c3_255, %c6_256] : memref<8x8xi32, #tpu.memory_space<smem>>
    %256 = arith.index_cast %255 : i32 to index
    %c0_257 = arith.constant 0 : index
    %c0_258 = arith.constant 0 : index
    %257 = vector.load %arg1[%256, %c0_257, %c0_258] : memref<32x1x384xf32, #tpu.memory_space<vmem>>, vector<1x1x384xf32>
    %258 = vector.shape_cast %257 : vector<1x1x384xf32> to vector<1x384xf32>
    %c51 = arith.constant 51 : index
    %c0_259 = arith.constant 0 : index
    %259 = vector.load %arg7[%c51, %c0_259] : memref<64x384xf32, #tpu.memory_space<vmem>>, vector<1x384xf32>
    tpu.vector_store %arg7[%c51, %c0_259], %258 {strides = array<i32>} : memref<64x384xf32, #tpu.memory_space<vmem>>, vector<1x384xf32>,
    %c4_260 = arith.constant 4 : index
    %c6_261 = arith.constant 6 : index
    %260 = memref.load %arg0[%c4_260, %c6_261] : memref<8x8xi32, #tpu.memory_space<smem>>
    %261 = arith.index_cast %260 : i32 to index
    %c0_262 = arith.constant 0 : index
    %c0_263 = arith.constant 0 : index
    %262 = vector.load %arg1[%261, %c0_262, %c0_263] : memref<32x1x384xf32, #tpu.memory_space<vmem>>, vector<1x1x384xf32>
    %263 = vector.shape_cast %262 : vector<1x1x384xf32> to vector<1x384xf32>
    %c52 = arith.constant 52 : index
    %c0_264 = arith.constant 0 : index
    %264 = vector.load %arg7[%c52, %c0_264] : memref<64x384xf32, #tpu.memory_space<vmem>>, vector<1x384xf32>
    tpu.vector_store %arg7[%c52, %c0_264], %263 {strides = array<i32>} : memref<64x384xf32, #tpu.memory_space<vmem>>, vector<1x384xf32>,
    %c5_265 = arith.constant 5 : index
    %c6_266 = arith.constant 6 : index
    %265 = memref.load %arg0[%c5_265, %c6_266] : memref<8x8xi32, #tpu.memory_space<smem>>
    %266 = arith.index_cast %265 : i32 to index
    %c0_267 = arith.constant 0 : index
    %c0_268 = arith.constant 0 : index
    %267 = vector.load %arg1[%266, %c0_267, %c0_268] : memref<32x1x384xf32, #tpu.memory_space<vmem>>, vector<1x1x384xf32>
    %268 = vector.shape_cast %267 : vector<1x1x384xf32> to vector<1x384xf32>
    %c53 = arith.constant 53 : index
    %c0_269 = arith.constant 0 : index
    %269 = vector.load %arg7[%c53, %c0_269] : memref<64x384xf32, #tpu.memory_space<vmem>>, vector<1x384xf32>
    tpu.vector_store %arg7[%c53, %c0_269], %268 {strides = array<i32>} : memref<64x384xf32, #tpu.memory_space<vmem>>, vector<1x384xf32>,
    %c6_270 = arith.constant 6 : index
    %c6_271 = arith.constant 6 : index
    %270 = memref.load %arg0[%c6_270, %c6_271] : memref<8x8xi32, #tpu.memory_space<smem>>
    %271 = arith.index_cast %270 : i32 to index
    %c0_272 = arith.constant 0 : index
    %c0_273 = arith.constant 0 : index
    %272 = vector.load %arg1[%271, %c0_272, %c0_273] : memref<32x1x384xf32, #tpu.memory_space<vmem>>, vector<1x1x384xf32>
    %273 = vector.shape_cast %272 : vector<1x1x384xf32> to vector<1x384xf32>
    %c54 = arith.constant 54 : index
    %c0_274 = arith.constant 0 : index
    %274 = vector.load %arg7[%c54, %c0_274] : memref<64x384xf32, #tpu.memory_space<vmem>>, vector<1x384xf32>
    tpu.vector_store %arg7[%c54, %c0_274], %273 {strides = array<i32>} : memref<64x384xf32, #tpu.memory_space<vmem>>, vector<1x384xf32>,
    %c7_275 = arith.constant 7 : index
    %c6_276 = arith.constant 6 : index
    %275 = memref.load %arg0[%c7_275, %c6_276] : memref<8x8xi32, #tpu.memory_space<smem>>
    %276 = arith.index_cast %275 : i32 to index
    %c0_277 = arith.constant 0 : index
    %c0_278 = arith.constant 0 : index
    %277 = vector.load %arg1[%276, %c0_277, %c0_278] : memref<32x1x384xf32, #tpu.memory_space<vmem>>, vector<1x1x384xf32>
    %278 = vector.shape_cast %277 : vector<1x1x384xf32> to vector<1x384xf32>
    %c55 = arith.constant 55 : index
    %c0_279 = arith.constant 0 : index
    %279 = vector.load %arg7[%c55, %c0_279] : memref<64x384xf32, #tpu.memory_space<vmem>>, vector<1x384xf32>
    tpu.vector_store %arg7[%c55, %c0_279], %278 {strides = array<i32>} : memref<64x384xf32, #tpu.memory_space<vmem>>, vector<1x384xf32>,
    %c0_280 = arith.constant 0 : index
    %c7_281 = arith.constant 7 : index
    %280 = memref.load %arg0[%c0_280, %c7_281] : memref<8x8xi32, #tpu.memory_space<smem>>
    %281 = arith.index_cast %280 : i32 to index
    %c0_282 = arith.constant 0 : index
    %c0_283 = arith.constant 0 : index
    %282 = vector.load %arg1[%281, %c0_282, %c0_283] : memref<32x1x384xf32, #tpu.memory_space<vmem>>, vector<1x1x384xf32>
    %283 = vector.shape_cast %282 : vector<1x1x384xf32> to vector<1x384xf32>
    %c56 = arith.constant 56 : index
    %c0_284 = arith.constant 0 : index
    %284 = vector.load %arg7[%c56, %c0_284] : memref<64x384xf32, #tpu.memory_space<vmem>>, vector<1x384xf32>
    tpu.vector_store %arg7[%c56, %c0_284], %283 {strides = array<i32>} : memref<64x384xf32, #tpu.memory_space<vmem>>, vector<1x384xf32>,
    %c1_285 = arith.constant 1 : index
    %c7_286 = arith.constant 7 : index
    %285 = memref.load %arg0[%c1_285, %c7_286] : memref<8x8xi32, #tpu.memory_space<smem>>
    %286 = arith.index_cast %285 : i32 to index
    %c0_287 = arith.constant 0 : index
    %c0_288 = arith.constant 0 : index
    %287 = vector.load %arg1[%286, %c0_287, %c0_288] : memref<32x1x384xf32, #tpu.memory_space<vmem>>, vector<1x1x384xf32>
    %288 = vector.shape_cast %287 : vector<1x1x384xf32> to vector<1x384xf32>
    %c57 = arith.constant 57 : index
    %c0_289 = arith.constant 0 : index
    %289 = vector.load %arg7[%c57, %c0_289] : memref<64x384xf32, #tpu.memory_space<vmem>>, vector<1x384xf32>
    tpu.vector_store %arg7[%c57, %c0_289], %288 {strides = array<i32>} : memref<64x384xf32, #tpu.memory_space<vmem>>, vector<1x384xf32>,
    %c2_290 = arith.constant 2 : index
    %c7_291 = arith.constant 7 : index
    %290 = memref.load %arg0[%c2_290, %c7_291] : memref<8x8xi32, #tpu.memory_space<smem>>
    %291 = arith.index_cast %290 : i32 to index
    %c0_292 = arith.constant 0 : index
    %c0_293 = arith.constant 0 : index
    %292 = vector.load %arg1[%291, %c0_292, %c0_293] : memref<32x1x384xf32, #tpu.memory_space<vmem>>, vector<1x1x384xf32>
    %293 = vector.shape_cast %292 : vector<1x1x384xf32> to vector<1x384xf32>
    %c58 = arith.constant 58 : index
    %c0_294 = arith.constant 0 : index
    %294 = vector.load %arg7[%c58, %c0_294] : memref<64x384xf32, #tpu.memory_space<vmem>>, vector<1x384xf32>
    tpu.vector_store %arg7[%c58, %c0_294], %293 {strides = array<i32>} : memref<64x384xf32, #tpu.memory_space<vmem>>, vector<1x384xf32>,
    %c3_295 = arith.constant 3 : index
    %c7_296 = arith.constant 7 : index
    %295 = memref.load %arg0[%c3_295, %c7_296] : memref<8x8xi32, #tpu.memory_space<smem>>
    %296 = arith.index_cast %295 : i32 to index
    %c0_297 = arith.constant 0 : index
    %c0_298 = arith.constant 0 : index
    %297 = vector.load %arg1[%296, %c0_297, %c0_298] : memref<32x1x384xf32, #tpu.memory_space<vmem>>, vector<1x1x384xf32>
    %298 = vector.shape_cast %297 : vector<1x1x384xf32> to vector<1x384xf32>
    %c59 = arith.constant 59 : index
    %c0_299 = arith.constant 0 : index
    %299 = vector.load %arg7[%c59, %c0_299] : memref<64x384xf32, #tpu.memory_space<vmem>>, vector<1x384xf32>
    tpu.vector_store %arg7[%c59, %c0_299], %298 {strides = array<i32>} : memref<64x384xf32, #tpu.memory_space<vmem>>, vector<1x384xf32>,
    %c4_300 = arith.constant 4 : index
    %c7_301 = arith.constant 7 : index
    %300 = memref.load %arg0[%c4_300, %c7_301] : memref<8x8xi32, #tpu.memory_space<smem>>
    %301 = arith.index_cast %300 : i32 to index
    %c0_302 = arith.constant 0 : index
    %c0_303 = arith.constant 0 : index
    %302 = vector.load %arg1[%301, %c0_302, %c0_303] : memref<32x1x384xf32, #tpu.memory_space<vmem>>, vector<1x1x384xf32>
    %303 = vector.shape_cast %302 : vector<1x1x384xf32> to vector<1x384xf32>
    %c60 = arith.constant 60 : index
    %c0_304 = arith.constant 0 : index
    %304 = vector.load %arg7[%c60, %c0_304] : memref<64x384xf32, #tpu.memory_space<vmem>>, vector<1x384xf32>
    tpu.vector_store %arg7[%c60, %c0_304], %303 {strides = array<i32>} : memref<64x384xf32, #tpu.memory_space<vmem>>, vector<1x384xf32>,
    %c5_305 = arith.constant 5 : index
    %c7_306 = arith.constant 7 : index
    %305 = memref.load %arg0[%c5_305, %c7_306] : memref<8x8xi32, #tpu.memory_space<smem>>
    %306 = arith.index_cast %305 : i32 to index
    %c0_307 = arith.constant 0 : index
    %c0_308 = arith.constant 0 : index
    %307 = vector.load %arg1[%306, %c0_307, %c0_308] : memref<32x1x384xf32, #tpu.memory_space<vmem>>, vector<1x1x384xf32>
    %308 = vector.shape_cast %307 : vector<1x1x384xf32> to vector<1x384xf32>
    %c61 = arith.constant 61 : index
    %c0_309 = arith.constant 0 : index
    %309 = vector.load %arg7[%c61, %c0_309] : memref<64x384xf32, #tpu.memory_space<vmem>>, vector<1x384xf32>
    tpu.vector_store %arg7[%c61, %c0_309], %308 {strides = array<i32>} : memref<64x384xf32, #tpu.memory_space<vmem>>, vector<1x384xf32>,
    %c6_310 = arith.constant 6 : index
    %c7_311 = arith.constant 7 : index
    %310 = memref.load %arg0[%c6_310, %c7_311] : memref<8x8xi32, #tpu.memory_space<smem>>
    %311 = arith.index_cast %310 : i32 to index
    %c0_312 = arith.constant 0 : index
    %c0_313 = arith.constant 0 : index
    %312 = vector.load %arg1[%311, %c0_312, %c0_313] : memref<32x1x384xf32, #tpu.memory_space<vmem>>, vector<1x1x384xf32>
    %313 = vector.shape_cast %312 : vector<1x1x384xf32> to vector<1x384xf32>
    %c62 = arith.constant 62 : index
    %c0_314 = arith.constant 0 : index
    %314 = vector.load %arg7[%c62, %c0_314] : memref<64x384xf32, #tpu.memory_space<vmem>>, vector<1x384xf32>
    tpu.vector_store %arg7[%c62, %c0_314], %313 {strides = array<i32>} : memref<64x384xf32, #tpu.memory_space<vmem>>, vector<1x384xf32>,
    %c7_315 = arith.constant 7 : index
    %c7_316 = arith.constant 7 : index
    %315 = memref.load %arg0[%c7_315, %c7_316] : memref<8x8xi32, #tpu.memory_space<smem>>
    %316 = arith.index_cast %315 : i32 to index
    %c0_317 = arith.constant 0 : index
    %c0_318 = arith.constant 0 : index
    %317 = vector.load %arg1[%316, %c0_317, %c0_318] : memref<32x1x384xf32, #tpu.memory_space<vmem>>, vector<1x1x384xf32>
    %318 = vector.shape_cast %317 : vector<1x1x384xf32> to vector<1x384xf32>
    %c63 = arith.constant 63 : index
    %c0_319 = arith.constant 0 : index
    %319 = vector.load %arg7[%c63, %c0_319] : memref<64x384xf32, #tpu.memory_space<vmem>>, vector<1x384xf32>
    tpu.vector_store %arg7[%c63, %c0_319], %318 {strides = array<i32>} : memref<64x384xf32, #tpu.memory_space<vmem>>, vector<1x384xf32>,
    %cst = arith.constant 0.000000e+00 : f32
    %320 = vector.broadcast %cst : f32 to vector<8x128xf32>
    %c0_i32 = arith.constant 0 : i32
    %c8_i32 = arith.constant 8 : i32
    %321 = arith.muli %c0_i32, %c8_i32 : i32
    %322 = tpu.assume_multiple %321, 8 : i32
    %323 = arith.index_cast %322 : i32 to index
    %c0_320 = arith.constant 0 : index
    %324 = vector.load %arg7[%323, %c0_320] : memref<64x384xf32, #tpu.memory_space<vmem>>, vector<8x384xf32>
    %c0_321 = arith.constant 0 : index
    %c0_322 = arith.constant 0 : index
    %325 = vector.load %arg2[%c0_321, %c0_322] : memref<128x384xf32, #tpu.memory_space<vmem>>, vector<128x384xf32>
    %cst_323 = arith.constant dense<0.000000e+00> : vector<8x384xf32>
    %326 = tpu.matmul %320, %325, %cst_323 {dimension_numbers = #tpu.dot_dimension_numbers<[1], [0], [0], [1], [0, 0, 1, 1], [], []>} : vector<8x128xf32>, vector<128x384xf32>, vector<8x384xf32> -> vector<8x384xf32>
    %327 = vector.extract_strided_slice %324 {offsets = [0, 0], sizes = [8, 128], strides = [1, 1]} : vector<8x384xf32> to vector<8x128xf32>
    %328 = vector.extract_strided_slice %326 {offsets = [0, 0], sizes = [8, 128], strides = [1, 1]} : vector<8x384xf32> to vector<8x128xf32>
    %329 = arith.addf %327, %328 : vector<8x128xf32>
    %330 = arith.negf %329 : vector<8x128xf32>
    %331 = math.exp %330 : vector<8x128xf32>
    %cst_324 = arith.constant 1.000000e+00 : f32
    %332 = vector.broadcast %cst_324 : f32 to vector<8x128xf32>
    %333 = arith.addf %332, %331 : vector<8x128xf32>
    %334 = arith.divf %332, %333 : vector<8x128xf32>
    %335 = vector.extract_strided_slice %324 {offsets = [0, 128], sizes = [8, 128], strides = [1, 1]} : vector<8x384xf32> to vector<8x128xf32>
    %336 = vector.extract_strided_slice %326 {offsets = [0, 128], sizes = [8, 128], strides = [1, 1]} : vector<8x384xf32> to vector<8x128xf32>
    %337 = arith.addf %335, %336 : vector<8x128xf32>
    %338 = arith.negf %337 : vector<8x128xf32>
    %339 = math.exp %338 : vector<8x128xf32>
    %cst_325 = arith.constant 1.000000e+00 : f32
    %340 = vector.broadcast %cst_325 : f32 to vector<8x128xf32>
    %341 = arith.addf %340, %339 : vector<8x128xf32>
    %342 = arith.divf %340, %341 : vector<8x128xf32>
    %343 = vector.extract_strided_slice %324 {offsets = [0, 256], sizes = [8, 128], strides = [1, 1]} : vector<8x384xf32> to vector<8x128xf32>
    %344 = vector.extract_strided_slice %326 {offsets = [0, 256], sizes = [8, 128], strides = [1, 1]} : vector<8x384xf32> to vector<8x128xf32>
    %c0_326 = arith.constant 0 : index
    %c0_327 = arith.constant 0 : index
    %345 = vector.load %arg3[%c0_326, %c0_327] : memref<1x128xf32, #tpu.memory_space<vmem>>, vector<1x128xf32>
    %346 = vector.broadcast %345 : vector<1x128xf32> to vector<8x128xf32>
    %347 = arith.addf %344, %346 : vector<8x128xf32>
    %348 = arith.mulf %334, %347 : vector<8x128xf32>
    %349 = arith.addf %343, %348 : vector<8x128xf32>
    %350 = math.tanh %349 : vector<8x128xf32>
    %351 = arith.subf %320, %350 : vector<8x128xf32>
    %352 = arith.mulf %342, %351 : vector<8x128xf32>
    %353 = arith.addf %350, %352 : vector<8x128xf32>
    %354 = arith.index_cast %322 : i32 to index
    %c0_328 = arith.constant 0 : index
    %355 = vector.load %arg8[%354, %c0_328] : memref<64x128xf32, #tpu.memory_space<vmem>>, vector<8x128xf32>
    tpu.vector_store %arg8[%354, %c0_328], %353 {strides = array<i32>} : memref<64x128xf32, #tpu.memory_space<vmem>>, vector<8x128xf32>,
    %c1_i32 = arith.constant 1 : i32
    %c8_i32_329 = arith.constant 8 : i32
    %356 = arith.muli %c1_i32, %c8_i32_329 : i32
    %357 = tpu.assume_multiple %356, 8 : i32
    %358 = arith.index_cast %357 : i32 to index
    %c0_330 = arith.constant 0 : index
    %359 = vector.load %arg7[%358, %c0_330] : memref<64x384xf32, #tpu.memory_space<vmem>>, vector<8x384xf32>
    %c0_331 = arith.constant 0 : index
    %c0_332 = arith.constant 0 : index
    %360 = vector.load %arg2[%c0_331, %c0_332] : memref<128x384xf32, #tpu.memory_space<vmem>>, vector<128x384xf32>
    %cst_333 = arith.constant dense<0.000000e+00> : vector<8x384xf32>
    %361 = tpu.matmul %353, %360, %cst_333 {dimension_numbers = #tpu.dot_dimension_numbers<[1], [0], [0], [1], [0, 0, 1, 1], [], []>} : vector<8x128xf32>, vector<128x384xf32>, vector<8x384xf32> -> vector<8x384xf32>
    %362 = vector.extract_strided_slice %359 {offsets = [0, 0], sizes = [8, 128], strides = [1, 1]} : vector<8x384xf32> to vector<8x128xf32>
    %363 = vector.extract_strided_slice %361 {offsets = [0, 0], sizes = [8, 128], strides = [1, 1]} : vector<8x384xf32> to vector<8x128xf32>
    %364 = arith.addf %362, %363 : vector<8x128xf32>
    %365 = arith.negf %364 : vector<8x128xf32>
    %366 = math.exp %365 : vector<8x128xf32>
    %cst_334 = arith.constant 1.000000e+00 : f32
    %367 = vector.broadcast %cst_334 : f32 to vector<8x128xf32>
    %368 = arith.addf %367, %366 : vector<8x128xf32>
    %369 = arith.divf %367, %368 : vector<8x128xf32>
    %370 = vector.extract_strided_slice %359 {offsets = [0, 128], sizes = [8, 128], strides = [1, 1]} : vector<8x384xf32> to vector<8x128xf32>
    %371 = vector.extract_strided_slice %361 {offsets = [0, 128], sizes = [8, 128], strides = [1, 1]} : vector<8x384xf32> to vector<8x128xf32>
    %372 = arith.addf %370, %371 : vector<8x128xf32>
    %373 = arith.negf %372 : vector<8x128xf32>
    %374 = math.exp %373 : vector<8x128xf32>
    %cst_335 = arith.constant 1.000000e+00 : f32
    %375 = vector.broadcast %cst_335 : f32 to vector<8x128xf32>
    %376 = arith.addf %375, %374 : vector<8x128xf32>
    %377 = arith.divf %375, %376 : vector<8x128xf32>
    %378 = vector.extract_strided_slice %359 {offsets = [0, 256], sizes = [8, 128], strides = [1, 1]} : vector<8x384xf32> to vector<8x128xf32>
    %379 = vector.extract_strided_slice %361 {offsets = [0, 256], sizes = [8, 128], strides = [1, 1]} : vector<8x384xf32> to vector<8x128xf32>
    %c0_336 = arith.constant 0 : index
    %c0_337 = arith.constant 0 : index
    %380 = vector.load %arg3[%c0_336, %c0_337] : memref<1x128xf32, #tpu.memory_space<vmem>>, vector<1x128xf32>
    %381 = vector.broadcast %380 : vector<1x128xf32> to vector<8x128xf32>
    %382 = arith.addf %379, %381 : vector<8x128xf32>
    %383 = arith.mulf %369, %382 : vector<8x128xf32>
    %384 = arith.addf %378, %383 : vector<8x128xf32>
    %385 = math.tanh %384 : vector<8x128xf32>
    %386 = arith.subf %353, %385 : vector<8x128xf32>
    %387 = arith.mulf %377, %386 : vector<8x128xf32>
    %388 = arith.addf %385, %387 : vector<8x128xf32>
    %389 = arith.index_cast %357 : i32 to index
    %c0_338 = arith.constant 0 : index
    %390 = vector.load %arg8[%389, %c0_338] : memref<64x128xf32, #tpu.memory_space<vmem>>, vector<8x128xf32>
    tpu.vector_store %arg8[%389, %c0_338], %388 {strides = array<i32>} : memref<64x128xf32, #tpu.memory_space<vmem>>, vector<8x128xf32>,
    %c2_i32 = arith.constant 2 : i32
    %c8_i32_339 = arith.constant 8 : i32
    %391 = arith.muli %c2_i32, %c8_i32_339 : i32
    %392 = tpu.assume_multiple %391, 8 : i32
    %393 = arith.index_cast %392 : i32 to index
    %c0_340 = arith.constant 0 : index
    %394 = vector.load %arg7[%393, %c0_340] : memref<64x384xf32, #tpu.memory_space<vmem>>, vector<8x384xf32>
    %c0_341 = arith.constant 0 : index
    %c0_342 = arith.constant 0 : index
    %395 = vector.load %arg2[%c0_341, %c0_342] : memref<128x384xf32, #tpu.memory_space<vmem>>, vector<128x384xf32>
    %cst_343 = arith.constant dense<0.000000e+00> : vector<8x384xf32>
    %396 = tpu.matmul %388, %395, %cst_343 {dimension_numbers = #tpu.dot_dimension_numbers<[1], [0], [0], [1], [0, 0, 1, 1], [], []>} : vector<8x128xf32>, vector<128x384xf32>, vector<8x384xf32> -> vector<8x384xf32>
    %397 = vector.extract_strided_slice %394 {offsets = [0, 0], sizes = [8, 128], strides = [1, 1]} : vector<8x384xf32> to vector<8x128xf32>
    %398 = vector.extract_strided_slice %396 {offsets = [0, 0], sizes = [8, 128], strides = [1, 1]} : vector<8x384xf32> to vector<8x128xf32>
    %399 = arith.addf %397, %398 : vector<8x128xf32>
    %400 = arith.negf %399 : vector<8x128xf32>
    %401 = math.exp %400 : vector<8x128xf32>
    %cst_344 = arith.constant 1.000000e+00 : f32
    %402 = vector.broadcast %cst_344 : f32 to vector<8x128xf32>
    %403 = arith.addf %402, %401 : vector<8x128xf32>
    %404 = arith.divf %402, %403 : vector<8x128xf32>
    %405 = vector.extract_strided_slice %394 {offsets = [0, 128], sizes = [8, 128], strides = [1, 1]} : vector<8x384xf32> to vector<8x128xf32>
    %406 = vector.extract_strided_slice %396 {offsets = [0, 128], sizes = [8, 128], strides = [1, 1]} : vector<8x384xf32> to vector<8x128xf32>
    %407 = arith.addf %405, %406 : vector<8x128xf32>
    %408 = arith.negf %407 : vector<8x128xf32>
    %409 = math.exp %408 : vector<8x128xf32>
    %cst_345 = arith.constant 1.000000e+00 : f32
    %410 = vector.broadcast %cst_345 : f32 to vector<8x128xf32>
    %411 = arith.addf %410, %409 : vector<8x128xf32>
    %412 = arith.divf %410, %411 : vector<8x128xf32>
    %413 = vector.extract_strided_slice %394 {offsets = [0, 256], sizes = [8, 128], strides = [1, 1]} : vector<8x384xf32> to vector<8x128xf32>
    %414 = vector.extract_strided_slice %396 {offsets = [0, 256], sizes = [8, 128], strides = [1, 1]} : vector<8x384xf32> to vector<8x128xf32>
    %c0_346 = arith.constant 0 : index
    %c0_347 = arith.constant 0 : index
    %415 = vector.load %arg3[%c0_346, %c0_347] : memref<1x128xf32, #tpu.memory_space<vmem>>, vector<1x128xf32>
    %416 = vector.broadcast %415 : vector<1x128xf32> to vector<8x128xf32>
    %417 = arith.addf %414, %416 : vector<8x128xf32>
    %418 = arith.mulf %404, %417 : vector<8x128xf32>
    %419 = arith.addf %413, %418 : vector<8x128xf32>
    %420 = math.tanh %419 : vector<8x128xf32>
    %421 = arith.subf %388, %420 : vector<8x128xf32>
    %422 = arith.mulf %412, %421 : vector<8x128xf32>
    %423 = arith.addf %420, %422 : vector<8x128xf32>
    %424 = arith.index_cast %392 : i32 to index
    %c0_348 = arith.constant 0 : index
    %425 = vector.load %arg8[%424, %c0_348] : memref<64x128xf32, #tpu.memory_space<vmem>>, vector<8x128xf32>
    tpu.vector_store %arg8[%424, %c0_348], %423 {strides = array<i32>} : memref<64x128xf32, #tpu.memory_space<vmem>>, vector<8x128xf32>,
    %c3_i32 = arith.constant 3 : i32
    %c8_i32_349 = arith.constant 8 : i32
    %426 = arith.muli %c3_i32, %c8_i32_349 : i32
    %427 = tpu.assume_multiple %426, 8 : i32
    %428 = arith.index_cast %427 : i32 to index
    %c0_350 = arith.constant 0 : index
    %429 = vector.load %arg7[%428, %c0_350] : memref<64x384xf32, #tpu.memory_space<vmem>>, vector<8x384xf32>
    %c0_351 = arith.constant 0 : index
    %c0_352 = arith.constant 0 : index
    %430 = vector.load %arg2[%c0_351, %c0_352] : memref<128x384xf32, #tpu.memory_space<vmem>>, vector<128x384xf32>
    %cst_353 = arith.constant dense<0.000000e+00> : vector<8x384xf32>
    %431 = tpu.matmul %423, %430, %cst_353 {dimension_numbers = #tpu.dot_dimension_numbers<[1], [0], [0], [1], [0, 0, 1, 1], [], []>} : vector<8x128xf32>, vector<128x384xf32>, vector<8x384xf32> -> vector<8x384xf32>
    %432 = vector.extract_strided_slice %429 {offsets = [0, 0], sizes = [8, 128], strides = [1, 1]} : vector<8x384xf32> to vector<8x128xf32>
    %433 = vector.extract_strided_slice %431 {offsets = [0, 0], sizes = [8, 128], strides = [1, 1]} : vector<8x384xf32> to vector<8x128xf32>
    %434 = arith.addf %432, %433 : vector<8x128xf32>
    %435 = arith.negf %434 : vector<8x128xf32>
    %436 = math.exp %435 : vector<8x128xf32>
    %cst_354 = arith.constant 1.000000e+00 : f32
    %437 = vector.broadcast %cst_354 : f32 to vector<8x128xf32>
    %438 = arith.addf %437, %436 : vector<8x128xf32>
    %439 = arith.divf %437, %438 : vector<8x128xf32>
    %440 = vector.extract_strided_slice %429 {offsets = [0, 128], sizes = [8, 128], strides = [1, 1]} : vector<8x384xf32> to vector<8x128xf32>
    %441 = vector.extract_strided_slice %431 {offsets = [0, 128], sizes = [8, 128], strides = [1, 1]} : vector<8x384xf32> to vector<8x128xf32>
    %442 = arith.addf %440, %441 : vector<8x128xf32>
    %443 = arith.negf %442 : vector<8x128xf32>
    %444 = math.exp %443 : vector<8x128xf32>
    %cst_355 = arith.constant 1.000000e+00 : f32
    %445 = vector.broadcast %cst_355 : f32 to vector<8x128xf32>
    %446 = arith.addf %445, %444 : vector<8x128xf32>
    %447 = arith.divf %445, %446 : vector<8x128xf32>
    %448 = vector.extract_strided_slice %429 {offsets = [0, 256], sizes = [8, 128], strides = [1, 1]} : vector<8x384xf32> to vector<8x128xf32>
    %449 = vector.extract_strided_slice %431 {offsets = [0, 256], sizes = [8, 128], strides = [1, 1]} : vector<8x384xf32> to vector<8x128xf32>
    %c0_356 = arith.constant 0 : index
    %c0_357 = arith.constant 0 : index
    %450 = vector.load %arg3[%c0_356, %c0_357] : memref<1x128xf32, #tpu.memory_space<vmem>>, vector<1x128xf32>
    %451 = vector.broadcast %450 : vector<1x128xf32> to vector<8x128xf32>
    %452 = arith.addf %449, %451 : vector<8x128xf32>
    %453 = arith.mulf %439, %452 : vector<8x128xf32>
    %454 = arith.addf %448, %453 : vector<8x128xf32>
    %455 = math.tanh %454 : vector<8x128xf32>
    %456 = arith.subf %423, %455 : vector<8x128xf32>
    %457 = arith.mulf %447, %456 : vector<8x128xf32>
    %458 = arith.addf %455, %457 : vector<8x128xf32>
    %459 = arith.index_cast %427 : i32 to index
    %c0_358 = arith.constant 0 : index
    %460 = vector.load %arg8[%459, %c0_358] : memref<64x128xf32, #tpu.memory_space<vmem>>, vector<8x128xf32>
    tpu.vector_store %arg8[%459, %c0_358], %458 {strides = array<i32>} : memref<64x128xf32, #tpu.memory_space<vmem>>, vector<8x128xf32>,
    %c4_i32 = arith.constant 4 : i32
    %c8_i32_359 = arith.constant 8 : i32
    %461 = arith.muli %c4_i32, %c8_i32_359 : i32
    %462 = tpu.assume_multiple %461, 8 : i32
    %463 = arith.index_cast %462 : i32 to index
    %c0_360 = arith.constant 0 : index
    %464 = vector.load %arg7[%463, %c0_360] : memref<64x384xf32, #tpu.memory_space<vmem>>, vector<8x384xf32>
    %c0_361 = arith.constant 0 : index
    %c0_362 = arith.constant 0 : index
    %465 = vector.load %arg2[%c0_361, %c0_362] : memref<128x384xf32, #tpu.memory_space<vmem>>, vector<128x384xf32>
    %cst_363 = arith.constant dense<0.000000e+00> : vector<8x384xf32>
    %466 = tpu.matmul %458, %465, %cst_363 {dimension_numbers = #tpu.dot_dimension_numbers<[1], [0], [0], [1], [0, 0, 1, 1], [], []>} : vector<8x128xf32>, vector<128x384xf32>, vector<8x384xf32> -> vector<8x384xf32>
    %467 = vector.extract_strided_slice %464 {offsets = [0, 0], sizes = [8, 128], strides = [1, 1]} : vector<8x384xf32> to vector<8x128xf32>
    %468 = vector.extract_strided_slice %466 {offsets = [0, 0], sizes = [8, 128], strides = [1, 1]} : vector<8x384xf32> to vector<8x128xf32>
    %469 = arith.addf %467, %468 : vector<8x128xf32>
    %470 = arith.negf %469 : vector<8x128xf32>
    %471 = math.exp %470 : vector<8x128xf32>
    %cst_364 = arith.constant 1.000000e+00 : f32
    %472 = vector.broadcast %cst_364 : f32 to vector<8x128xf32>
    %473 = arith.addf %472, %471 : vector<8x128xf32>
    %474 = arith.divf %472, %473 : vector<8x128xf32>
    %475 = vector.extract_strided_slice %464 {offsets = [0, 128], sizes = [8, 128], strides = [1, 1]} : vector<8x384xf32> to vector<8x128xf32>
    %476 = vector.extract_strided_slice %466 {offsets = [0, 128], sizes = [8, 128], strides = [1, 1]} : vector<8x384xf32> to vector<8x128xf32>
    %477 = arith.addf %475, %476 : vector<8x128xf32>
    %478 = arith.negf %477 : vector<8x128xf32>
    %479 = math.exp %478 : vector<8x128xf32>
    %cst_365 = arith.constant 1.000000e+00 : f32
    %480 = vector.broadcast %cst_365 : f32 to vector<8x128xf32>
    %481 = arith.addf %480, %479 : vector<8x128xf32>
    %482 = arith.divf %480, %481 : vector<8x128xf32>
    %483 = vector.extract_strided_slice %464 {offsets = [0, 256], sizes = [8, 128], strides = [1, 1]} : vector<8x384xf32> to vector<8x128xf32>
    %484 = vector.extract_strided_slice %466 {offsets = [0, 256], sizes = [8, 128], strides = [1, 1]} : vector<8x384xf32> to vector<8x128xf32>
    %c0_366 = arith.constant 0 : index
    %c0_367 = arith.constant 0 : index
    %485 = vector.load %arg3[%c0_366, %c0_367] : memref<1x128xf32, #tpu.memory_space<vmem>>, vector<1x128xf32>
    %486 = vector.broadcast %485 : vector<1x128xf32> to vector<8x128xf32>
    %487 = arith.addf %484, %486 : vector<8x128xf32>
    %488 = arith.mulf %474, %487 : vector<8x128xf32>
    %489 = arith.addf %483, %488 : vector<8x128xf32>
    %490 = math.tanh %489 : vector<8x128xf32>
    %491 = arith.subf %458, %490 : vector<8x128xf32>
    %492 = arith.mulf %482, %491 : vector<8x128xf32>
    %493 = arith.addf %490, %492 : vector<8x128xf32>
    %494 = arith.index_cast %462 : i32 to index
    %c0_368 = arith.constant 0 : index
    %495 = vector.load %arg8[%494, %c0_368] : memref<64x128xf32, #tpu.memory_space<vmem>>, vector<8x128xf32>
    tpu.vector_store %arg8[%494, %c0_368], %493 {strides = array<i32>} : memref<64x128xf32, #tpu.memory_space<vmem>>, vector<8x128xf32>,
    %c5_i32 = arith.constant 5 : i32
    %c8_i32_369 = arith.constant 8 : i32
    %496 = arith.muli %c5_i32, %c8_i32_369 : i32
    %497 = tpu.assume_multiple %496, 8 : i32
    %498 = arith.index_cast %497 : i32 to index
    %c0_370 = arith.constant 0 : index
    %499 = vector.load %arg7[%498, %c0_370] : memref<64x384xf32, #tpu.memory_space<vmem>>, vector<8x384xf32>
    %c0_371 = arith.constant 0 : index
    %c0_372 = arith.constant 0 : index
    %500 = vector.load %arg2[%c0_371, %c0_372] : memref<128x384xf32, #tpu.memory_space<vmem>>, vector<128x384xf32>
    %cst_373 = arith.constant dense<0.000000e+00> : vector<8x384xf32>
    %501 = tpu.matmul %493, %500, %cst_373 {dimension_numbers = #tpu.dot_dimension_numbers<[1], [0], [0], [1], [0, 0, 1, 1], [], []>} : vector<8x128xf32>, vector<128x384xf32>, vector<8x384xf32> -> vector<8x384xf32>
    %502 = vector.extract_strided_slice %499 {offsets = [0, 0], sizes = [8, 128], strides = [1, 1]} : vector<8x384xf32> to vector<8x128xf32>
    %503 = vector.extract_strided_slice %501 {offsets = [0, 0], sizes = [8, 128], strides = [1, 1]} : vector<8x384xf32> to vector<8x128xf32>
    %504 = arith.addf %502, %503 : vector<8x128xf32>
    %505 = arith.negf %504 : vector<8x128xf32>
    %506 = math.exp %505 : vector<8x128xf32>
    %cst_374 = arith.constant 1.000000e+00 : f32
    %507 = vector.broadcast %cst_374 : f32 to vector<8x128xf32>
    %508 = arith.addf %507, %506 : vector<8x128xf32>
    %509 = arith.divf %507, %508 : vector<8x128xf32>
    %510 = vector.extract_strided_slice %499 {offsets = [0, 128], sizes = [8, 128], strides = [1, 1]} : vector<8x384xf32> to vector<8x128xf32>
    %511 = vector.extract_strided_slice %501 {offsets = [0, 128], sizes = [8, 128], strides = [1, 1]} : vector<8x384xf32> to vector<8x128xf32>
    %512 = arith.addf %510, %511 : vector<8x128xf32>
    %513 = arith.negf %512 : vector<8x128xf32>
    %514 = math.exp %513 : vector<8x128xf32>
    %cst_375 = arith.constant 1.000000e+00 : f32
    %515 = vector.broadcast %cst_375 : f32 to vector<8x128xf32>
    %516 = arith.addf %515, %514 : vector<8x128xf32>
    %517 = arith.divf %515, %516 : vector<8x128xf32>
    %518 = vector.extract_strided_slice %499 {offsets = [0, 256], sizes = [8, 128], strides = [1, 1]} : vector<8x384xf32> to vector<8x128xf32>
    %519 = vector.extract_strided_slice %501 {offsets = [0, 256], sizes = [8, 128], strides = [1, 1]} : vector<8x384xf32> to vector<8x128xf32>
    %c0_376 = arith.constant 0 : index
    %c0_377 = arith.constant 0 : index
    %520 = vector.load %arg3[%c0_376, %c0_377] : memref<1x128xf32, #tpu.memory_space<vmem>>, vector<1x128xf32>
    %521 = vector.broadcast %520 : vector<1x128xf32> to vector<8x128xf32>
    %522 = arith.addf %519, %521 : vector<8x128xf32>
    %523 = arith.mulf %509, %522 : vector<8x128xf32>
    %524 = arith.addf %518, %523 : vector<8x128xf32>
    %525 = math.tanh %524 : vector<8x128xf32>
    %526 = arith.subf %493, %525 : vector<8x128xf32>
    %527 = arith.mulf %517, %526 : vector<8x128xf32>
    %528 = arith.addf %525, %527 : vector<8x128xf32>
    %529 = arith.index_cast %497 : i32 to index
    %c0_378 = arith.constant 0 : index
    %530 = vector.load %arg8[%529, %c0_378] : memref<64x128xf32, #tpu.memory_space<vmem>>, vector<8x128xf32>
    tpu.vector_store %arg8[%529, %c0_378], %528 {strides = array<i32>} : memref<64x128xf32, #tpu.memory_space<vmem>>, vector<8x128xf32>,
    %c6_i32 = arith.constant 6 : i32
    %c8_i32_379 = arith.constant 8 : i32
    %531 = arith.muli %c6_i32, %c8_i32_379 : i32
    %532 = tpu.assume_multiple %531, 8 : i32
    %533 = arith.index_cast %532 : i32 to index
    %c0_380 = arith.constant 0 : index
    %534 = vector.load %arg7[%533, %c0_380] : memref<64x384xf32, #tpu.memory_space<vmem>>, vector<8x384xf32>
    %c0_381 = arith.constant 0 : index
    %c0_382 = arith.constant 0 : index
    %535 = vector.load %arg2[%c0_381, %c0_382] : memref<128x384xf32, #tpu.memory_space<vmem>>, vector<128x384xf32>
    %cst_383 = arith.constant dense<0.000000e+00> : vector<8x384xf32>
    %536 = tpu.matmul %528, %535, %cst_383 {dimension_numbers = #tpu.dot_dimension_numbers<[1], [0], [0], [1], [0, 0, 1, 1], [], []>} : vector<8x128xf32>, vector<128x384xf32>, vector<8x384xf32> -> vector<8x384xf32>
    %537 = vector.extract_strided_slice %534 {offsets = [0, 0], sizes = [8, 128], strides = [1, 1]} : vector<8x384xf32> to vector<8x128xf32>
    %538 = vector.extract_strided_slice %536 {offsets = [0, 0], sizes = [8, 128], strides = [1, 1]} : vector<8x384xf32> to vector<8x128xf32>
    %539 = arith.addf %537, %538 : vector<8x128xf32>
    %540 = arith.negf %539 : vector<8x128xf32>
    %541 = math.exp %540 : vector<8x128xf32>
    %cst_384 = arith.constant 1.000000e+00 : f32
    %542 = vector.broadcast %cst_384 : f32 to vector<8x128xf32>
    %543 = arith.addf %542, %541 : vector<8x128xf32>
    %544 = arith.divf %542, %543 : vector<8x128xf32>
    %545 = vector.extract_strided_slice %534 {offsets = [0, 128], sizes = [8, 128], strides = [1, 1]} : vector<8x384xf32> to vector<8x128xf32>
    %546 = vector.extract_strided_slice %536 {offsets = [0, 128], sizes = [8, 128], strides = [1, 1]} : vector<8x384xf32> to vector<8x128xf32>
    %547 = arith.addf %545, %546 : vector<8x128xf32>
    %548 = arith.negf %547 : vector<8x128xf32>
    %549 = math.exp %548 : vector<8x128xf32>
    %cst_385 = arith.constant 1.000000e+00 : f32
    %550 = vector.broadcast %cst_385 : f32 to vector<8x128xf32>
    %551 = arith.addf %550, %549 : vector<8x128xf32>
    %552 = arith.divf %550, %551 : vector<8x128xf32>
    %553 = vector.extract_strided_slice %534 {offsets = [0, 256], sizes = [8, 128], strides = [1, 1]} : vector<8x384xf32> to vector<8x128xf32>
    %554 = vector.extract_strided_slice %536 {offsets = [0, 256], sizes = [8, 128], strides = [1, 1]} : vector<8x384xf32> to vector<8x128xf32>
    %c0_386 = arith.constant 0 : index
    %c0_387 = arith.constant 0 : index
    %555 = vector.load %arg3[%c0_386, %c0_387] : memref<1x128xf32, #tpu.memory_space<vmem>>, vector<1x128xf32>
    %556 = vector.broadcast %555 : vector<1x128xf32> to vector<8x128xf32>
    %557 = arith.addf %554, %556 : vector<8x128xf32>
    %558 = arith.mulf %544, %557 : vector<8x128xf32>
    %559 = arith.addf %553, %558 : vector<8x128xf32>
    %560 = math.tanh %559 : vector<8x128xf32>
    %561 = arith.subf %528, %560 : vector<8x128xf32>
    %562 = arith.mulf %552, %561 : vector<8x128xf32>
    %563 = arith.addf %560, %562 : vector<8x128xf32>
    %564 = arith.index_cast %532 : i32 to index
    %c0_388 = arith.constant 0 : index
    %565 = vector.load %arg8[%564, %c0_388] : memref<64x128xf32, #tpu.memory_space<vmem>>, vector<8x128xf32>
    tpu.vector_store %arg8[%564, %c0_388], %563 {strides = array<i32>} : memref<64x128xf32, #tpu.memory_space<vmem>>, vector<8x128xf32>,
    %c7_i32 = arith.constant 7 : i32
    %c8_i32_389 = arith.constant 8 : i32
    %566 = arith.muli %c7_i32, %c8_i32_389 : i32
    %567 = tpu.assume_multiple %566, 8 : i32
    %568 = arith.index_cast %567 : i32 to index
    %c0_390 = arith.constant 0 : index
    %569 = vector.load %arg7[%568, %c0_390] : memref<64x384xf32, #tpu.memory_space<vmem>>, vector<8x384xf32>
    %c0_391 = arith.constant 0 : index
    %c0_392 = arith.constant 0 : index
    %570 = vector.load %arg2[%c0_391, %c0_392] : memref<128x384xf32, #tpu.memory_space<vmem>>, vector<128x384xf32>
    %cst_393 = arith.constant dense<0.000000e+00> : vector<8x384xf32>
    %571 = tpu.matmul %563, %570, %cst_393 {dimension_numbers = #tpu.dot_dimension_numbers<[1], [0], [0], [1], [0, 0, 1, 1], [], []>} : vector<8x128xf32>, vector<128x384xf32>, vector<8x384xf32> -> vector<8x384xf32>
    %572 = vector.extract_strided_slice %569 {offsets = [0, 0], sizes = [8, 128], strides = [1, 1]} : vector<8x384xf32> to vector<8x128xf32>
    %573 = vector.extract_strided_slice %571 {offsets = [0, 0], sizes = [8, 128], strides = [1, 1]} : vector<8x384xf32> to vector<8x128xf32>
    %574 = arith.addf %572, %573 : vector<8x128xf32>
    %575 = arith.negf %574 : vector<8x128xf32>
    %576 = math.exp %575 : vector<8x128xf32>
    %cst_394 = arith.constant 1.000000e+00 : f32
    %577 = vector.broadcast %cst_394 : f32 to vector<8x128xf32>
    %578 = arith.addf %577, %576 : vector<8x128xf32>
    %579 = arith.divf %577, %578 : vector<8x128xf32>
    %580 = vector.extract_strided_slice %569 {offsets = [0, 128], sizes = [8, 128], strides = [1, 1]} : vector<8x384xf32> to vector<8x128xf32>
    %581 = vector.extract_strided_slice %571 {offsets = [0, 128], sizes = [8, 128], strides = [1, 1]} : vector<8x384xf32> to vector<8x128xf32>
    %582 = arith.addf %580, %581 : vector<8x128xf32>
    %583 = arith.negf %582 : vector<8x128xf32>
    %584 = math.exp %583 : vector<8x128xf32>
    %cst_395 = arith.constant 1.000000e+00 : f32
    %585 = vector.broadcast %cst_395 : f32 to vector<8x128xf32>
    %586 = arith.addf %585, %584 : vector<8x128xf32>
    %587 = arith.divf %585, %586 : vector<8x128xf32>
    %588 = vector.extract_strided_slice %569 {offsets = [0, 256], sizes = [8, 128], strides = [1, 1]} : vector<8x384xf32> to vector<8x128xf32>
    %589 = vector.extract_strided_slice %571 {offsets = [0, 256], sizes = [8, 128], strides = [1, 1]} : vector<8x384xf32> to vector<8x128xf32>
    %c0_396 = arith.constant 0 : index
    %c0_397 = arith.constant 0 : index
    %590 = vector.load %arg3[%c0_396, %c0_397] : memref<1x128xf32, #tpu.memory_space<vmem>>, vector<1x128xf32>
    %591 = vector.broadcast %590 : vector<1x128xf32> to vector<8x128xf32>
    %592 = arith.addf %589, %591 : vector<8x128xf32>
    %593 = arith.mulf %579, %592 : vector<8x128xf32>
    %594 = arith.addf %588, %593 : vector<8x128xf32>
    %595 = math.tanh %594 : vector<8x128xf32>
    %596 = arith.subf %563, %595 : vector<8x128xf32>
    %597 = arith.mulf %587, %596 : vector<8x128xf32>
    %598 = arith.addf %595, %597 : vector<8x128xf32>
    %599 = arith.index_cast %567 : i32 to index
    %c0_398 = arith.constant 0 : index
    %600 = vector.load %arg8[%599, %c0_398] : memref<64x128xf32, #tpu.memory_space<vmem>>, vector<8x128xf32>
    tpu.vector_store %arg8[%599, %c0_398], %598 {strides = array<i32>} : memref<64x128xf32, #tpu.memory_space<vmem>>, vector<8x128xf32>,
    %c8_i32_399 = arith.constant 8 : i32
    %c0_400 = arith.constant 0 : index
    %c0_401 = arith.constant 0 : index
    %601 = vector.load %arg8[%c0_400, %c0_401] : memref<64x128xf32, #tpu.memory_space<vmem>>, vector<64x128xf32>
    %c0_402 = arith.constant 0 : index
    %c0_403 = arith.constant 0 : index
    %602 = vector.load %arg4[%c0_402, %c0_403] : memref<128x128xf32, #tpu.memory_space<vmem>>, vector<128x128xf32>
    %cst_404 = arith.constant dense<0.000000e+00> : vector<64x128xf32>
    %603 = tpu.matmul %601, %602, %cst_404 {dimension_numbers = #tpu.dot_dimension_numbers<[1], [0], [0], [1], [0, 0, 1, 1], [], []>} : vector<64x128xf32>, vector<128x128xf32>, vector<64x128xf32> -> vector<64x128xf32>
    %c0_405 = arith.constant 0 : index
    %c0_406 = arith.constant 0 : index
    %604 = vector.load %arg5[%c0_405, %c0_406] : memref<1x128xf32, #tpu.memory_space<vmem>>, vector<1x128xf32>
    %605 = vector.broadcast %604 : vector<1x128xf32> to vector<64x128xf32>
    %606 = arith.addf %603, %605 : vector<64x128xf32>
    %c0_407 = arith.constant 0 : index
    %c0_408 = arith.constant 0 : index
    %607 = vector.load %arg6[%c0_407, %c0_408] : memref<64x128xf32, #tpu.memory_space<vmem>>, vector<64x128xf32>
    tpu.vector_store %arg6[%c0_407, %c0_408], %606 {strides = array<i32>} : memref<64x128xf32, #tpu.memory_space<vmem>>, vector<64x128xf32>,
    return
  }
}

</mosaic_0001>

<llo_original>
// kernel: surname_generation_forward.1
$region0: #{surname_generation_forward.1}
  #allocation0 [shape = 'u32[]', space=smem, size = 0x4, offset = 0x4, fixed_abs, tag = 'smem constant byte address 0x4 - core index']
  #allocation1 [shape = 'u32[72,128]{1,0:T(1,128)}', space=vmem, size = 0x9000, scoped, tag = 'internal scratch']
  #allocation2 [shape = 'f32[64,384]{1,0:T(8,128)}', space=vmem, size = 0x18000, scoped, tag = 'scratch operand']
  #allocation3 [shape = 'f32[64,128]{1,0:T(8,128)}', space=vmem, size = 0x8000, scoped, tag = 'scratch operand']
  %s0 = inlined_call_operand.vmem [shape: s32[8,8], index: 0, kind: input, shape index: {}]
  %s1 = inlined_call_operand.hbm [shape: f32[32,1,384], index: 1, kind: input, shape index: {}]
  %s2 = inlined_call_operand.hbm [shape: f32[128,384], index: 2, kind: input, shape index: {}]
  %s3 = inlined_call_operand.vmem [shape: f32[1,128], index: 3, kind: input, shape index: {}]
  %s4 = inlined_call_operand.hbm [shape: f32[128,128], index: 4, kind: input, shape index: {}]
  %s5 = inlined_call_operand.vmem [shape: f32[1,128], index: 5, kind: input, shape index: {}]
  %s6 = inlined_call_operand.vmem [shape: f32[64,128], index: 6, kind: output, shape index: {}]
  %s7 = sld [smem:[#allocation0]]
  $region50: #{surname_generation_forward.1} parent=0
    _
  %s9 = ssub.s32 1, %s7
  %s10 = scalar_select 0, %s9, %s7
  $region1: #{surname_generation_forward.1} parent=0
    #allocation4 [shape = 'u8[4096]{0}', space=smem, size = 0x1000, scoped, tag = 'input window, operand 0, single buffered']
    #allocation5 [shape = 's32[1]{0}', space=sflag, size = 0x4, scoped, tag = 'scoped memory for surname_generation_forward.1']
    #allocation6 [shape = 's32[1]{0}', space=sflag, size = 0x4, scoped, tag = 'scoped memory for surname_generation_forward.1']
    #allocation7 [shape = 'u8[49152]{0}', space=vmem, size = 0xc000, scoped, tag = 'input window, operand 1, single buffered']
    #allocation8 [shape = 'u8[196608]{0}', space=vmem, size = 0x30000, scoped, tag = 'input window, operand 2, single buffered']
    #allocation9 [shape = 's32[1]{0}', space=sflag, size = 0x4, scoped, tag = 'scoped memory for surname_generation_forward.1']
    #allocation10 [shape = 'u8[65536]{0}', space=vmem, size = 0x10000, scoped, tag = 'input window, operand 4, single buffered']
    %11 = vsyncpa [#allocation6], 0
    %12 = vsyncpa [#allocation5], 0
    %13 = vsyncpa [#allocation9], 0
    // Predicated region
    $region2: #{surname_generation_forward.1} parent=1 // pred_check
      _
    $region3: #{surname_generation_forward.1} parent=1 // pred_check_branch
      %15 = sbr.rel (0) target = $region5
    $region4: #{surname_generation_forward.1} parent=1 // pred_region
      %17 = vsyncadd [#allocation6], 0
      %s19 = sshll.u32 %s0, 4
      %s20 = int_to_ptr.vmem [resolvable:$true] %s19
      %22 = dma.vmem_to_smem %s20, 128, [#allocation4], [#allocation6]
    $region5: #{surname_generation_forward.1} parent=1 // pred_fallthru
      _
    // Predicated region
    $region6: #{surname_generation_forward.1} parent=1 // pred_check
      _
    $region7: #{surname_generation_forward.1} parent=1 // pred_check_branch
      %24 = sbr.rel (0) target = $region9
    $region8: #{surname_generation_forward.1} parent=1 // pred_region
      %26 = vsyncadd [#allocation5], 0
      %s27 = sshll.u32 %s1, 4
      %s28 = int_to_ptr.hbm [resolvable:$true] %s27
      %s29 = sshll.u32 [#allocation7], 4
      %s30 = int_to_ptr.vmem [resolvable:$true] %s29
      %35 = dma.hbm_to_vmem [thread:$0]  %s28, 1536, %s30, [#allocation5], 48, 48, 3
    $region9: #{surname_generation_forward.1} parent=1 // pred_fallthru
      _
    // Predicated region
    $region10: #{surname_generation_forward.1} parent=1 // pred_check
      _
    $region11: #{surname_generation_forward.1} parent=1 // pred_check_branch
      %37 = sbr.rel (0) target = $region13
    $region12: #{surname_generation_forward.1} parent=1 // pred_region
      %39 = vsyncadd [#allocation9], 0
      %s40 = sshll.u32 %s2, 4
      %s41 = int_to_ptr.hbm [resolvable:$true] %s40
      %s42 = sshll.u32 [#allocation8], 4
      %s43 = int_to_ptr.vmem [resolvable:$true] %s42
      %48 = dma.hbm_to_vmem [thread:$0]  %s41, 6144, %s43, [#allocation9], 384, 384, 24
    $region13: #{surname_generation_forward.1} parent=1 // pred_fallthru
      _
    // Predicated region
    $region14: #{surname_generation_forward.1} parent=1 // pred_check
      _
    $region15: #{surname_generation_forward.1} parent=1 // pred_check_branch
      %50 = sbr.rel (0) target = $region17
    $region16: #{surname_generation_forward.1} parent=1 // pred_region
      _
    $region17: #{surname_generation_forward.1} parent=1 // pred_fallthru
      _
    // Predicated region
    $region18: #{surname_generation_forward.1} parent=1 // pred_check
      _
    $region19: #{surname_generation_forward.1} parent=1 // pred_check_branch
      %52 = sbr.rel (0) target = $region21
    $region20: #{surname_generation_forward.1} parent=1 // pred_region
      %54 = vsyncadd [#allocation9], 0
      %s55 = sshll.u32 %s4, 4
      %s56 = int_to_ptr.hbm [resolvable:$true] %s55
      %s57 = sshll.u32 [#allocation10], 4
      %s58 = int_to_ptr.vmem [resolvable:$true] %s57
      %63 = dma.hbm_to_vmem [thread:$0]  %s56, 2048, %s58, [#allocation9], 128, 128, 8
    $region21: #{surname_generation_forward.1} parent=1 // pred_fallthru
      _
    // Predicated region
    $region22: #{surname_generation_forward.1} parent=1 // pred_check
      _
    $region23: #{surname_generation_forward.1} parent=1 // pred_check_branch
      %65 = sbr.rel (0) target = $region25
    $region24: #{surname_generation_forward.1} parent=1 // pred_region
      _
    $region25: #{surname_generation_forward.1} parent=1 // pred_fallthru
      _
    // Predicated region
    $region26: #{surname_generation_forward.1} parent=1 // pred_check
      _
    $region27: #{surname_generation_forward.1} parent=1 // pred_check_branch
      %67 = sbr.rel (0) target = $region29
    $region28: #{surname_generation_forward.1} parent=1 // pred_region
      %69 = dma.done [#allocation6], 128
    $region29: #{surname_generation_forward.1} parent=1 // pred_fallthru
      _
    // Predicated region
    $region30: #{surname_generation_forward.1} parent=1 // pred_check
      _
    $region31: #{surname_generation_forward.1} parent=1 // pred_check_branch
      %71 = sbr.rel (0) target = $region33
    $region32: #{surname_generation_forward.1} parent=1 // pred_region
      %73 = dma.done [#allocation5], 1536
    $region33: #{surname_generation_forward.1} parent=1 // pred_fallthru
      _
    // Predicated region
    $region34: #{surname_generation_forward.1} parent=1 // pred_check
      _
    $region35: #{surname_generation_forward.1} parent=1 // pred_check_branch
      %75 = sbr.rel (0) target = $region37
    $region36: #{surname_generation_forward.1} parent=1 // pred_region
      %77 = dma.done [#allocation9], 6144
    $region37: #{surname_generation_forward.1} parent=1 // pred_fallthru
      _
    // Predicated region
    $region38: #{surname_generation_forward.1} parent=1 // pred_check
      _
    $region39: #{surname_generation_forward.1} parent=1 // pred_check_branch
      %79 = sbr.rel (0) target = $region41
    $region40: #{surname_generation_forward.1} parent=1 // pred_region
      %81 = dma.done [#allocation9], 2048
    $region41: #{surname_generation_forward.1} parent=1 // pred_fallthru
      _
    %82 = sfence
    %s83 = sld [smem:[#allocation4]]
    %s84 = smul.u32 %s83, 3
    %s85 = scalar_lea.vmem [#allocation7], %s84
    %v86 = vld [vmem:[%s85] sm:$0x7]
    %v87 = vlaneseq
    %vm88 = vcmp.ge.s32.totalorder %v87, 0
    %vm89 = vcmp.lt.s32.totalorder %v87, 384
    %vm90 = vmand %vm88, %vm89
    %91 = vst.msk [vmem:[#allocation2] ss:$8 sm:$0x7] %vm90, %v86
    %92 = vst.msk [vmem:[#allocation2] ss:$8 sm:$0x0] %vm90, %v86
    %s93 = sld [smem:[#allocation4 + $0x80]]
    %s94 = smul.u32 %s93, 3
    %s95 = scalar_lea.vmem [#allocation7], %s94
    %v96 = vld [vmem:[%s95] sm:$0x7]
    %s97 = scalar_lea.vmem [#allocation2], 1
    %98 = vst.msk [vmem:[%s97] ss:$8 sm:$0x7] %vm90, %v96
    %99 = vst.msk [vmem:[%s97] ss:$8 sm:$0x0] %vm90, %v96
    %s100 = sld [smem:[#allocation4 + $0x100]]
    %s101 = smul.u32 %s100, 3
    %s102 = scalar_lea.vmem [#allocation7], %s101
    %v103 = vld [vmem:[%s102] sm:$0x7]
    %s104 = scalar_lea.vmem [#allocation2], 2
    %105 = vst.msk [vmem:[%s104] ss:$8 sm:$0x7] %vm90, %v103
    %106 = vst.msk [vmem:[%s104] ss:$8 sm:$0x0] %vm90, %v103
    %s107 = sld [smem:[#allocation4 + $0x180]]
    %s108 = smul.u32 %s107, 3
    %s109 = scalar_lea.vmem [#allocation7], %s108
    %v110 = vld [vmem:[%s109] sm:$0x7]
    %s111 = scalar_lea.vmem [#allocation2], 3
    %112 = vst.msk [vmem:[%s111] ss:$8 sm:$0x7] %vm90, %v110
    %113 = vst.msk [vmem:[%s111] ss:$8 sm:$0x0] %vm90, %v110
    %s114 = sld [smem:[#allocation4 + $0x200]]
    %s115 = smul.u32 %s114, 3
    %s116 = scalar_lea.vmem [#allocation7], %s115
    %v117 = vld [vmem:[%s116] sm:$0x7]
    %s118 = scalar_lea.vmem [#allocation2], 4
    %119 = vst.msk [vmem:[%s118] ss:$8 sm:$0x7] %vm90, %v117
    %120 = vst.msk [vmem:[%s118] ss:$8 sm:$0x0] %vm90, %v117
    %s121 = sld [smem:[#allocation4 + $0x280]]
    %s122 = smul.u32 %s121, 3
    %s123 = scalar_lea.vmem [#allocation7], %s122
    %v124 = vld [vmem:[%s123] sm:$0x7]
    %s125 = scalar_lea.vmem [#allocation2], 5
    %126 = vst.msk [vmem:[%s125] ss:$8 sm:$0x7] %vm90, %v124
    %127 = vst.msk [vmem:[%s125] ss:$8 sm:$0x0] %vm90, %v124
    %s128 = sld [smem:[#allocation4 + $0x300]]
    %s129 = smul.u32 %s128, 3
    %s130 = scalar_lea.vmem [#allocation7], %s129
    %v131 = vld [vmem:[%s130] sm:$0x7]
    %s132 = scalar_lea.vmem [#allocation2], 6
    %133 = vst.msk [vmem:[%s132] ss:$8 sm:$0x7] %vm90, %v131
    %134 = vst.msk [vmem:[%s132] ss:$8 sm:$0x0] %vm90, %v131
    %s135 = sld [smem:[#allocation4 + $0x380]]
    %s136 = smul.u32 %s135, 3
    %s137 = scalar_lea.vmem [#allocation7], %s136
    %v138 = vld [vmem:[%s137] sm:$0x7]
    %s139 = scalar_lea.vmem [#allocation2], 7
    %140 = vst.msk [vmem:[%s139] ss:$8 sm:$0x7] %vm90, %v138
    %141 = vst.msk [vmem:[%s139] ss:$8 sm:$0x0] %vm90, %v138
    %s142 = sld [smem:[#allocation4 + $0x1]]
    %s143 = smul.u32 %s142, 3
    %s144 = scalar_lea.vmem [#allocation7], %s143
    %v145 = vld [vmem:[%s144] sm:$0x7]
    %s146 = scalar_lea.vmem [#allocation2], 24
    %147 = vst.msk [vmem:[%s146] ss:$8 sm:$0x7] %vm90, %v145
    %148 = vst.msk [vmem:[%s146] ss:$8 sm:$0x0] %vm90, %v145
    %s149 = sld [smem:[#allocation4 + $0x81]]
    %s150 = smul.u32 %s149, 3
    %s151 = scalar_lea.vmem [#allocation7], %s150
    %v152 = vld [vmem:[%s151] sm:$0x7]
    %s153 = scalar_lea.vmem [#allocation2], 25
    %154 = vst.msk [vmem:[%s153] ss:$8 sm:$0x7] %vm90, %v152
    %155 = vst.msk [vmem:[%s153] ss:$8 sm:$0x0] %vm90, %v152
    %s156 = sld [smem:[#allocation4 + $0x101]]
    %s157 = smul.u32 %s156, 3
    %s158 = scalar_lea.vmem [#allocation7], %s157
    %v159 = vld [vmem:[%s158] sm:$0x7]
    %s160 = scalar_lea.vmem [#allocation2], 26
    %161 = vst.msk [vmem:[%s160] ss:$8 sm:$0x7] %vm90, %v159
    %162 = vst.msk [vmem:[%s160] ss:$8 sm:$0x0] %vm90, %v159
    %s163 = sld [smem:[#allocation4 + $0x181]]
    %s164 = smul.u32 %s163, 3
    %s165 = scalar_lea.vmem [#allocation7], %s164
    %v166 = vld [vmem:[%s165] sm:$0x7]
    %s167 = scalar_lea.vmem [#allocation2], 27
    %168 = vst.msk [vmem:[%s167] ss:$8 sm:$0x7] %vm90, %v166
    %169 = vst.msk [vmem:[%s167] ss:$8 sm:$0x0] %vm90, %v166
    %s170 = sld [smem:[#allocation4 + $0x201]]
    %s171 = smul.u32 %s170, 3
    %s172 = scalar_lea.vmem [#allocation7], %s171
    %v173 = vld [vmem:[%s172] sm:$0x7]
    %s174 = scalar_lea.vmem [#allocation2], 28
    %175 = vst.msk [vmem:[%s174] ss:$8 sm:$0x7] %vm90, %v173
    %176 = vst.msk [vmem:[%s174] ss:$8 sm:$0x0] %vm90, %v173
    %s177 = sld [smem:[#allocation4 + $0x281]]
    %s178 = smul.u32 %s177, 3
    %s179 = scalar_lea.vmem [#allocation7], %s178
    %v180 = vld [vmem:[%s179] sm:$0x7]
    %s181 = scalar_lea.vmem [#allocation2], 29
    %182 = vst.msk [vmem:[%s181] ss:$8 sm:$0x7] %vm90, %v180
    %183 = vst.msk [vmem:[%s181] ss:$8 sm:$0x0] %vm90, %v180
    %s184 = sld [smem:[#allocation4 + $0x301]]
    %s185 = smul.u32 %s184, 3
    %s186 = scalar_lea.vmem [#allocation7], %s185
    %v187 = vld [vmem:[%s186] sm:$0x7]
    %s188 = scalar_lea.vmem [#allocation2], 30
    %189 = vst.msk [vmem:[%s188] ss:$8 sm:$0x7] %vm90, %v187
    %190 = vst.msk [vmem:[%s188] ss:$8 sm:$0x0] %vm90, %v187
    %s191 = sld [smem:[#allocation4 + $0x381]]
    %s192 = smul.u32 %s191, 3
    %s193 = scalar_lea.vmem [#allocation7], %s192
    %v194 = vld [vmem:[%s193] sm:$0x7]
    %s195 = scalar_lea.vmem [#allocation2], 31
    %196 = vst.msk [vmem:[%s195] ss:$8 sm:$0x7] %vm90, %v194
    %197 = vst.msk [vmem:[%s195] ss:$8 sm:$0x0] %vm90, %v194
    %s198 = sld [smem:[#allocation4 + $0x2]]
    %s199 = smul.u32 %s198, 3
    %s200 = scalar_lea.vmem [#allocation7], %s199
    %v201 = vld [vmem:[%s200] sm:$0x7]
    %s202 = scalar_lea.vmem [#allocation2], 48
    %203 = vst.msk [vmem:[%s202] ss:$8 sm:$0x7] %vm90, %v201
    %204 = vst.msk [vmem:[%s202] ss:$8 sm:$0x0] %vm90, %v201
    %s205 = sld [smem:[#allocation4 + $0x82]]
    %s206 = smul.u32 %s205, 3
    %s207 = scalar_lea.vmem [#allocation7], %s206
    %v208 = vld [vmem:[%s207] sm:$0x7]
    %s209 = scalar_lea.vmem [#allocation2], 49
    %210 = vst.msk [vmem:[%s209] ss:$8 sm:$0x7] %vm90, %v208
    %211 = vst.msk [vmem:[%s209] ss:$8 sm:$0x0] %vm90, %v208
    %s212 = sld [smem:[#allocation4 + $0x102]]
    %s213 = smul.u32 %s212, 3
    %s214 = scalar_lea.vmem [#allocation7], %s213
    %v215 = vld [vmem:[%s214] sm:$0x7]
    %s216 = scalar_lea.vmem [#allocation2], 50
    %217 = vst.msk [vmem:[%s216] ss:$8 sm:$0x7] %vm90, %v215
    %218 = vst.msk [vmem:[%s216] ss:$8 sm:$0x0] %vm90, %v215
    %s219 = sld [smem:[#allocation4 + $0x182]]
    %s220 = smul.u32 %s219, 3
    %s221 = scalar_lea.vmem [#allocation7], %s220
    %v222 = vld [vmem:[%s221] sm:$0x7]
    %s223 = scalar_lea.vmem [#allocation2], 51
    %224 = vst.msk [vmem:[%s223] ss:$8 sm:$0x7] %vm90, %v222
    %225 = vst.msk [vmem:[%s223] ss:$8 sm:$0x0] %vm90, %v222
    %s226 = sld [smem:[#allocation4 + $0x202]]
    %s227 = smul.u32 %s226, 3
    %s228 = scalar_lea.vmem [#allocation7], %s227
    %v229 = vld [vmem:[%s228] sm:$0x7]
    %s230 = scalar_lea.vmem [#allocation2], 52
    %231 = vst.msk [vmem:[%s230] ss:$8 sm:$0x7] %vm90, %v229
    %232 = vst.msk [vmem:[%s230] ss:$8 sm:$0x0] %vm90, %v229
    %s233 = sld [smem:[#allocation4 + $0x282]]
    %s234 = smul.u32 %s233, 3
    %s235 = scalar_lea.vmem [#allocation7], %s234
    %v236 = vld [vmem:[%s235] sm:$0x7]
    %s237 = scalar_lea.vmem [#allocation2], 53
    %238 = vst.msk [vmem:[%s237] ss:$8 sm:$0x7] %vm90, %v236
    %239 = vst.msk [vmem:[%s237] ss:$8 sm:$0x0] %vm90, %v236
    %s240 = sld [smem:[#allocation4 + $0x302]]
    %s241 = smul.u32 %s240, 3
    %s242 = scalar_lea.vmem [#allocation7], %s241
    %v243 = vld [vmem:[%s242] sm:$0x7]
    %s244 = scalar_lea.vmem [#allocation2], 54
    %245 = vst.msk [vmem:[%s244] ss:$8 sm:$0x7] %vm90, %v243
    %246 = vst.msk [vmem:[%s244] ss:$8 sm:$0x0] %vm90, %v243
    %s247 = sld [smem:[#allocation4 + $0x382]]
    %s248 = smul.u32 %s247, 3
    %s249 = scalar_lea.vmem [#allocation7], %s248
    %v250 = vld [vmem:[%s249] sm:$0x7]
    %s251 = scalar_lea.vmem [#allocation2], 55
    %252 = vst.msk [vmem:[%s251] ss:$8 sm:$0x7] %vm90, %v250
    %253 = vst.msk [vmem:[%s251] ss:$8 sm:$0x0] %vm90, %v250
    %s254 = sld [smem:[#allocation4 + $0x3]]
    %s255 = smul.u32 %s254, 3
    %s256 = scalar_lea.vmem [#allocation7], %s255
    %v257 = vld [vmem:[%s256] sm:$0x7]
    %s258 = scalar_lea.vmem [#allocation2], 72
    %259 = vst.msk [vmem:[%s258] ss:$8 sm:$0x7] %vm90, %v257
    %260 = vst.msk [vmem:[%s258] ss:$8 sm:$0x0] %vm90, %v257
    %s261 = sld [smem:[#allocation4 + $0x83]]
    %s262 = smul.u32 %s261, 3
    %s263 = scalar_lea.vmem [#allocation7], %s262
    %v264 = vld [vmem:[%s263] sm:$0x7]
    %s265 = scalar_lea.vmem [#allocation2], 73
    %266 = vst.msk [vmem:[%s265] ss:$8 sm:$0x7] %vm90, %v264
    %267 = vst.msk [vmem:[%s265] ss:$8 sm:$0x0] %vm90, %v264
    %s268 = sld [smem:[#allocation4 + $0x103]]
    %s269 = smul.u32 %s268, 3
    %s270 = scalar_lea.vmem [#allocation7], %s269
    %v271 = vld [vmem:[%s270] sm:$0x7]
    %s272 = scalar_lea.vmem [#allocation2], 74
    %273 = vst.msk [vmem:[%s272] ss:$8 sm:$0x7] %vm90, %v271
    %274 = vst.msk [vmem:[%s272] ss:$8 sm:$0x0] %vm90, %v271
    %s275 = sld [smem:[#allocation4 + $0x183]]
    %s276 = smul.u32 %s275, 3
    %s277 = scalar_lea.vmem [#allocation7], %s276
    %v278 = vld [vmem:[%s277] sm:$0x7]
    %s279 = scalar_lea.vmem [#allocation2], 75
    %280 = vst.msk [vmem:[%s279] ss:$8 sm:$0x7] %vm90, %v278
    %281 = vst.msk [vmem:[%s279] ss:$8 sm:$0x0] %vm90, %v278
    %s282 = sld [smem:[#allocation4 + $0x203]]
    %s283 = smul.u32 %s282, 3
    %s284 = scalar_lea.vmem [#allocation7], %s283
    %v285 = vld [vmem:[%s284] sm:$0x7]
    %s286 = scalar_lea.vmem [#allocation2], 76
    %287 = vst.msk [vmem:[%s286] ss:$8 sm:$0x7] %vm90, %v285
    %288 = vst.msk [vmem:[%s286] ss:$8 sm:$0x0] %vm90, %v285
    %s289 = sld [smem:[#allocation4 + $0x283]]
    %s290 = smul.u32 %s289, 3
    %s291 = scalar_lea.vmem [#allocation7], %s290
    %v292 = vld [vmem:[%s291] sm:$0x7]
    %s293 = scalar_lea.vmem [#allocation2], 77
    %294 = vst.msk [vmem:[%s293] ss:$8 sm:$0x7] %vm90, %v292
    %295 = vst.msk [vmem:[%s293] ss:$8 sm:$0x0] %vm90, %v292
    %s296 = sld [smem:[#allocation4 + $0x303]]
    %s297 = smul.u32 %s296, 3
    %s298 = scalar_lea.vmem [#allocation7], %s297
    %v299 = vld [vmem:[%s298] sm:$0x7]
    %s300 = scalar_lea.vmem [#allocation2], 78
    %301 = vst.msk [vmem:[%s300] ss:$8 sm:$0x7] %vm90, %v299
    %302 = vst.msk [vmem:[%s300] ss:$8 sm:$0x0] %vm90, %v299
    %s303 = sld [smem:[#allocation4 + $0x383]]
    %s304 = smul.u32 %s303, 3
    %s305 = scalar_lea.vmem [#allocation7], %s304
    %v306 = vld [vmem:[%s305] sm:$0x7]
    %s307 = scalar_lea.vmem [#allocation2], 79
    %308 = vst.msk [vmem:[%s307] ss:$8 sm:$0x7] %vm90, %v306
    %309 = vst.msk [vmem:[%s307] ss:$8 sm:$0x0] %vm90, %v306
    %s310 = sld [smem:[#allocation4 + $0x4]]
    %s311 = smul.u32 %s310, 3
    %s312 = scalar_lea.vmem [#allocation7], %s311
    %v313 = vld [vmem:[%s312] sm:$0x7]
    %s314 = scalar_lea.vmem [#allocation2], 96
    %315 = vst.msk [vmem:[%s314] ss:$8 sm:$0x7] %vm90, %v313
    %316 = vst.msk [vmem:[%s314] ss:$8 sm:$0x0] %vm90, %v313
    %s317 = sld [smem:[#allocation4 + $0x84]]
    %s318 = smul.u32 %s317, 3
    %s319 = scalar_lea.vmem [#allocation7], %s318
    %v320 = vld [vmem:[%s319] sm:$0x7]
    %s321 = scalar_lea.vmem [#allocation2], 97
    %322 = vst.msk [vmem:[%s321] ss:$8 sm:$0x7] %vm90, %v320
    %323 = vst.msk [vmem:[%s321] ss:$8 sm:$0x0] %vm90, %v320
    %s324 = sld [smem:[#allocation4 + $0x104]]
    %s325 = smul.u32 %s324, 3
    %s326 = scalar_lea.vmem [#allocation7], %s325
    %v327 = vld [vmem:[%s326] sm:$0x7]
    %s328 = scalar_lea.vmem [#allocation2], 98
    %329 = vst.msk [vmem:[%s328] ss:$8 sm:$0x7] %vm90, %v327
    %330 = vst.msk [vmem:[%s328] ss:$8 sm:$0x0] %vm90, %v327
    %s331 = sld [smem:[#allocation4 + $0x184]]
    %s332 = smul.u32 %s331, 3
    %s333 = scalar_lea.vmem [#allocation7], %s332
    %v334 = vld [vmem:[%s333] sm:$0x7]
    %s335 = scalar_lea.vmem [#allocation2], 99
    %336 = vst.msk [vmem:[%s335] ss:$8 sm:$0x7] %vm90, %v334
    %337 = vst.msk [vmem:[%s335] ss:$8 sm:$0x0] %vm90, %v334
    %s338 = sld [smem:[#allocation4 + $0x204]]
    %s339 = smul.u32 %s338, 3
    %s340 = scalar_lea.vmem [#allocation7], %s339
    %v341 = vld [vmem:[%s340] sm:$0x7]
    %s342 = scalar_lea.vmem [#allocation2], 100
    %343 = vst.msk [vmem:[%s342] ss:$8 sm:$0x7] %vm90, %v341
    %344 = vst.msk [vmem:[%s342] ss:$8 sm:$0x0] %vm90, %v341
    %s345 = sld [smem:[#allocation4 + $0x284]]
    %s346 = smul.u32 %s345, 3
    %s347 = scalar_lea.vmem [#allocation7], %s346
    %v348 = vld [vmem:[%s347] sm:$0x7]
    %s349 = scalar_lea.vmem [#allocation2], 101
    %350 = vst.msk [vmem:[%s349] ss:$8 sm:$0x7] %vm90, %v348
    %351 = vst.msk [vmem:[%s349] ss:$8 sm:$0x0] %vm90, %v348
    %s352 = sld [smem:[#allocation4 + $0x304]]
    %s353 = smul.u32 %s352, 3
    %s354 = scalar_lea.vmem [#allocation7], %s353
    %v355 = vld [vmem:[%s354] sm:$0x7]
    %s356 = scalar_lea.vmem [#allocation2], 102
    %357 = vst.msk [vmem:[%s356] ss:$8 sm:$0x7] %vm90, %v355
    %358 = vst.msk [vmem:[%s356] ss:$8 sm:$0x0] %vm90, %v355
    %s359 = sld [smem:[#allocation4 + $0x384]]
    %s360 = smul.u32 %s359, 3
    %s361 = scalar_lea.vmem [#allocation7], %s360
    %v362 = vld [vmem:[%s361] sm:$0x7]
    %s363 = scalar_lea.vmem [#allocation2], 103
    %364 = vst.msk [vmem:[%s363] ss:$8 sm:$0x7] %vm90, %v362
    %365 = vst.msk [vmem:[%s363] ss:$8 sm:$0x0] %vm90, %v362
    %s366 = sld [smem:[#allocation4 + $0x5]]
    %s367 = smul.u32 %s366, 3
    %s368 = scalar_lea.vmem [#allocation7], %s367
    %v369 = vld [vmem:[%s368] sm:$0x7]
    %s370 = scalar_lea.vmem [#allocation2], 120
    %371 = vst.msk [vmem:[%s370] ss:$8 sm:$0x7] %vm90, %v369
    %372 = vst.msk [vmem:[%s370] ss:$8 sm:$0x0] %vm90, %v369
    %s373 = sld [smem:[#allocation4 + $0x85]]
    %s374 = smul.u32 %s373, 3
    %s375 = scalar_lea.vmem [#allocation7], %s374
    %v376 = vld [vmem:[%s375] sm:$0x7]
    %s377 = scalar_lea.vmem [#allocation2], 121
    %378 = vst.msk [vmem:[%s377] ss:$8 sm:$0x7] %vm90, %v376
    %379 = vst.msk [vmem:[%s377] ss:$8 sm:$0x0] %vm90, %v376
    %s380 = sld [smem:[#allocation4 + $0x105]]
    %s381 = smul.u32 %s380, 3
    %s382 = scalar_lea.vmem [#allocation7], %s381
    %v383 = vld [vmem:[%s382] sm:$0x7]
    %s384 = scalar_lea.vmem [#allocation2], 122
    %385 = vst.msk [vmem:[%s384] ss:$8 sm:$0x7] %vm90, %v383
    %386 = vst.msk [vmem:[%s384] ss:$8 sm:$0x0] %vm90, %v383
    %s387 = sld [smem:[#allocation4 + $0x185]]
    %s388 = smul.u32 %s387, 3
    %s389 = scalar_lea.vmem [#allocation7], %s388
    %v390 = vld [vmem:[%s389] sm:$0x7]
    %s391 = scalar_lea.vmem [#allocation2], 123
    %392 = vst.msk [vmem:[%s391] ss:$8 sm:$0x7] %vm90, %v390
    %393 = vst.msk [vmem:[%s391] ss:$8 sm:$0x0] %vm90, %v390
    %s394 = sld [smem:[#allocation4 + $0x205]]
    %s395 = smul.u32 %s394, 3
    %s396 = scalar_lea.vmem [#allocation7], %s395
    %v397 = vld [vmem:[%s396] sm:$0x7]
    %s398 = scalar_lea.vmem [#allocation2], 124
    %399 = vst.msk [vmem:[%s398] ss:$8 sm:$0x7] %vm90, %v397
    %400 = vst.msk [vmem:[%s398] ss:$8 sm:$0x0] %vm90, %v397
    %s401 = sld [smem:[#allocation4 + $0x285]]
    %s402 = smul.u32 %s401, 3
    %s403 = scalar_lea.vmem [#allocation7], %s402
    %v404 = vld [vmem:[%s403] sm:$0x7]
    %s405 = scalar_lea.vmem [#allocation2], 125
    %406 = vst.msk [vmem:[%s405] ss:$8 sm:$0x7] %vm90, %v404
    %407 = vst.msk [vmem:[%s405] ss:$8 sm:$0x0] %vm90, %v404
    %s408 = sld [smem:[#allocation4 + $0x305]]
    %s409 = smul.u32 %s408, 3
    %s410 = scalar_lea.vmem [#allocation7], %s409
    %v411 = vld [vmem:[%s410] sm:$0x7]
    %s412 = scalar_lea.vmem [#allocation2], 126
    %413 = vst.msk [vmem:[%s412] ss:$8 sm:$0x7] %vm90, %v411
    %414 = vst.msk [vmem:[%s412] ss:$8 sm:$0x0] %vm90, %v411
    %s415 = sld [smem:[#allocation4 + $0x385]]
    %s416 = smul.u32 %s415, 3
    %s417 = scalar_lea.vmem [#allocation7], %s416
    %v418 = vld [vmem:[%s417] sm:$0x7]
    %s419 = scalar_lea.vmem [#allocation2], 127
    %420 = vst.msk [vmem:[%s419] ss:$8 sm:$0x7] %vm90, %v418
    %421 = vst.msk [vmem:[%s419] ss:$8 sm:$0x0] %vm90, %v418
    %s422 = sld [smem:[#allocation4 + $0x6]]
    %s423 = smul.u32 %s422, 3
    %s424 = scalar_lea.vmem [#allocation7], %s423
    %v425 = vld [vmem:[%s424] sm:$0x7]
    %s426 = scalar_lea.vmem [#allocation2], 144
    %427 = vst.msk [vmem:[%s426] ss:$8 sm:$0x7] %vm90, %v425
    %428 = vst.msk [vmem:[%s426] ss:$8 sm:$0x0] %vm90, %v425
    %s429 = sld [smem:[#allocation4 + $0x86]]
    %s430 = smul.u32 %s429, 3
    %s431 = scalar_lea.vmem [#allocation7], %s430
    %v432 = vld [vmem:[%s431] sm:$0x7]
    %s433 = scalar_lea.vmem [#allocation2], 145
    %434 = vst.msk [vmem:[%s433] ss:$8 sm:$0x7] %vm90, %v432
    %435 = vst.msk [vmem:[%s433] ss:$8 sm:$0x0] %vm90, %v432
    %s436 = sld [smem:[#allocation4 + $0x106]]
    %s437 = smul.u32 %s436, 3
    %s438 = scalar_lea.vmem [#allocation7], %s437
    %v439 = vld [vmem:[%s438] sm:$0x7]
    %s440 = scalar_lea.vmem [#allocation2], 146
    %441 = vst.msk [vmem:[%s440] ss:$8 sm:$0x7] %vm90, %v439
    %442 = vst.msk [vmem:[%s440] ss:$8 sm:$0x0] %vm90, %v439
    %s443 = sld [smem:[#allocation4 + $0x186]]
    %s444 = smul.u32 %s443, 3
    %s445 = scalar_lea.vmem [#allocation7], %s444
    %v446 = vld [vmem:[%s445] sm:$0x7]
    %s447 = scalar_lea.vmem [#allocation2], 147
    %448 = vst.msk [vmem:[%s447] ss:$8 sm:$0x7] %vm90, %v446
    %449 = vst.msk [vmem:[%s447] ss:$8 sm:$0x0] %vm90, %v446
    %s450 = sld [smem:[#allocation4 + $0x206]]
    %s451 = smul.u32 %s450, 3
    %s452 = scalar_lea.vmem [#allocation7], %s451
    %v453 = vld [vmem:[%s452] sm:$0x7]
    %s454 = scalar_lea.vmem [#allocation2], 148
    %455 = vst.msk [vmem:[%s454] ss:$8 sm:$0x7] %vm90, %v453
    %456 = vst.msk [vmem:[%s454] ss:$8 sm:$0x0] %vm90, %v453
    %s457 = sld [smem:[#allocation4 + $0x286]]
    %s458 = smul.u32 %s457, 3
    %s459 = scalar_lea.vmem [#allocation7], %s458
    %v460 = vld [vmem:[%s459] sm:$0x7]
    %s461 = scalar_lea.vmem [#allocation2], 149
    %462 = vst.msk [vmem:[%s461] ss:$8 sm:$0x7] %vm90, %v460
    %463 = vst.msk [vmem:[%s461] ss:$8 sm:$0x0] %vm90, %v460
    %s464 = sld [smem:[#allocation4 + $0x306]]
    %s465 = smul.u32 %s464, 3
    %s466 = scalar_lea.vmem [#allocation7], %s465
    %v467 = vld [vmem:[%s466] sm:$0x7]
    %s468 = scalar_lea.vmem [#allocation2], 150
    %469 = vst.msk [vmem:[%s468] ss:$8 sm:$0x7] %vm90, %v467
    %470 = vst.msk [vmem:[%s468] ss:$8 sm:$0x0] %vm90, %v467
    %s471 = sld [smem:[#allocation4 + $0x386]]
    %s472 = smul.u32 %s471, 3
    %s473 = scalar_lea.vmem [#allocation7], %s472
    %v474 = vld [vmem:[%s473] sm:$0x7]
    %s475 = scalar_lea.vmem [#allocation2], 151
    %476 = vst.msk [vmem:[%s475] ss:$8 sm:$0x7] %vm90, %v474
    %477 = vst.msk [vmem:[%s475] ss:$8 sm:$0x0] %vm90, %v474
    %s478 = sld [smem:[#allocation4 + $0x7]]
    %s479 = smul.u32 %s478, 3
    %s480 = scalar_lea.vmem [#allocation7], %s479
    %v481 = vld [vmem:[%s480] sm:$0x7]
    %s482 = scalar_lea.vmem [#allocation2], 168
    %483 = vst.msk [vmem:[%s482] ss:$8 sm:$0x7] %vm90, %v481
    %484 = vst.msk [vmem:[%s482] ss:$8 sm:$0x0] %vm90, %v481
    %s485 = sld [smem:[#allocation4 + $0x87]]
    %s486 = smul.u32 %s485, 3
    %s487 = scalar_lea.vmem [#allocation7], %s486
    %v488 = vld [vmem:[%s487] sm:$0x7]
    %s489 = scalar_lea.vmem [#allocation2], 169
    %490 = vst.msk [vmem:[%s489] ss:$8 sm:$0x7] %vm90, %v488
    %491 = vst.msk [vmem:[%s489] ss:$8 sm:$0x0] %vm90, %v488
    %s492 = sld [smem:[#allocation4 + $0x107]]
    %s493 = smul.u32 %s492, 3
    %s494 = scalar_lea.vmem [#allocation7], %s493
    %v495 = vld [vmem:[%s494] sm:$0x7]
    %s496 = scalar_lea.vmem [#allocation2], 170
    %497 = vst.msk [vmem:[%s496] ss:$8 sm:$0x7] %vm90, %v495
    %498 = vst.msk [vmem:[%s496] ss:$8 sm:$0x0] %vm90, %v495
    %s499 = sld [smem:[#allocation4 + $0x187]]
    %s500 = smul.u32 %s499, 3
    %s501 = scalar_lea.vmem [#allocation7], %s500
    %v502 = vld [vmem:[%s501] sm:$0x7]
    %s503 = scalar_lea.vmem [#allocation2], 171
    %504 = vst.msk [vmem:[%s503] ss:$8 sm:$0x7] %vm90, %v502
    %505 = vst.msk [vmem:[%s503] ss:$8 sm:$0x0] %vm90, %v502
    %s506 = sld [smem:[#allocation4 + $0x207]]
    %s507 = smul.u32 %s506, 3
    %s508 = scalar_lea.vmem [#allocation7], %s507
    %v509 = vld [vmem:[%s508] sm:$0x7]
    %s510 = scalar_lea.vmem [#allocation2], 172
    %511 = vst.msk [vmem:[%s510] ss:$8 sm:$0x7] %vm90, %v509
    %512 = vst.msk [vmem:[%s510] ss:$8 sm:$0x0] %vm90, %v509
    %s513 = sld [smem:[#allocation4 + $0x287]]
    %s514 = smul.u32 %s513, 3
    %s515 = scalar_lea.vmem [#allocation7], %s514
    %v516 = vld [vmem:[%s515] sm:$0x7]
    %s517 = scalar_lea.vmem [#allocation2], 173
    %518 = vst.msk [vmem:[%s517] ss:$8 sm:$0x7] %vm90, %v516
    %519 = vst.msk [vmem:[%s517] ss:$8 sm:$0x0] %vm90, %v516
    %s520 = sld [smem:[#allocation4 + $0x307]]
    %s521 = smul.u32 %s520, 3
    %s522 = scalar_lea.vmem [#allocation7], %s521
    %v523 = vld [vmem:[%s522] sm:$0x7]
    %s524 = scalar_lea.vmem [#allocation2], 174
    %525 = vst.msk [vmem:[%s524] ss:$8 sm:$0x7] %vm90, %v523
    %526 = vst.msk [vmem:[%s524] ss:$8 sm:$0x0] %vm90, %v523
    %s527 = sld [smem:[#allocation4 + $0x387]]
    %s528 = smul.u32 %s527, 3
    %s529 = scalar_lea.vmem [#allocation7], %s528
    %v530 = vld [vmem:[%s529] sm:$0x7]
    %s531 = scalar_lea.vmem [#allocation2], 175
    %532 = vst.msk [vmem:[%s531] ss:$8 sm:$0x7] %vm90, %v530
    %533 = vst.msk [vmem:[%s531] ss:$8 sm:$0x0] %vm90, %v530
    %s534 = smul.u32 0, 3
    %s535 = smul.addr %s534, 8
    %s536 = scalar_lea.vmem [#allocation2], %s535
    %v537 = vld [vmem:[%s536] sm:$0xff]
    %v538 = vld [vmem:[%s536 + $0x8] sm:$0xff]
    %v539 = vld [vmem:[%s536 + $0x10] sm:$0xff]
    %v540 = vld [vmem:[#allocation8] sm:$0xff]
    %v541 = vld [vmem:[#allocation8 + $0x8] sm:$0xff]
    %v542 = vld [vmem:[#allocation8 + $0x10] sm:$0xff]
    %v543 = vld [vmem:[#allocation8 + $0x18] sm:$0xff]
    %v544 = vld [vmem:[#allocation8 + $0x20] sm:$0xff]
    %v545 = vld [vmem:[#allocation8 + $0x28] sm:$0xff]
    %v546 = vld [vmem:[#allocation8 + $0x30] sm:$0xff]
    %v547 = vld [vmem:[#allocation8 + $0x38] sm:$0xff]
    %v548 = vld [vmem:[#allocation8 + $0x40] sm:$0xff]
    %v549 = vld [vmem:[#allocation8 + $0x48] sm:$0xff]
    %v550 = vld [vmem:[#allocation8 + $0x50] sm:$0xff]
    %v551 = vld [vmem:[#allocation8 + $0x58] sm:$0xff]
    %v552 = vld [vmem:[#allocation8 + $0x60] sm:$0xff]
    %v553 = vld [vmem:[#allocation8 + $0x68] sm:$0xff]
    %v554 = vld [vmem:[#allocation8 + $0x70] sm:$0xff]
    %v555 = vld [vmem:[#allocation8 + $0x78] sm:$0xff]
    %v556 = vld [vmem:[#allocation8 + $0x80] sm:$0xff]
    %v557 = vld [vmem:[#allocation8 + $0x88] sm:$0xff]
    %v558 = vld [vmem:[#allocation8 + $0x90] sm:$0xff]
    %v559 = vld [vmem:[#allocation8 + $0x98] sm:$0xff]
    %v560 = vld [vmem:[#allocation8 + $0xa0] sm:$0xff]
    %v561 = vld [vmem:[#allocation8 + $0xa8] sm:$0xff]
    %v562 = vld [vmem:[#allocation8 + $0xb0] sm:$0xff]
    %v563 = vld [vmem:[#allocation8 + $0xb8] sm:$0xff]
    %v564 = vld [vmem:[#allocation8 + $0xc0] sm:$0xff]
    %v565 = vld [vmem:[#allocation8 + $0xc8] sm:$0xff]
    %v566 = vld [vmem:[#allocation8 + $0xd0] sm:$0xff]
    %v567 = vld [vmem:[#allocation8 + $0xd8] sm:$0xff]
    %v568 = vld [vmem:[#allocation8 + $0xe0] sm:$0xff]
    %v569 = vld [vmem:[#allocation8 + $0xe8] sm:$0xff]
    %v570 = vld [vmem:[#allocation8 + $0xf0] sm:$0xff]
    %v571 = vld [vmem:[#allocation8 + $0xf8] sm:$0xff]
    %v572 = vld [vmem:[#allocation8 + $0x100] sm:$0xff]
    %v573 = vld [vmem:[#allocation8 + $0x108] sm:$0xff]
    %v574 = vld [vmem:[#allocation8 + $0x110] sm:$0xff]
    %v575 = vld [vmem:[#allocation8 + $0x118] sm:$0xff]
    %v576 = vld [vmem:[#allocation8 + $0x120] sm:$0xff]
    %v577 = vld [vmem:[#allocation8 + $0x128] sm:$0xff]
    %v578 = vld [vmem:[#allocation8 + $0x130] sm:$0xff]
    %v579 = vld [vmem:[#allocation8 + $0x138] sm:$0xff]
    %v580 = vld [vmem:[#allocation8 + $0x140] sm:$0xff]
    %v581 = vld [vmem:[#allocation8 + $0x148] sm:$0xff]
    %v582 = vld [vmem:[#allocation8 + $0x150] sm:$0xff]
    %v583 = vld [vmem:[#allocation8 + $0x158] sm:$0xff]
    %v584 = vld [vmem:[#allocation8 + $0x160] sm:$0xff]
    %v585 = vld [vmem:[#allocation8 + $0x168] sm:$0xff]
    %v586 = vld [vmem:[#allocation8 + $0x170] sm:$0xff]
    %v587 = vld [vmem:[#allocation8 + $0x178] sm:$0xff]
    %588 = vmatpush.msra.mxu0 %v585
    %589 = vmatpush.msra.mxu0 %v582
    %590 = vmatpush.msra.mxu0 %v579
    %591 = vmatpush.msra.mxu0 %v576
    %592 = vmatpush.msra.mxu0 %v573
    %593 = vmatpush.msra.mxu0 %v570
    %594 = vmatpush.msra.mxu0 %v567
    %595 = vmatpush.msra.mxu0 %v564
    %596 = vmatpush.msra.mxu0 %v561
    %597 = vmatpush.msra.mxu0 %v558
    %598 = vmatpush.msra.mxu0 %v555
    %599 = vmatpush.msra.mxu0 %v552
    %600 = vmatpush.msra.mxu0 %v549
    %601 = vmatpush.msra.mxu0 %v546
    %602 = vmatpush.msra.mxu0 %v543
    %603 = vmatpush.msra.mxu0 %v540
    %604 = vmatmul.f32.gmra.mxu0 0.0
    %v605 = vpop.f32.mrf.mxu0
    %v606 = vadd.f32 0.0, %v605
    %607 = vdwg.mxu0
    %608 = vmatpush.msra.mxu0 %v586
    %609 = vmatpush.msra.mxu0 %v583
    %610 = vmatpush.msra.mxu0 %v580
    %611 = vmatpush.msra.mxu0 %v577
    %612 = vmatpush.msra.mxu0 %v574
    %613 = vmatpush.msra.mxu0 %v571
    %614 = vmatpush.msra.mxu0 %v568
    %615 = vmatpush.msra.mxu0 %v565
    %616 = vmatpush.msra.mxu0 %v562
    %617 = vmatpush.msra.mxu0 %v559
    %618 = vmatpush.msra.mxu0 %v556
    %619 = vmatpush.msra.mxu0 %v553
    %620 = vmatpush.msra.mxu0 %v550
    %621 = vmatpush.msra.mxu0 %v547
    %622 = vmatpush.msra.mxu0 %v544
    %623 = vmatpush.msra.mxu0 %v541
    %624 = vmatmul.f32.gmra.mxu0 0.0
    %v625 = vpop.f32.mrf.mxu0
    %v626 = vadd.f32 0.0, %v625
    %627 = vdwg.mxu0
    %628 = vmatpush.msra.mxu0 %v587
    %629 = vmatpush.msra.mxu0 %v584
    %630 = vmatpush.msra.mxu0 %v581
    %631 = vmatpush.msra.mxu0 %v578
    %632 = vmatpush.msra.mxu0 %v575
    %633 = vmatpush.msra.mxu0 %v572
    %634 = vmatpush.msra.mxu0 %v569
    %635 = vmatpush.msra.mxu0 %v566
    %636 = vmatpush.msra.mxu0 %v563
    %637 = vmatpush.msra.mxu0 %v560
    %638 = vmatpush.msra.mxu0 %v557
    %639 = vmatpush.msra.mxu0 %v554
    %640 = vmatpush.msra.mxu0 %v551
    %641 = vmatpush.msra.mxu0 %v548
    %642 = vmatpush.msra.mxu0 %v545
    %643 = vmatpush.msra.mxu0 %v542
    %644 = vmatmul.f32.gmra.mxu0 0.0
    %v645 = vpop.f32.mrf.mxu0
    %v646 = vadd.f32 0.0, %v645
    %647 = vdwg.mxu0
    %v648 = vadd.f32 %v537, %v606
    %v649 = vxor.u32 %v648, 2147483648
    %v650 = vmul.f32 %v649, 1.442695
    %v651 = vpow.pop %v650
    %v652 = vadd.f32 %v651, 1.0
    %v653 = vrcp.pop %v652
    %v654 = vmul.f32 %v652, %v653
    %v655 = vsub.f32 1.0, %v654
    %v656 = vmul.f32 %v653, %v655
    %v657 = vadd.f32 %v653, %v656
    %vm658 = vweird.f32 %v652
    %vm659 = vweird.f32 %v653
    %vm660 = vmor %vm658, %vm659
    %v661 = vsel %vm660, %v653, %v657
    %v662 = vand.u32 2147483647, %v652
    %vm663 = vcmp.eq.f32.partialorder %v662, 8.507059e+37
    %v664 = vand.u32 %v652, 2147483648
    %v665 = vor.u32 1.1754944e-38, %v664
    %v666 = vsel %vm663, %v665, %v661
    %v667 = vmul.f32 1.0, %v666
    %v668 = vadd.f32 %v538, %v626
    %v669 = vxor.u32 %v668, 2147483648
    %v670 = vmul.f32 %v669, 1.442695
    %v671 = vpow.pop %v670
    %v672 = vadd.f32 %v671, 1.0
    %v673 = vrcp.pop %v672
    %v674 = vmul.f32 %v672, %v673
    %v675 = vsub.f32 1.0, %v674
    %v676 = vmul.f32 %v673, %v675
    %v677 = vadd.f32 %v673, %v676
    %vm678 = vweird.f32 %v672
    %vm679 = vweird.f32 %v673
    %vm680 = vmor %vm678, %vm679
    %v681 = vsel %vm680, %v673, %v677
    %v682 = vand.u32 2147483647, %v672
    %vm683 = vcmp.eq.f32.partialorder %v682, 8.507059e+37
    %v684 = vand.u32 %v672, 2147483648
    %v685 = vor.u32 1.1754944e-38, %v684
    %v686 = vsel %vm683, %v685, %v681
    %v687 = vmul.f32 1.0, %v686
    %v688 = vld [vmem:[%s3] sm:$0x1]
    %v690 = vperm.slane %v688, 0
    %v692 = vadd.f32 %v646, %v690
    %v693 = vmul.f32 %v667, %v692
    %v694 = vadd.f32 %v539, %v693
    %v695 = vtanh.pop %v694
    %v696 = vsub.f32 0.0, %v695
    %v697 = vmul.f32 %v687, %v696
    %v698 = vadd.f32 %v695, %v697
    %699 = vst [vmem:[#allocation3] sm:$0xff] %v698
    %s700 = smul.u32 1, 3
    %s701 = smul.addr %s700, 8
    %s702 = scalar_lea.vmem [#allocation2], %s701
    %v703 = vld [vmem:[%s702] sm:$0xff]
    %v704 = vld [vmem:[%s702 + $0x8] sm:$0xff]
    %v705 = vld [vmem:[%s702 + $0x10] sm:$0xff]
    %v706 = vld [vmem:[#allocation8] sm:$0xff]
    %v707 = vld [vmem:[#allocation8 + $0x8] sm:$0xff]
    %v708 = vld [vmem:[#allocation8 + $0x10] sm:$0xff]
    %v709 = vld [vmem:[#allocation8 + $0x18] sm:$0xff]
    %v710 = vld [vmem:[#allocation8 + $0x20] sm:$0xff]
    %v711 = vld [vmem:[#allocation8 + $0x28] sm:$0xff]
    %v712 = vld [vmem:[#allocation8 + $0x30] sm:$0xff]
    %v713 = vld [vmem:[#allocation8 + $0x38] sm:$0xff]
    %v714 = vld [vmem:[#allocation8 + $0x40] sm:$0xff]
    %v715 = vld [vmem:[#allocation8 + $0x48] sm:$0xff]
    %v716 = vld [vmem:[#allocation8 + $0x50] sm:$0xff]
    %v717 = vld [vmem:[#allocation8 + $0x58] sm:$0xff]
    %v718 = vld [vmem:[#allocation8 + $0x60] sm:$0xff]
    %v719 = vld [vmem:[#allocation8 + $0x68] sm:$0xff]
    %v720 = vld [vmem:[#allocation8 + $0x70] sm:$0xff]
    %v721 = vld [vmem:[#allocation8 + $0x78] sm:$0xff]
    %v722 = vld [vmem:[#allocation8 + $0x80] sm:$0xff]
    %v723 = vld [vmem:[#allocation8 + $0x88] sm:$0xff]
    %v724 = vld [vmem:[#allocation8 + $0x90] sm:$0xff]
    %v725 = vld [vmem:[#allocation8 + $0x98] sm:$0xff]
    %v726 = vld [vmem:[#allocation8 + $0xa0] sm:$0xff]
    %v727 = vld [vmem:[#allocation8 + $0xa8] sm:$0xff]
    %v728 = vld [vmem:[#allocation8 + $0xb0] sm:$0xff]
    %v729 = vld [vmem:[#allocation8 + $0xb8] sm:$0xff]
    %v730 = vld [vmem:[#allocation8 + $0xc0] sm:$0xff]
    %v731 = vld [vmem:[#allocation8 + $0xc8] sm:$0xff]
    %v732 = vld [vmem:[#allocation8 + $0xd0] sm:$0xff]
    %v733 = vld [vmem:[#allocation8 + $0xd8] sm:$0xff]
    %v734 = vld [vmem:[#allocation8 + $0xe0] sm:$0xff]
    %v735 = vld [vmem:[#allocation8 + $0xe8] sm:$0xff]
    %v736 = vld [vmem:[#allocation8 + $0xf0] sm:$0xff]
    %v737 = vld [vmem:[#allocation8 + $0xf8] sm:$0xff]
    %v738 = vld [vmem:[#allocation8 + $0x100] sm:$0xff]
    %v739 = vld [vmem:[#allocation8 + $0x108] sm:$0xff]
    %v740 = vld [vmem:[#allocation8 + $0x110] sm:$0xff]
    %v741 = vld [vmem:[#allocation8 + $0x118] sm:$0xff]
    %v742 = vld [vmem:[#allocation8 + $0x120] sm:$0xff]
    %v743 = vld [vmem:[#allocation8 + $0x128] sm:$0xff]
    %v744 = vld [vmem:[#allocation8 + $0x130] sm:$0xff]
    %v745 = vld [vmem:[#allocation8 + $0x138] sm:$0xff]
    %v746 = vld [vmem:[#allocation8 + $0x140] sm:$0xff]
    %v747 = vld [vmem:[#allocation8 + $0x148] sm:$0xff]
    %v748 = vld [vmem:[#allocation8 + $0x150] sm:$0xff]
    %v749 = vld [vmem:[#allocation8 + $0x158] sm:$0xff]
    %v750 = vld [vmem:[#allocation8 + $0x160] sm:$0xff]
    %v751 = vld [vmem:[#allocation8 + $0x168] sm:$0xff]
    %v752 = vld [vmem:[#allocation8 + $0x170] sm:$0xff]
    %v753 = vld [vmem:[#allocation8 + $0x178] sm:$0xff]
    %754 = vmatpush.msra.mxu0 %v751
    %755 = vmatpush.msra.mxu0 %v748
    %756 = vmatpush.msra.mxu0 %v745
    %757 = vmatpush.msra.mxu0 %v742
    %758 = vmatpush.msra.mxu0 %v739
    %759 = vmatpush.msra.mxu0 %v736
    %760 = vmatpush.msra.mxu0 %v733
    %761 = vmatpush.msra.mxu0 %v730
    %762 = vmatpush.msra.mxu0 %v727
    %763 = vmatpush.msra.mxu0 %v724
    %764 = vmatpush.msra.mxu0 %v721
    %765 = vmatpush.msra.mxu0 %v718
    %766 = vmatpush.msra.mxu0 %v715
    %767 = vmatpush.msra.mxu0 %v712
    %768 = vmatpush.msra.mxu0 %v709
    %769 = vmatpush.msra.mxu0 %v706
    %770 = vmatmul.f32.gmra.mxu0 %v698
    %v771 = vpop.f32.mrf.mxu0
    %v772 = vadd.f32 0.0, %v771
    %773 = vdwg.mxu0
    %774 = vmatpush.msra.mxu0 %v752
    %775 = vmatpush.msra.mxu0 %v749
    %776 = vmatpush.msra.mxu0 %v746
    %777 = vmatpush.msra.mxu0 %v743
    %778 = vmatpush.msra.mxu0 %v740
    %779 = vmatpush.msra.mxu0 %v737
    %780 = vmatpush.msra.mxu0 %v734
    %781 = vmatpush.msra.mxu0 %v731
    %782 = vmatpush.msra.mxu0 %v728
    %783 = vmatpush.msra.mxu0 %v725
    %784 = vmatpush.msra.mxu0 %v722
    %785 = vmatpush.msra.mxu0 %v719
    %786 = vmatpush.msra.mxu0 %v716
    %787 = vmatpush.msra.mxu0 %v713
    %788 = vmatpush.msra.mxu0 %v710
    %789 = vmatpush.msra.mxu0 %v707
    %790 = vmatmul.f32.gmra.mxu0 %v698
    %v791 = vpop.f32.mrf.mxu0
    %v792 = vadd.f32 0.0, %v791
    %793 = vdwg.mxu0
    %794 = vmatpush.msra.mxu0 %v753
    %795 = vmatpush.msra.mxu0 %v750
    %796 = vmatpush.msra.mxu0 %v747
    %797 = vmatpush.msra.mxu0 %v744
    %798 = vmatpush.msra.mxu0 %v741
    %799 = vmatpush.msra.mxu0 %v738
    %800 = vmatpush.msra.mxu0 %v735
    %801 = vmatpush.msra.mxu0 %v732
    %802 = vmatpush.msra.mxu0 %v729
    %803 = vmatpush.msra.mxu0 %v726
    %804 = vmatpush.msra.mxu0 %v723
    %805 = vmatpush.msra.mxu0 %v720
    %806 = vmatpush.msra.mxu0 %v717
    %807 = vmatpush.msra.mxu0 %v714
    %808 = vmatpush.msra.mxu0 %v711
    %809 = vmatpush.msra.mxu0 %v708
    %810 = vmatmul.f32.gmra.mxu0 %v698
    %v811 = vpop.f32.mrf.mxu0
    %v812 = vadd.f32 0.0, %v811
    %813 = vdwg.mxu0
    %v814 = vadd.f32 %v703, %v772
    %v815 = vxor.u32 %v814, 2147483648
    %v816 = vmul.f32 %v815, 1.442695
    %v817 = vpow.pop %v816
    %v818 = vadd.f32 %v817, 1.0
    %v819 = vrcp.pop %v818
    %v820 = vmul.f32 %v818, %v819
    %v821 = vsub.f32 1.0, %v820
    %v822 = vmul.f32 %v819, %v821
    %v823 = vadd.f32 %v819, %v822
    %vm824 = vweird.f32 %v818
    %vm825 = vweird.f32 %v819
    %vm826 = vmor %vm824, %vm825
    %v827 = vsel %vm826, %v819, %v823
    %v828 = vand.u32 2147483647, %v818
    %vm829 = vcmp.eq.f32.partialorder %v828, 8.507059e+37
    %v830 = vand.u32 %v818, 2147483648
    %v831 = vor.u32 1.1754944e-38, %v830
    %v832 = vsel %vm829, %v831, %v827
    %v833 = vmul.f32 1.0, %v832
    %v834 = vadd.f32 %v704, %v792
    %v835 = vxor.u32 %v834, 2147483648
    %v836 = vmul.f32 %v835, 1.442695
    %v837 = vpow.pop %v836
    %v838 = vadd.f32 %v837, 1.0
    %v839 = vrcp.pop %v838
    %v840 = vmul.f32 %v838, %v839
    %v841 = vsub.f32 1.0, %v840
    %v842 = vmul.f32 %v839, %v841
    %v843 = vadd.f32 %v839, %v842
    %vm844 = vweird.f32 %v838
    %vm845 = vweird.f32 %v839
    %vm846 = vmor %vm844, %vm845
    %v847 = vsel %vm846, %v839, %v843
    %v848 = vand.u32 2147483647, %v838
    %vm849 = vcmp.eq.f32.partialorder %v848, 8.507059e+37
    %v850 = vand.u32 %v838, 2147483648
    %v851 = vor.u32 1.1754944e-38, %v850
    %v852 = vsel %vm849, %v851, %v847
    %v853 = vmul.f32 1.0, %v852
    %v854 = vld [vmem:[%s3] sm:$0x1]
    %v856 = vperm.slane %v854, 0
    %v858 = vadd.f32 %v812, %v856
    %v859 = vmul.f32 %v833, %v858
    %v860 = vadd.f32 %v705, %v859
    %v861 = vtanh.pop %v860
    %v862 = vsub.f32 %v698, %v861
    %v863 = vmul.f32 %v853, %v862
    %v864 = vadd.f32 %v861, %v863
    %s865 = scalar_lea.vmem [#allocation3], 8
    %866 = vst [vmem:[%s865] sm:$0xff] %v864
    %s867 = smul.u32 2, 3
    %s868 = smul.addr %s867, 8
    %s869 = scalar_lea.vmem [#allocation2], %s868
    %v870 = vld [vmem:[%s869] sm:$0xff]
    %v871 = vld [vmem:[%s869 + $0x8] sm:$0xff]
    %v872 = vld [vmem:[%s869 + $0x10] sm:$0xff]
    %v873 = vld [vmem:[#allocation8] sm:$0xff]
    %v874 = vld [vmem:[#allocation8 + $0x8] sm:$0xff]
    %v875 = vld [vmem:[#allocation8 + $0x10] sm:$0xff]
    %v876 = vld [vmem:[#allocation8 + $0x18] sm:$0xff]
    %v877 = vld [vmem:[#allocation8 + $0x20] sm:$0xff]
    %v878 = vld [vmem:[#allocation8 + $0x28] sm:$0xff]
    %v879 = vld [vmem:[#allocation8 + $0x30] sm:$0xff]
    %v880 = vld [vmem:[#allocation8 + $0x38] sm:$0xff]
    %v881 = vld [vmem:[#allocation8 + $0x40] sm:$0xff]
    %v882 = vld [vmem:[#allocation8 + $0x48] sm:$0xff]
    %v883 = vld [vmem:[#allocation8 + $0x50] sm:$0xff]
    %v884 = vld [vmem:[#allocation8 + $0x58] sm:$0xff]
    %v885 = vld [vmem:[#allocation8 + $0x60] sm:$0xff]
    %v886 = vld [vmem:[#allocation8 + $0x68] sm:$0xff]
    %v887 = vld [vmem:[#allocation8 + $0x70] sm:$0xff]
    %v888 = vld [vmem:[#allocation8 + $0x78] sm:$0xff]
    %v889 = vld [vmem:[#allocation8 + $0x80] sm:$0xff]
    %v890 = vld [vmem:[#allocation8 + $0x88] sm:$0xff]
    %v891 = vld [vmem:[#allocation8 + $0x90] sm:$0xff]
    %v892 = vld [vmem:[#allocation8 + $0x98] sm:$0xff]
    %v893 = vld [vmem:[#allocation8 + $0xa0] sm:$0xff]
    %v894 = vld [vmem:[#allocation8 + $0xa8] sm:$0xff]
    %v895 = vld [vmem:[#allocation8 + $0xb0] sm:$0xff]
    %v896 = vld [vmem:[#allocation8 + $0xb8] sm:$0xff]
    %v897 = vld [vmem:[#allocation8 + $0xc0] sm:$0xff]
    %v898 = vld [vmem:[#allocation8 + $0xc8] sm:$0xff]
    %v899 = vld [vmem:[#allocation8 + $0xd0] sm:$0xff]
    %v900 = vld [vmem:[#allocation8 + $0xd8] sm:$0xff]
    %v901 = vld [vmem:[#allocation8 + $0xe0] sm:$0xff]
    %v902 = vld [vmem:[#allocation8 + $0xe8] sm:$0xff]
    %v903 = vld [vmem:[#allocation8 + $0xf0] sm:$0xff]
    %v904 = vld [vmem:[#allocation8 + $0xf8] sm:$0xff]
    %v905 = vld [vmem:[#allocation8 + $0x100] sm:$0xff]
    %v906 = vld [vmem:[#allocation8 + $0x108] sm:$0xff]
    %v907 = vld [vmem:[#allocation8 + $0x110] sm:$0xff]
    %v908 = vld [vmem:[#allocation8 + $0x118] sm:$0xff]
    %v909 = vld [vmem:[#allocation8 + $0x120] sm:$0xff]
    %v910 = vld [vmem:[#allocation8 + $0x128] sm:$0xff]
    %v911 = vld [vmem:[#allocation8 + $0x130] sm:$0xff]
    %v912 = vld [vmem:[#allocation8 + $0x138] sm:$0xff]
    %v913 = vld [vmem:[#allocation8 + $0x140] sm:$0xff]
    %v914 = vld [vmem:[#allocation8 + $0x148] sm:$0xff]
    %v915 = vld [vmem:[#allocation8 + $0x150] sm:$0xff]
    %v916 = vld [vmem:[#allocation8 + $0x158] sm:$0xff]
    %v917 = vld [vmem:[#allocation8 + $0x160] sm:$0xff]
    %v918 = vld [vmem:[#allocation8 + $0x168] sm:$0xff]
    %v919 = vld [vmem:[#allocation8 + $0x170] sm:$0xff]
    %v920 = vld [vmem:[#allocation8 + $0x178] sm:$0xff]
    %921 = vmatpush.msra.mxu0 %v918
    %922 = vmatpush.msra.mxu0 %v915
    %923 = vmatpush.msra.mxu0 %v912
    %924 = vmatpush.msra.mxu0 %v909
    %925 = vmatpush.msra.mxu0 %v906
    %926 = vmatpush.msra.mxu0 %v903
    %927 = vmatpush.msra.mxu0 %v900
    %928 = vmatpush.msra.mxu0 %v897
    %929 = vmatpush.msra.mxu0 %v894
    %930 = vmatpush.msra.mxu0 %v891
    %931 = vmatpush.msra.mxu0 %v888
    %932 = vmatpush.msra.mxu0 %v885
    %933 = vmatpush.msra.mxu0 %v882
    %934 = vmatpush.msra.mxu0 %v879
    %935 = vmatpush.msra.mxu0 %v876
    %936 = vmatpush.msra.mxu0 %v873
    %937 = vmatmul.f32.gmra.mxu0 %v864
    %v938 = vpop.f32.mrf.mxu0
    %v939 = vadd.f32 0.0, %v938
    %940 = vdwg.mxu0
    %941 = vmatpush.msra.mxu0 %v919
    %942 = vmatpush.msra.mxu0 %v916
    %943 = vmatpush.msra.mxu0 %v913
    %944 = vmatpush.msra.mxu0 %v910
    %945 = vmatpush.msra.mxu0 %v907
    %946 = vmatpush.msra.mxu0 %v904
    %947 = vmatpush.msra.mxu0 %v901
    %948 = vmatpush.msra.mxu0 %v898
    %949 = vmatpush.msra.mxu0 %v895
    %950 = vmatpush.msra.mxu0 %v892
    %951 = vmatpush.msra.mxu0 %v889
    %952 = vmatpush.msra.mxu0 %v886
    %953 = vmatpush.msra.mxu0 %v883
    %954 = vmatpush.msra.mxu0 %v880
    %955 = vmatpush.msra.mxu0 %v877
    %956 = vmatpush.msra.mxu0 %v874
    %957 = vmatmul.f32.gmra.mxu0 %v864
    %v958 = vpop.f32.mrf.mxu0
    %v959 = vadd.f32 0.0, %v958
    %960 = vdwg.mxu0
    %961 = vmatpush.msra.mxu0 %v920
    %962 = vmatpush.msra.mxu0 %v917
    %963 = vmatpush.msra.mxu0 %v914
    %964 = vmatpush.msra.mxu0 %v911
    %965 = vmatpush.msra.mxu0 %v908
    %966 = vmatpush.msra.mxu0 %v905
    %967 = vmatpush.msra.mxu0 %v902
    %968 = vmatpush.msra.mxu0 %v899
    %969 = vmatpush.msra.mxu0 %v896
    %970 = vmatpush.msra.mxu0 %v893
    %971 = vmatpush.msra.mxu0 %v890
    %972 = vmatpush.msra.mxu0 %v887
    %973 = vmatpush.msra.mxu0 %v884
    %974 = vmatpush.msra.mxu0 %v881
    %975 = vmatpush.msra.mxu0 %v878
    %976 = vmatpush.msra.mxu0 %v875
    %977 = vmatmul.f32.gmra.mxu0 %v864
    %v978 = vpop.f32.mrf.mxu0
    %v979 = vadd.f32 0.0, %v978
    %980 = vdwg.mxu0
    %v981 = vadd.f32 %v870, %v939
    %v982 = vxor.u32 %v981, 2147483648
    %v983 = vmul.f32 %v982, 1.442695
    %v984 = vpow.pop %v983
    %v985 = vadd.f32 %v984, 1.0
    %v986 = vrcp.pop %v985
    %v987 = vmul.f32 %v985, %v986
    %v988 = vsub.f32 1.0, %v987
    %v989 = vmul.f32 %v986, %v988
    %v990 = vadd.f32 %v986, %v989
    %vm991 = vweird.f32 %v985
    %vm992 = vweird.f32 %v986
    %vm993 = vmor %vm991, %vm992
    %v994 = vsel %vm993, %v986, %v990
    %v995 = vand.u32 2147483647, %v985
    %vm996 = vcmp.eq.f32.partialorder %v995, 8.507059e+37
    %v997 = vand.u32 %v985, 2147483648
    %v998 = vor.u32 1.1754944e-38, %v997
    %v999 = vsel %vm996, %v998, %v994
    %v1000 = vmul.f32 1.0, %v999
    %v1001 = vadd.f32 %v871, %v959
    %v1002 = vxor.u32 %v1001, 2147483648
    %v1003 = vmul.f32 %v1002, 1.442695
    %v1004 = vpow.pop %v1003
    %v1005 = vadd.f32 %v1004, 1.0
    %v1006 = vrcp.pop %v1005
    %v1007 = vmul.f32 %v1005, %v1006
    %v1008 = vsub.f32 1.0, %v1007
    %v1009 = vmul.f32 %v1006, %v1008
    %v1010 = vadd.f32 %v1006, %v1009
    %vm1011 = vweird.f32 %v1005
    %vm1012 = vweird.f32 %v1006
    %vm1013 = vmor %vm1011, %vm1012
    %v1014 = vsel %vm1013, %v1006, %v1010
    %v1015 = vand.u32 2147483647, %v1005
    %vm1016 = vcmp.eq.f32.partialorder %v1015, 8.507059e+37
    %v1017 = vand.u32 %v1005, 2147483648
    %v1018 = vor.u32 1.1754944e-38, %v1017
    %v1019 = vsel %vm1016, %v1018, %v1014
    %v1020 = vmul.f32 1.0, %v1019
    %v1021 = vld [vmem:[%s3] sm:$0x1]
    %v1023 = vperm.slane %v1021, 0
    %v1025 = vadd.f32 %v979, %v1023
    %v1026 = vmul.f32 %v1000, %v1025
    %v1027 = vadd.f32 %v872, %v1026
    %v1028 = vtanh.pop %v1027
    %v1029 = vsub.f32 %v864, %v1028
    %v1030 = vmul.f32 %v1020, %v1029
    %v1031 = vadd.f32 %v1028, %v1030
    %s1032 = scalar_lea.vmem [#allocation3], 16
    %1033 = vst [vmem:[%s1032] sm:$0xff] %v1031
    %s1034 = smul.u32 3, 3
    %s1035 = smul.addr %s1034, 8
    %s1036 = scalar_lea.vmem [#allocation2], %s1035
    %v1037 = vld [vmem:[%s1036] sm:$0xff]
    %v1038 = vld [vmem:[%s1036 + $0x8] sm:$0xff]
    %v1039 = vld [vmem:[%s1036 + $0x10] sm:$0xff]
    %v1040 = vld [vmem:[#allocation8] sm:$0xff]
    %v1041 = vld [vmem:[#allocation8 + $0x8] sm:$0xff]
    %v1042 = vld [vmem:[#allocation8 + $0x10] sm:$0xff]
    %v1043 = vld [vmem:[#allocation8 + $0x18] sm:$0xff]
    %v1044 = vld [vmem:[#allocation8 + $0x20] sm:$0xff]
    %v1045 = vld [vmem:[#allocation8 + $0x28] sm:$0xff]
    %v1046 = vld [vmem:[#allocation8 + $0x30] sm:$0xff]
    %v1047 = vld [vmem:[#allocation8 + $0x38] sm:$0xff]
    %v1048 = vld [vmem:[#allocation8 + $0x40] sm:$0xff]
    %v1049 = vld [vmem:[#allocation8 + $0x48] sm:$0xff]
    %v1050 = vld [vmem:[#allocation8 + $0x50] sm:$0xff]
    %v1051 = vld [vmem:[#allocation8 + $0x58] sm:$0xff]
    %v1052 = vld [vmem:[#allocation8 + $0x60] sm:$0xff]
    %v1053 = vld [vmem:[#allocation8 + $0x68] sm:$0xff]
    %v1054 = vld [vmem:[#allocation8 + $0x70] sm:$0xff]
    %v1055 = vld [vmem:[#allocation8 + $0x78] sm:$0xff]
    %v1056 = vld [vmem:[#allocation8 + $0x80] sm:$0xff]
    %v1057 = vld [vmem:[#allocation8 + $0x88] sm:$0xff]
    %v1058 = vld [vmem:[#allocation8 + $0x90] sm:$0xff]
    %v1059 = vld [vmem:[#allocation8 + $0x98] sm:$0xff]
    %v1060 = vld [vmem:[#allocation8 + $0xa0] sm:$0xff]
    %v1061 = vld [vmem:[#allocation8 + $0xa8] sm:$0xff]
    %v1062 = vld [vmem:[#allocation8 + $0xb0] sm:$0xff]
    %v1063 = vld [vmem:[#allocation8 + $0xb8] sm:$0xff]
    %v1064 = vld [vmem:[#allocation8 + $0xc0] sm:$0xff]
    %v1065 = vld [vmem:[#allocation8 + $0xc8] sm:$0xff]
    %v1066 = vld [vmem:[#allocation8 + $0xd0] sm:$0xff]
    %v1067 = vld [vmem:[#allocation8 + $0xd8] sm:$0xff]
    %v1068 = vld [vmem:[#allocation8 + $0xe0] sm:$0xff]
    %v1069 = vld [vmem:[#allocation8 + $0xe8] sm:$0xff]
    %v1070 = vld [vmem:[#allocation8 + $0xf0] sm:$0xff]
    %v1071 = vld [vmem:[#allocation8 + $0xf8] sm:$0xff]
    %v1072 = vld [vmem:[#allocation8 + $0x100] sm:$0xff]
    %v1073 = vld [vmem:[#allocation8 + $0x108] sm:$0xff]
    %v1074 = vld [vmem:[#allocation8 + $0x110] sm:$0xff]
    %v1075 = vld [vmem:[#allocation8 + $0x118] sm:$0xff]
    %v1076 = vld [vmem:[#allocation8 + $0x120] sm:$0xff]
    %v1077 = vld [vmem:[#allocation8 + $0x128] sm:$0xff]
    %v1078 = vld [vmem:[#allocation8 + $0x130] sm:$0xff]
    %v1079 = vld [vmem:[#allocation8 + $0x138] sm:$0xff]
    %v1080 = vld [vmem:[#allocation8 + $0x140] sm:$0xff]
    %v1081 = vld [vmem:[#allocation8 + $0x148] sm:$0xff]
    %v1082 = vld [vmem:[#allocation8 + $0x150] sm:$0xff]
    %v1083 = vld [vmem:[#allocation8 + $0x158] sm:$0xff]
    %v1084 = vld [vmem:[#allocation8 + $0x160] sm:$0xff]
    %v1085 = vld [vmem:[#allocation8 + $0x168] sm:$0xff]
    %v1086 = vld [vmem:[#allocation8 + $0x170] sm:$0xff]
    %v1087 = vld [vmem:[#allocation8 + $0x178] sm:$0xff]
    %1088 = vmatpush.msra.mxu0 %v1085
    %1089 = vmatpush.msra.mxu0 %v1082
    %1090 = vmatpush.msra.mxu0 %v1079
    %1091 = vmatpush.msra.mxu0 %v1076
    %1092 = vmatpush.msra.mxu0 %v1073
    %1093 = vmatpush.msra.mxu0 %v1070
    %1094 = vmatpush.msra.mxu0 %v1067
    %1095 = vmatpush.msra.mxu0 %v1064
    %1096 = vmatpush.msra.mxu0 %v1061
    %1097 = vmatpush.msra.mxu0 %v1058
    %1098 = vmatpush.msra.mxu0 %v1055
    %1099 = vmatpush.msra.mxu0 %v1052
    %1100 = vmatpush.msra.mxu0 %v1049
    %1101 = vmatpush.msra.mxu0 %v1046
    %1102 = vmatpush.msra.mxu0 %v1043
    %1103 = vmatpush.msra.mxu0 %v1040
    %1104 = vmatmul.f32.gmra.mxu0 %v1031
    %v1105 = vpop.f32.mrf.mxu0
    %v1106 = vadd.f32 0.0, %v1105
    %1107 = vdwg.mxu0
    %1108 = vmatpush.msra.mxu0 %v1086
    %1109 = vmatpush.msra.mxu0 %v1083
    %1110 = vmatpush.msra.mxu0 %v1080
    %1111 = vmatpush.msra.mxu0 %v1077
    %1112 = vmatpush.msra.mxu0 %v1074
    %1113 = vmatpush.msra.mxu0 %v1071
    %1114 = vmatpush.msra.mxu0 %v1068
    %1115 = vmatpush.msra.mxu0 %v1065
    %1116 = vmatpush.msra.mxu0 %v1062
    %1117 = vmatpush.msra.mxu0 %v1059
    %1118 = vmatpush.msra.mxu0 %v1056
    %1119 = vmatpush.msra.mxu0 %v1053
    %1120 = vmatpush.msra.mxu0 %v1050
    %1121 = vmatpush.msra.mxu0 %v1047
    %1122 = vmatpush.msra.mxu0 %v1044
    %1123 = vmatpush.msra.mxu0 %v1041
    %1124 = vmatmul.f32.gmra.mxu0 %v1031
    %v1125 = vpop.f32.mrf.mxu0
    %v1126 = vadd.f32 0.0, %v1125
    %1127 = vdwg.mxu0
    %1128 = vmatpush.msra.mxu0 %v1087
    %1129 = vmatpush.msra.mxu0 %v1084
    %1130 = vmatpush.msra.mxu0 %v1081
    %1131 = vmatpush.msra.mxu0 %v1078
    %1132 = vmatpush.msra.mxu0 %v1075
    %1133 = vmatpush.msra.mxu0 %v1072
    %1134 = vmatpush.msra.mxu0 %v1069
    %1135 = vmatpush.msra.mxu0 %v1066
    %1136 = vmatpush.msra.mxu0 %v1063
    %1137 = vmatpush.msra.mxu0 %v1060
    %1138 = vmatpush.msra.mxu0 %v1057
    %1139 = vmatpush.msra.mxu0 %v1054
    %1140 = vmatpush.msra.mxu0 %v1051
    %1141 = vmatpush.msra.mxu0 %v1048
    %1142 = vmatpush.msra.mxu0 %v1045
    %1143 = vmatpush.msra.mxu0 %v1042
    %1144 = vmatmul.f32.gmra.mxu0 %v1031
    %v1145 = vpop.f32.mrf.mxu0
    %v1146 = vadd.f32 0.0, %v1145
    %1147 = vdwg.mxu0
    %v1148 = vadd.f32 %v1037, %v1106
    %v1149 = vxor.u32 %v1148, 2147483648
    %v1150 = vmul.f32 %v1149, 1.442695
    %v1151 = vpow.pop %v1150
    %v1152 = vadd.f32 %v1151, 1.0
    %v1153 = vrcp.pop %v1152
    %v1154 = vmul.f32 %v1152, %v1153
    %v1155 = vsub.f32 1.0, %v1154
    %v1156 = vmul.f32 %v1153, %v1155
    %v1157 = vadd.f32 %v1153, %v1156
    %vm1158 = vweird.f32 %v1152
    %vm1159 = vweird.f32 %v1153
    %vm1160 = vmor %vm1158, %vm1159
    %v1161 = vsel %vm1160, %v1153, %v1157
    %v1162 = vand.u32 2147483647, %v1152
    %vm1163 = vcmp.eq.f32.partialorder %v1162, 8.507059e+37
    %v1164 = vand.u32 %v1152, 2147483648
    %v1165 = vor.u32 1.1754944e-38, %v1164
    %v1166 = vsel %vm1163, %v1165, %v1161
    %v1167 = vmul.f32 1.0, %v1166
    %v1168 = vadd.f32 %v1038, %v1126
    %v1169 = vxor.u32 %v1168, 2147483648
    %v1170 = vmul.f32 %v1169, 1.442695
    %v1171 = vpow.pop %v1170
    %v1172 = vadd.f32 %v1171, 1.0
    %v1173 = vrcp.pop %v1172
    %v1174 = vmul.f32 %v1172, %v1173
    %v1175 = vsub.f32 1.0, %v1174
    %v1176 = vmul.f32 %v1173, %v1175
    %v1177 = vadd.f32 %v1173, %v1176
    %vm1178 = vweird.f32 %v1172
    %vm1179 = vweird.f32 %v1173
    %vm1180 = vmor %vm1178, %vm1179
    %v1181 = vsel %vm1180, %v1173, %v1177
    %v1182 = vand.u32 2147483647, %v1172
    %vm1183 = vcmp.eq.f32.partialorder %v1182, 8.507059e+37
    %v1184 = vand.u32 %v1172, 2147483648
    %v1185 = vor.u32 1.1754944e-38, %v1184
    %v1186 = vsel %vm1183, %v1185, %v1181
    %v1187 = vmul.f32 1.0, %v1186
    %v1188 = vld [vmem:[%s3] sm:$0x1]
    %v1190 = vperm.slane %v1188, 0
    %v1192 = vadd.f32 %v1146, %v1190
    %v1193 = vmul.f32 %v1167, %v1192
    %v1194 = vadd.f32 %v1039, %v1193
    %v1195 = vtanh.pop %v1194
    %v1196 = vsub.f32 %v1031, %v1195
    %v1197 = vmul.f32 %v1187, %v1196
    %v1198 = vadd.f32 %v1195, %v1197
    %s1199 = scalar_lea.vmem [#allocation3], 24
    %1200 = vst [vmem:[%s1199] sm:$0xff] %v1198
    %s1201 = smul.u32 4, 3
    %s1202 = smul.addr %s1201, 8
    %s1203 = scalar_lea.vmem [#allocation2], %s1202
    %v1204 = vld [vmem:[%s1203] sm:$0xff]
    %v1205 = vld [vmem:[%s1203 + $0x8] sm:$0xff]
    %v1206 = vld [vmem:[%s1203 + $0x10] sm:$0xff]
    %v1207 = vld [vmem:[#allocation8] sm:$0xff]
    %v1208 = vld [vmem:[#allocation8 + $0x8] sm:$0xff]
    %v1209 = vld [vmem:[#allocation8 + $0x10] sm:$0xff]
    %v1210 = vld [vmem:[#allocation8 + $0x18] sm:$0xff]
    %v1211 = vld [vmem:[#allocation8 + $0x20] sm:$0xff]
    %v1212 = vld [vmem:[#allocation8 + $0x28] sm:$0xff]
    %v1213 = vld [vmem:[#allocation8 + $0x30] sm:$0xff]
    %v1214 = vld [vmem:[#allocation8 + $0x38] sm:$0xff]
    %v1215 = vld [vmem:[#allocation8 + $0x40] sm:$0xff]
    %v1216 = vld [vmem:[#allocation8 + $0x48] sm:$0xff]
    %v1217 = vld [vmem:[#allocation8 + $0x50] sm:$0xff]
    %v1218 = vld [vmem:[#allocation8 + $0x58] sm:$0xff]
    %v1219 = vld [vmem:[#allocation8 + $0x60] sm:$0xff]
    %v1220 = vld [vmem:[#allocation8 + $0x68] sm:$0xff]
    %v1221 = vld [vmem:[#allocation8 + $0x70] sm:$0xff]
    %v1222 = vld [vmem:[#allocation8 + $0x78] sm:$0xff]
    %v1223 = vld [vmem:[#allocation8 + $0x80] sm:$0xff]
    %v1224 = vld [vmem:[#allocation8 + $0x88] sm:$0xff]
    %v1225 = vld [vmem:[#allocation8 + $0x90] sm:$0xff]
    %v1226 = vld [vmem:[#allocation8 + $0x98] sm:$0xff]
    %v1227 = vld [vmem:[#allocation8 + $0xa0] sm:$0xff]
    %v1228 = vld [vmem:[#allocation8 + $0xa8] sm:$0xff]
    %v1229 = vld [vmem:[#allocation8 + $0xb0] sm:$0xff]
    %v1230 = vld [vmem:[#allocation8 + $0xb8] sm:$0xff]
    %v1231 = vld [vmem:[#allocation8 + $0xc0] sm:$0xff]
    %v1232 = vld [vmem:[#allocation8 + $0xc8] sm:$0xff]
    %v1233 = vld [vmem:[#allocation8 + $0xd0] sm:$0xff]
    %v1234 = vld [vmem:[#allocation8 + $0xd8] sm:$0xff]
    %v1235 = vld [vmem:[#allocation8 + $0xe0] sm:$0xff]
    %v1236 = vld [vmem:[#allocation8 + $0xe8] sm:$0xff]
    %v1237 = vld [vmem:[#allocation8 + $0xf0] sm:$0xff]
    %v1238 = vld [vmem:[#allocation8 + $0xf8] sm:$0xff]
    %v1239 = vld [vmem:[#allocation8 + $0x100] sm:$0xff]
    %v1240 = vld [vmem:[#allocation8 + $0x108] sm:$0xff]
    %v1241 = vld [vmem:[#allocation8 + $0x110] sm:$0xff]
    %v1242 = vld [vmem:[#allocation8 + $0x118] sm:$0xff]
    %v1243 = vld [vmem:[#allocation8 + $0x120] sm:$0xff]
    %v1244 = vld [vmem:[#allocation8 + $0x128] sm:$0xff]
    %v1245 = vld [vmem:[#allocation8 + $0x130] sm:$0xff]
    %v1246 = vld [vmem:[#allocation8 + $0x138] sm:$0xff]
    %v1247 = vld [vmem:[#allocation8 + $0x140] sm:$0xff]
    %v1248 = vld [vmem:[#allocation8 + $0x148] sm:$0xff]
    %v1249 = vld [vmem:[#allocation8 + $0x150] sm:$0xff]
    %v1250 = vld [vmem:[#allocation8 + $0x158] sm:$0xff]
    %v1251 = vld [vmem:[#allocation8 + $0x160] sm:$0xff]
    %v1252 = vld [vmem:[#allocation8 + $0x168] sm:$0xff]
    %v1253 = vld [vmem:[#allocation8 + $0x170] sm:$0xff]
    %v1254 = vld [vmem:[#allocation8 + $0x178] sm:$0xff]
    %1255 = vmatpush.msra.mxu0 %v1252
    %1256 = vmatpush.msra.mxu0 %v1249
    %1257 = vmatpush.msra.mxu0 %v1246
    %1258 = vmatpush.msra.mxu0 %v1243
    %1259 = vmatpush.msra.mxu0 %v1240
    %1260 = vmatpush.msra.mxu0 %v1237
    %1261 = vmatpush.msra.mxu0 %v1234
    %1262 = vmatpush.msra.mxu0 %v1231
    %1263 = vmatpush.msra.mxu0 %v1228
    %1264 = vmatpush.msra.mxu0 %v1225
    %1265 = vmatpush.msra.mxu0 %v1222
    %1266 = vmatpush.msra.mxu0 %v1219
    %1267 = vmatpush.msra.mxu0 %v1216
    %1268 = vmatpush.msra.mxu0 %v1213
    %1269 = vmatpush.msra.mxu0 %v1210
    %1270 = vmatpush.msra.mxu0 %v1207
    %1271 = vmatmul.f32.gmra.mxu0 %v1198
    %v1272 = vpop.f32.mrf.mxu0
    %v1273 = vadd.f32 0.0, %v1272
    %1274 = vdwg.mxu0
    %1275 = vmatpush.msra.mxu0 %v1253
    %1276 = vmatpush.msra.mxu0 %v1250
    %1277 = vmatpush.msra.mxu0 %v1247
    %1278 = vmatpush.msra.mxu0 %v1244
    %1279 = vmatpush.msra.mxu0 %v1241
    %1280 = vmatpush.msra.mxu0 %v1238
    %1281 = vmatpush.msra.mxu0 %v1235
    %1282 = vmatpush.msra.mxu0 %v1232
    %1283 = vmatpush.msra.mxu0 %v1229
    %1284 = vmatpush.msra.mxu0 %v1226
    %1285 = vmatpush.msra.mxu0 %v1223
    %1286 = vmatpush.msra.mxu0 %v1220
    %1287 = vmatpush.msra.mxu0 %v1217
    %1288 = vmatpush.msra.mxu0 %v1214
    %1289 = vmatpush.msra.mxu0 %v1211
    %1290 = vmatpush.msra.mxu0 %v1208
    %1291 = vmatmul.f32.gmra.mxu0 %v1198
    %v1292 = vpop.f32.mrf.mxu0
    %v1293 = vadd.f32 0.0, %v1292
    %1294 = vdwg.mxu0
    %1295 = vmatpush.msra.mxu0 %v1254
    %1296 = vmatpush.msra.mxu0 %v1251
    %1297 = vmatpush.msra.mxu0 %v1248
    %1298 = vmatpush.msra.mxu0 %v1245
    %1299 = vmatpush.msra.mxu0 %v1242
    %1300 = vmatpush.msra.mxu0 %v1239
    %1301 = vmatpush.msra.mxu0 %v1236
    %1302 = vmatpush.msra.mxu0 %v1233
    %1303 = vmatpush.msra.mxu0 %v1230
    %1304 = vmatpush.msra.mxu0 %v1227
    %1305 = vmatpush.msra.mxu0 %v1224
    %1306 = vmatpush.msra.mxu0 %v1221
    %1307 = vmatpush.msra.mxu0 %v1218
    %1308 = vmatpush.msra.mxu0 %v1215
    %1309 = vmatpush.msra.mxu0 %v1212
    %1310 = vmatpush.msra.mxu0 %v1209
    %1311 = vmatmul.f32.gmra.mxu0 %v1198
    %v1312 = vpop.f32.mrf.mxu0
    %v1313 = vadd.f32 0.0, %v1312
    %1314 = vdwg.mxu0
    %v1315 = vadd.f32 %v1204, %v1273
    %v1316 = vxor.u32 %v1315, 2147483648
    %v1317 = vmul.f32 %v1316, 1.442695
    %v1318 = vpow.pop %v1317
    %v1319 = vadd.f32 %v1318, 1.0
    %v1320 = vrcp.pop %v1319
    %v1321 = vmul.f32 %v1319, %v1320
    %v1322 = vsub.f32 1.0, %v1321
    %v1323 = vmul.f32 %v1320, %v1322
    %v1324 = vadd.f32 %v1320, %v1323
    %vm1325 = vweird.f32 %v1319
    %vm1326 = vweird.f32 %v1320
    %vm1327 = vmor %vm1325, %vm1326
    %v1328 = vsel %vm1327, %v1320, %v1324
    %v1329 = vand.u32 2147483647, %v1319
    %vm1330 = vcmp.eq.f32.partialorder %v1329, 8.507059e+37
    %v1331 = vand.u32 %v1319, 2147483648
    %v1332 = vor.u32 1.1754944e-38, %v1331
    %v1333 = vsel %vm1330, %v1332, %v1328
    %v1334 = vmul.f32 1.0, %v1333
    %v1335 = vadd.f32 %v1205, %v1293
    %v1336 = vxor.u32 %v1335, 2147483648
    %v1337 = vmul.f32 %v1336, 1.442695
    %v1338 = vpow.pop %v1337
    %v1339 = vadd.f32 %v1338, 1.0
    %v1340 = vrcp.pop %v1339
    %v1341 = vmul.f32 %v1339, %v1340
    %v1342 = vsub.f32 1.0, %v1341
    %v1343 = vmul.f32 %v1340, %v1342
    %v1344 = vadd.f32 %v1340, %v1343
    %vm1345 = vweird.f32 %v1339
    %vm1346 = vweird.f32 %v1340
    %vm1347 = vmor %vm1345, %vm1346
    %v1348 = vsel %vm1347, %v1340, %v1344
    %v1349 = vand.u32 2147483647, %v1339
    %vm1350 = vcmp.eq.f32.partialorder %v1349, 8.507059e+37
    %v1351 = vand.u32 %v1339, 2147483648
    %v1352 = vor.u32 1.1754944e-38, %v1351
    %v1353 = vsel %vm1350, %v1352, %v1348
    %v1354 = vmul.f32 1.0, %v1353
    %v1355 = vld [vmem:[%s3] sm:$0x1]
    %v1357 = vperm.slane %v1355, 0
    %v1359 = vadd.f32 %v1313, %v1357
    %v1360 = vmul.f32 %v1334, %v1359
    %v1361 = vadd.f32 %v1206, %v1360
    %v1362 = vtanh.pop %v1361
    %v1363 = vsub.f32 %v1198, %v1362
    %v1364 = vmul.f32 %v1354, %v1363
    %v1365 = vadd.f32 %v1362, %v1364
    %s1366 = scalar_lea.vmem [#allocation3], 32
    %1367 = vst [vmem:[%s1366] sm:$0xff] %v1365
    %s1368 = smul.u32 5, 3
    %s1369 = smul.addr %s1368, 8
    %s1370 = scalar_lea.vmem [#allocation2], %s1369
    %v1371 = vld [vmem:[%s1370] sm:$0xff]
    %v1372 = vld [vmem:[%s1370 + $0x8] sm:$0xff]
    %v1373 = vld [vmem:[%s1370 + $0x10] sm:$0xff]
    %v1374 = vld [vmem:[#allocation8] sm:$0xff]
    %v1375 = vld [vmem:[#allocation8 + $0x8] sm:$0xff]
    %v1376 = vld [vmem:[#allocation8 + $0x10] sm:$0xff]
    %v1377 = vld [vmem:[#allocation8 + $0x18] sm:$0xff]
    %v1378 = vld [vmem:[#allocation8 + $0x20] sm:$0xff]
    %v1379 = vld [vmem:[#allocation8 + $0x28] sm:$0xff]
    %v1380 = vld [vmem:[#allocation8 + $0x30] sm:$0xff]
    %v1381 = vld [vmem:[#allocation8 + $0x38] sm:$0xff]
    %v1382 = vld [vmem:[#allocation8 + $0x40] sm:$0xff]
    %v1383 = vld [vmem:[#allocation8 + $0x48] sm:$0xff]
    %v1384 = vld [vmem:[#allocation8 + $0x50] sm:$0xff]
    %v1385 = vld [vmem:[#allocation8 + $0x58] sm:$0xff]
    %v1386 = vld [vmem:[#allocation8 + $0x60] sm:$0xff]
    %v1387 = vld [vmem:[#allocation8 + $0x68] sm:$0xff]
    %v1388 = vld [vmem:[#allocation8 + $0x70] sm:$0xff]
    %v1389 = vld [vmem:[#allocation8 + $0x78] sm:$0xff]
    %v1390 = vld [vmem:[#allocation8 + $0x80] sm:$0xff]
    %v1391 = vld [vmem:[#allocation8 + $0x88] sm:$0xff]
    %v1392 = vld [vmem:[#allocation8 + $0x90] sm:$0xff]
    %v1393 = vld [vmem:[#allocation8 + $0x98] sm:$0xff]
    %v1394 = vld [vmem:[#allocation8 + $0xa0] sm:$0xff]
    %v1395 = vld [vmem:[#allocation8 + $0xa8] sm:$0xff]
    %v1396 = vld [vmem:[#allocation8 + $0xb0] sm:$0xff]
    %v1397 = vld [vmem:[#allocation8 + $0xb8] sm:$0xff]
    %v1398 = vld [vmem:[#allocation8 + $0xc0] sm:$0xff]
    %v1399 = vld [vmem:[#allocation8 + $0xc8] sm:$0xff]
    %v1400 = vld [vmem:[#allocation8 + $0xd0] sm:$0xff]
    %v1401 = vld [vmem:[#allocation8 + $0xd8] sm:$0xff]
    %v1402 = vld [vmem:[#allocation8 + $0xe0] sm:$0xff]
    %v1403 = vld [vmem:[#allocation8 + $0xe8] sm:$0xff]
    %v1404 = vld [vmem:[#allocation8 + $0xf0] sm:$0xff]
    %v1405 = vld [vmem:[#allocation8 + $0xf8] sm:$0xff]
    %v1406 = vld [vmem:[#allocation8 + $0x100] sm:$0xff]
    %v1407 = vld [vmem:[#allocation8 + $0x108] sm:$0xff]
    %v1408 = vld [vmem:[#allocation8 + $0x110] sm:$0xff]
    %v1409 = vld [vmem:[#allocation8 + $0x118] sm:$0xff]
    %v1410 = vld [vmem:[#allocation8 + $0x120] sm:$0xff]
    %v1411 = vld [vmem:[#allocation8 + $0x128] sm:$0xff]
    %v1412 = vld [vmem:[#allocation8 + $0x130] sm:$0xff]
    %v1413 = vld [vmem:[#allocation8 + $0x138] sm:$0xff]
    %v1414 = vld [vmem:[#allocation8 + $0x140] sm:$0xff]
    %v1415 = vld [vmem:[#allocation8 + $0x148] sm:$0xff]
    %v1416 = vld [vmem:[#allocation8 + $0x150] sm:$0xff]
    %v1417 = vld [vmem:[#allocation8 + $0x158] sm:$0xff]
    %v1418 = vld [vmem:[#allocation8 + $0x160] sm:$0xff]
    %v1419 = vld [vmem:[#allocation8 + $0x168] sm:$0xff]
    %v1420 = vld [vmem:[#allocation8 + $0x170] sm:$0xff]
    %v1421 = vld [vmem:[#allocation8 + $0x178] sm:$0xff]
    %1422 = vmatpush.msra.mxu0 %v1419
    %1423 = vmatpush.msra.mxu0 %v1416
    %1424 = vmatpush.msra.mxu0 %v1413
    %1425 = vmatpush.msra.mxu0 %v1410
    %1426 = vmatpush.msra.mxu0 %v1407
    %1427 = vmatpush.msra.mxu0 %v1404
    %1428 = vmatpush.msra.mxu0 %v1401
    %1429 = vmatpush.msra.mxu0 %v1398
    %1430 = vmatpush.msra.mxu0 %v1395
    %1431 = vmatpush.msra.mxu0 %v1392
    %1432 = vmatpush.msra.mxu0 %v1389
    %1433 = vmatpush.msra.mxu0 %v1386
    %1434 = vmatpush.msra.mxu0 %v1383
    %1435 = vmatpush.msra.mxu0 %v1380
    %1436 = vmatpush.msra.mxu0 %v1377
    %1437 = vmatpush.msra.mxu0 %v1374
    %1438 = vmatmul.f32.gmra.mxu0 %v1365
    %v1439 = vpop.f32.mrf.mxu0
    %v1440 = vadd.f32 0.0, %v1439
    %1441 = vdwg.mxu0
    %1442 = vmatpush.msra.mxu0 %v1420
    %1443 = vmatpush.msra.mxu0 %v1417
    %1444 = vmatpush.msra.mxu0 %v1414
    %1445 = vmatpush.msra.mxu0 %v1411
    %1446 = vmatpush.msra.mxu0 %v1408
    %1447 = vmatpush.msra.mxu0 %v1405
    %1448 = vmatpush.msra.mxu0 %v1402
    %1449 = vmatpush.msra.mxu0 %v1399
    %1450 = vmatpush.msra.mxu0 %v1396
    %1451 = vmatpush.msra.mxu0 %v1393
    %1452 = vmatpush.msra.mxu0 %v1390
    %1453 = vmatpush.msra.mxu0 %v1387
    %1454 = vmatpush.msra.mxu0 %v1384
    %1455 = vmatpush.msra.mxu0 %v1381
    %1456 = vmatpush.msra.mxu0 %v1378
    %1457 = vmatpush.msra.mxu0 %v1375
    %1458 = vmatmul.f32.gmra.mxu0 %v1365
    %v1459 = vpop.f32.mrf.mxu0
    %v1460 = vadd.f32 0.0, %v1459
    %1461 = vdwg.mxu0
    %1462 = vmatpush.msra.mxu0 %v1421
    %1463 = vmatpush.msra.mxu0 %v1418
    %1464 = vmatpush.msra.mxu0 %v1415
    %1465 = vmatpush.msra.mxu0 %v1412
    %1466 = vmatpush.msra.mxu0 %v1409
    %1467 = vmatpush.msra.mxu0 %v1406
    %1468 = vmatpush.msra.mxu0 %v1403
    %1469 = vmatpush.msra.mxu0 %v1400
    %1470 = vmatpush.msra.mxu0 %v1397
    %1471 = vmatpush.msra.mxu0 %v1394
    %1472 = vmatpush.msra.mxu0 %v1391
    %1473 = vmatpush.msra.mxu0 %v1388
    %1474 = vmatpush.msra.mxu0 %v1385
    %1475 = vmatpush.msra.mxu0 %v1382
    %1476 = vmatpush.msra.mxu0 %v1379
    %1477 = vmatpush.msra.mxu0 %v1376
    %1478 = vmatmul.f32.gmra.mxu0 %v1365
    %v1479 = vpop.f32.mrf.mxu0
    %v1480 = vadd.f32 0.0, %v1479
    %1481 = vdwg.mxu0
    %v1482 = vadd.f32 %v1371, %v1440
    %v1483 = vxor.u32 %v1482, 2147483648
    %v1484 = vmul.f32 %v1483, 1.442695
    %v1485 = vpow.pop %v1484
    %v1486 = vadd.f32 %v1485, 1.0
    %v1487 = vrcp.pop %v1486
    %v1488 = vmul.f32 %v1486, %v1487
    %v1489 = vsub.f32 1.0, %v1488
    %v1490 = vmul.f32 %v1487, %v1489
    %v1491 = vadd.f32 %v1487, %v1490
    %vm1492 = vweird.f32 %v1486
    %vm1493 = vweird.f32 %v1487
    %vm1494 = vmor %vm1492, %vm1493
    %v1495 = vsel %vm1494, %v1487, %v1491
    %v1496 = vand.u32 2147483647, %v1486
    %vm1497 = vcmp.eq.f32.partialorder %v1496, 8.507059e+37
    %v1498 = vand.u32 %v1486, 2147483648
    %v1499 = vor.u32 1.1754944e-38, %v1498
    %v1500 = vsel %vm1497, %v1499, %v1495
    %v1501 = vmul.f32 1.0, %v1500
    %v1502 = vadd.f32 %v1372, %v1460
    %v1503 = vxor.u32 %v1502, 2147483648
    %v1504 = vmul.f32 %v1503, 1.442695
    %v1505 = vpow.pop %v1504
    %v1506 = vadd.f32 %v1505, 1.0
    %v1507 = vrcp.pop %v1506
    %v1508 = vmul.f32 %v1506, %v1507
    %v1509 = vsub.f32 1.0, %v1508
    %v1510 = vmul.f32 %v1507, %v1509
    %v1511 = vadd.f32 %v1507, %v1510
    %vm1512 = vweird.f32 %v1506
    %vm1513 = vweird.f32 %v1507
    %vm1514 = vmor %vm1512, %vm1513
    %v1515 = vsel %vm1514, %v1507, %v1511
    %v1516 = vand.u32 2147483647, %v1506
    %vm1517 = vcmp.eq.f32.partialorder %v1516, 8.507059e+37
    %v1518 = vand.u32 %v1506, 2147483648
    %v1519 = vor.u32 1.1754944e-38, %v1518
    %v1520 = vsel %vm1517, %v1519, %v1515
    %v1521 = vmul.f32 1.0, %v1520
    %v1522 = vld [vmem:[%s3] sm:$0x1]
    %v1524 = vperm.slane %v1522, 0
    %v1526 = vadd.f32 %v1480, %v1524
    %v1527 = vmul.f32 %v1501, %v1526
    %v1528 = vadd.f32 %v1373, %v1527
    %v1529 = vtanh.pop %v1528
    %v1530 = vsub.f32 %v1365, %v1529
    %v1531 = vmul.f32 %v1521, %v1530
    %v1532 = vadd.f32 %v1529, %v1531
    %s1533 = scalar_lea.vmem [#allocation3], 40
    %1534 = vst [vmem:[%s1533] sm:$0xff] %v1532
    %s1535 = smul.u32 6, 3
    %s1536 = smul.addr %s1535, 8
    %s1537 = scalar_lea.vmem [#allocation2], %s1536
    %v1538 = vld [vmem:[%s1537] sm:$0xff]
    %v1539 = vld [vmem:[%s1537 + $0x8] sm:$0xff]
    %v1540 = vld [vmem:[%s1537 + $0x10] sm:$0xff]
    %v1541 = vld [vmem:[#allocation8] sm:$0xff]
    %v1542 = vld [vmem:[#allocation8 + $0x8] sm:$0xff]
    %v1543 = vld [vmem:[#allocation8 + $0x10] sm:$0xff]
    %v1544 = vld [vmem:[#allocation8 + $0x18] sm:$0xff]
    %v1545 = vld [vmem:[#allocation8 + $0x20] sm:$0xff]
    %v1546 = vld [vmem:[#allocation8 + $0x28] sm:$0xff]
    %v1547 = vld [vmem:[#allocation8 + $0x30] sm:$0xff]
    %v1548 = vld [vmem:[#allocation8 + $0x38] sm:$0xff]
    %v1549 = vld [vmem:[#allocation8 + $0x40] sm:$0xff]
    %v1550 = vld [vmem:[#allocation8 + $0x48] sm:$0xff]
    %v1551 = vld [vmem:[#allocation8 + $0x50] sm:$0xff]
    %v1552 = vld [vmem:[#allocation8 + $0x58] sm:$0xff]
    %v1553 = vld [vmem:[#allocation8 + $0x60] sm:$0xff]
    %v1554 = vld [vmem:[#allocation8 + $0x68] sm:$0xff]
    %v1555 = vld [vmem:[#allocation8 + $0x70] sm:$0xff]
    %v1556 = vld [vmem:[#allocation8 + $0x78] sm:$0xff]
    %v1557 = vld [vmem:[#allocation8 + $0x80] sm:$0xff]
    %v1558 = vld [vmem:[#allocation8 + $0x88] sm:$0xff]
    %v1559 = vld [vmem:[#allocation8 + $0x90] sm:$0xff]
    %v1560 = vld [vmem:[#allocation8 + $0x98] sm:$0xff]
    %v1561 = vld [vmem:[#allocation8 + $0xa0] sm:$0xff]
    %v1562 = vld [vmem:[#allocation8 + $0xa8] sm:$0xff]
    %v1563 = vld [vmem:[#allocation8 + $0xb0] sm:$0xff]
    %v1564 = vld [vmem:[#allocation8 + $0xb8] sm:$0xff]
    %v1565 = vld [vmem:[#allocation8 + $0xc0] sm:$0xff]
    %v1566 = vld [vmem:[#allocation8 + $0xc8] sm:$0xff]
    %v1567 = vld [vmem:[#allocation8 + $0xd0] sm:$0xff]
    %v1568 = vld [vmem:[#allocation8 + $0xd8] sm:$0xff]
    %v1569 = vld [vmem:[#allocation8 + $0xe0] sm:$0xff]
    %v1570 = vld [vmem:[#allocation8 + $0xe8] sm:$0xff]
    %v1571 = vld [vmem:[#allocation8 + $0xf0] sm:$0xff]
    %v1572 = vld [vmem:[#allocation8 + $0xf8] sm:$0xff]
    %v1573 = vld [vmem:[#allocation8 + $0x100] sm:$0xff]
    %v1574 = vld [vmem:[#allocation8 + $0x108] sm:$0xff]
    %v1575 = vld [vmem:[#allocation8 + $0x110] sm:$0xff]
    %v1576 = vld [vmem:[#allocation8 + $0x118] sm:$0xff]
    %v1577 = vld [vmem:[#allocation8 + $0x120] sm:$0xff]
    %v1578 = vld [vmem:[#allocation8 + $0x128] sm:$0xff]
    %v1579 = vld [vmem:[#allocation8 + $0x130] sm:$0xff]
    %v1580 = vld [vmem:[#allocation8 + $0x138] sm:$0xff]
    %v1581 = vld [vmem:[#allocation8 + $0x140] sm:$0xff]
    %v1582 = vld [vmem:[#allocation8 + $0x148] sm:$0xff]
    %v1583 = vld [vmem:[#allocation8 + $0x150] sm:$0xff]
    %v1584 = vld [vmem:[#allocation8 + $0x158] sm:$0xff]
    %v1585 = vld [vmem:[#allocation8 + $0x160] sm:$0xff]
    %v1586 = vld [vmem:[#allocation8 + $0x168] sm:$0xff]
    %v1587 = vld [vmem:[#allocation8 + $0x170] sm:$0xff]
    %v1588 = vld [vmem:[#allocation8 + $0x178] sm:$0xff]
    %1589 = vmatpush.msra.mxu0 %v1586
    %1590 = vmatpush.msra.mxu0 %v1583
    %1591 = vmatpush.msra.mxu0 %v1580
    %1592 = vmatpush.msra.mxu0 %v1577
    %1593 = vmatpush.msra.mxu0 %v1574
    %1594 = vmatpush.msra.mxu0 %v1571
    %1595 = vmatpush.msra.mxu0 %v1568
    %1596 = vmatpush.msra.mxu0 %v1565
    %1597 = vmatpush.msra.mxu0 %v1562
    %1598 = vmatpush.msra.mxu0 %v1559
    %1599 = vmatpush.msra.mxu0 %v1556
    %1600 = vmatpush.msra.mxu0 %v1553
    %1601 = vmatpush.msra.mxu0 %v1550
    %1602 = vmatpush.msra.mxu0 %v1547
    %1603 = vmatpush.msra.mxu0 %v1544
    %1604 = vmatpush.msra.mxu0 %v1541
    %1605 = vmatmul.f32.gmra.mxu0 %v1532
    %v1606 = vpop.f32.mrf.mxu0
    %v1607 = vadd.f32 0.0, %v1606
    %1608 = vdwg.mxu0
    %1609 = vmatpush.msra.mxu0 %v1587
    %1610 = vmatpush.msra.mxu0 %v1584
    %1611 = vmatpush.msra.mxu0 %v1581
    %1612 = vmatpush.msra.mxu0 %v1578
    %1613 = vmatpush.msra.mxu0 %v1575
    %1614 = vmatpush.msra.mxu0 %v1572
    %1615 = vmatpush.msra.mxu0 %v1569
    %1616 = vmatpush.msra.mxu0 %v1566
    %1617 = vmatpush.msra.mxu0 %v1563
    %1618 = vmatpush.msra.mxu0 %v1560
    %1619 = vmatpush.msra.mxu0 %v1557
    %1620 = vmatpush.msra.mxu0 %v1554
    %1621 = vmatpush.msra.mxu0 %v1551
    %1622 = vmatpush.msra.mxu0 %v1548
    %1623 = vmatpush.msra.mxu0 %v1545
    %1624 = vmatpush.msra.mxu0 %v1542
    %1625 = vmatmul.f32.gmra.mxu0 %v1532
    %v1626 = vpop.f32.mrf.mxu0
    %v1627 = vadd.f32 0.0, %v1626
    %1628 = vdwg.mxu0
    %1629 = vmatpush.msra.mxu0 %v1588
    %1630 = vmatpush.msra.mxu0 %v1585
    %1631 = vmatpush.msra.mxu0 %v1582
    %1632 = vmatpush.msra.mxu0 %v1579
    %1633 = vmatpush.msra.mxu0 %v1576
    %1634 = vmatpush.msra.mxu0 %v1573
    %1635 = vmatpush.msra.mxu0 %v1570
    %1636 = vmatpush.msra.mxu0 %v1567
    %1637 = vmatpush.msra.mxu0 %v1564
    %1638 = vmatpush.msra.mxu0 %v1561
    %1639 = vmatpush.msra.mxu0 %v1558
    %1640 = vmatpush.msra.mxu0 %v1555
    %1641 = vmatpush.msra.mxu0 %v1552
    %1642 = vmatpush.msra.mxu0 %v1549
    %1643 = vmatpush.msra.mxu0 %v1546
    %1644 = vmatpush.msra.mxu0 %v1543
    %1645 = vmatmul.f32.gmra.mxu0 %v1532
    %v1646 = vpop.f32.mrf.mxu0
    %v1647 = vadd.f32 0.0, %v1646
    %1648 = vdwg.mxu0
    %v1649 = vadd.f32 %v1538, %v1607
    %v1650 = vxor.u32 %v1649, 2147483648
    %v1651 = vmul.f32 %v1650, 1.442695
    %v1652 = vpow.pop %v1651
    %v1653 = vadd.f32 %v1652, 1.0
    %v1654 = vrcp.pop %v1653
    %v1655 = vmul.f32 %v1653, %v1654
    %v1656 = vsub.f32 1.0, %v1655
    %v1657 = vmul.f32 %v1654, %v1656
    %v1658 = vadd.f32 %v1654, %v1657
    %vm1659 = vweird.f32 %v1653
    %vm1660 = vweird.f32 %v1654
    %vm1661 = vmor %vm1659, %vm1660
    %v1662 = vsel %vm1661, %v1654, %v1658
    %v1663 = vand.u32 2147483647, %v1653
    %vm1664 = vcmp.eq.f32.partialorder %v1663, 8.507059e+37
    %v1665 = vand.u32 %v1653, 2147483648
    %v1666 = vor.u32 1.1754944e-38, %v1665
    %v1667 = vsel %vm1664, %v1666, %v1662
    %v1668 = vmul.f32 1.0, %v1667
    %v1669 = vadd.f32 %v1539, %v1627
    %v1670 = vxor.u32 %v1669, 2147483648
    %v1671 = vmul.f32 %v1670, 1.442695
    %v1672 = vpow.pop %v1671
    %v1673 = vadd.f32 %v1672, 1.0
    %v1674 = vrcp.pop %v1673
    %v1675 = vmul.f32 %v1673, %v1674
    %v1676 = vsub.f32 1.0, %v1675
    %v1677 = vmul.f32 %v1674, %v1676
    %v1678 = vadd.f32 %v1674, %v1677
    %vm1679 = vweird.f32 %v1673
    %vm1680 = vweird.f32 %v1674
    %vm1681 = vmor %vm1679, %vm1680
    %v1682 = vsel %vm1681, %v1674, %v1678
    %v1683 = vand.u32 2147483647, %v1673
    %vm1684 = vcmp.eq.f32.partialorder %v1683, 8.507059e+37
    %v1685 = vand.u32 %v1673, 2147483648
    %v1686 = vor.u32 1.1754944e-38, %v1685
    %v1687 = vsel %vm1684, %v1686, %v1682
    %v1688 = vmul.f32 1.0, %v1687
    %v1689 = vld [vmem:[%s3] sm:$0x1]
    %v1691 = vperm.slane %v1689, 0
    %v1693 = vadd.f32 %v1647, %v1691
    %v1694 = vmul.f32 %v1668, %v1693
    %v1695 = vadd.f32 %v1540, %v1694
    %v1696 = vtanh.pop %v1695
    %v1697 = vsub.f32 %v1532, %v1696
    %v1698 = vmul.f32 %v1688, %v1697
    %v1699 = vadd.f32 %v1696, %v1698
    %s1700 = scalar_lea.vmem [#allocation3], 48
    %1701 = vst [vmem:[%s1700] sm:$0xff] %v1699
    %s1702 = smul.u32 7, 3
    %s1703 = smul.addr %s1702, 8
    %s1704 = scalar_lea.vmem [#allocation2], %s1703
    %v1705 = vld [vmem:[%s1704] sm:$0xff]
    %v1706 = vld [vmem:[%s1704 + $0x8] sm:$0xff]
    %v1707 = vld [vmem:[%s1704 + $0x10] sm:$0xff]
    %v1708 = vld [vmem:[#allocation8] sm:$0xff]
    %v1709 = vld [vmem:[#allocation8 + $0x8] sm:$0xff]
    %v1710 = vld [vmem:[#allocation8 + $0x10] sm:$0xff]
    %v1711 = vld [vmem:[#allocation8 + $0x18] sm:$0xff]
    %v1712 = vld [vmem:[#allocation8 + $0x20] sm:$0xff]
    %v1713 = vld [vmem:[#allocation8 + $0x28] sm:$0xff]
    %v1714 = vld [vmem:[#allocation8 + $0x30] sm:$0xff]
    %v1715 = vld [vmem:[#allocation8 + $0x38] sm:$0xff]
    %v1716 = vld [vmem:[#allocation8 + $0x40] sm:$0xff]
    %v1717 = vld [vmem:[#allocation8 + $0x48] sm:$0xff]
    %v1718 = vld [vmem:[#allocation8 + $0x50] sm:$0xff]
    %v1719 = vld [vmem:[#allocation8 + $0x58] sm:$0xff]
    %v1720 = vld [vmem:[#allocation8 + $0x60] sm:$0xff]
    %v1721 = vld [vmem:[#allocation8 + $0x68] sm:$0xff]
    %v1722 = vld [vmem:[#allocation8 + $0x70] sm:$0xff]
    %v1723 = vld [vmem:[#allocation8 + $0x78] sm:$0xff]
    %v1724 = vld [vmem:[#allocation8 + $0x80] sm:$0xff]
    %v1725 = vld [vmem:[#allocation8 + $0x88] sm:$0xff]
    %v1726 = vld [vmem:[#allocation8 + $0x90] sm:$0xff]
    %v1727 = vld [vmem:[#allocation8 + $0x98] sm:$0xff]
    %v1728 = vld [vmem:[#allocation8 + $0xa0] sm:$0xff]
    %v1729 = vld [vmem:[#allocation8 + $0xa8] sm:$0xff]
    %v1730 = vld [vmem:[#allocation8 + $0xb0] sm:$0xff]
    %v1731 = vld [vmem:[#allocation8 + $0xb8] sm:$0xff]
    %v1732 = vld [vmem:[#allocation8 + $0xc0] sm:$0xff]
    %v1733 = vld [vmem:[#allocation8 + $0xc8] sm:$0xff]
    %v1734 = vld [vmem:[#allocation8 + $0xd0] sm:$0xff]
    %v1735 = vld [vmem:[#allocation8 + $0xd8] sm:$0xff]
    %v1736 = vld [vmem:[#allocation8 + $0xe0] sm:$0xff]
    %v1737 = vld [vmem:[#allocation8 + $0xe8] sm:$0xff]
    %v1738 = vld [vmem:[#allocation8 + $0xf0] sm:$0xff]
    %v1739 = vld [vmem:[#allocation8 + $0xf8] sm:$0xff]
    %v1740 = vld [vmem:[#allocation8 + $0x100] sm:$0xff]
    %v1741 = vld [vmem:[#allocation8 + $0x108] sm:$0xff]
    %v1742 = vld [vmem:[#allocation8 + $0x110] sm:$0xff]
    %v1743 = vld [vmem:[#allocation8 + $0x118] sm:$0xff]
    %v1744 = vld [vmem:[#allocation8 + $0x120] sm:$0xff]
    %v1745 = vld [vmem:[#allocation8 + $0x128] sm:$0xff]
    %v1746 = vld [vmem:[#allocation8 + $0x130] sm:$0xff]
    %v1747 = vld [vmem:[#allocation8 + $0x138] sm:$0xff]
    %v1748 = vld [vmem:[#allocation8 + $0x140] sm:$0xff]
    %v1749 = vld [vmem:[#allocation8 + $0x148] sm:$0xff]
    %v1750 = vld [vmem:[#allocation8 + $0x150] sm:$0xff]
    %v1751 = vld [vmem:[#allocation8 + $0x158] sm:$0xff]
    %v1752 = vld [vmem:[#allocation8 + $0x160] sm:$0xff]
    %v1753 = vld [vmem:[#allocation8 + $0x168] sm:$0xff]
    %v1754 = vld [vmem:[#allocation8 + $0x170] sm:$0xff]
    %v1755 = vld [vmem:[#allocation8 + $0x178] sm:$0xff]
    %1756 = vmatpush.msra.mxu0 %v1753
    %1757 = vmatpush.msra.mxu0 %v1750
    %1758 = vmatpush.msra.mxu0 %v1747
    %1759 = vmatpush.msra.mxu0 %v1744
    %1760 = vmatpush.msra.mxu0 %v1741
    %1761 = vmatpush.msra.mxu0 %v1738
    %1762 = vmatpush.msra.mxu0 %v1735
    %1763 = vmatpush.msra.mxu0 %v1732
    %1764 = vmatpush.msra.mxu0 %v1729
    %1765 = vmatpush.msra.mxu0 %v1726
    %1766 = vmatpush.msra.mxu0 %v1723
    %1767 = vmatpush.msra.mxu0 %v1720
    %1768 = vmatpush.msra.mxu0 %v1717
    %1769 = vmatpush.msra.mxu0 %v1714
    %1770 = vmatpush.msra.mxu0 %v1711
    %1771 = vmatpush.msra.mxu0 %v1708
    %1772 = vmatmul.f32.gmra.mxu0 %v1699
    %v1773 = vpop.f32.mrf.mxu0
    %v1774 = vadd.f32 0.0, %v1773
    %1775 = vdwg.mxu0
    %1776 = vmatpush.msra.mxu0 %v1754
    %1777 = vmatpush.msra.mxu0 %v1751
    %1778 = vmatpush.msra.mxu0 %v1748
    %1779 = vmatpush.msra.mxu0 %v1745
    %1780 = vmatpush.msra.mxu0 %v1742
    %1781 = vmatpush.msra.mxu0 %v1739
    %1782 = vmatpush.msra.mxu0 %v1736
    %1783 = vmatpush.msra.mxu0 %v1733
    %1784 = vmatpush.msra.mxu0 %v1730
    %1785 = vmatpush.msra.mxu0 %v1727
    %1786 = vmatpush.msra.mxu0 %v1724
    %1787 = vmatpush.msra.mxu0 %v1721
    %1788 = vmatpush.msra.mxu0 %v1718
    %1789 = vmatpush.msra.mxu0 %v1715
    %1790 = vmatpush.msra.mxu0 %v1712
    %1791 = vmatpush.msra.mxu0 %v1709
    %1792 = vmatmul.f32.gmra.mxu0 %v1699
    %v1793 = vpop.f32.mrf.mxu0
    %v1794 = vadd.f32 0.0, %v1793
    %1795 = vdwg.mxu0
    %1796 = vmatpush.msra.mxu0 %v1755
    %1797 = vmatpush.msra.mxu0 %v1752
    %1798 = vmatpush.msra.mxu0 %v1749
    %1799 = vmatpush.msra.mxu0 %v1746
    %1800 = vmatpush.msra.mxu0 %v1743
    %1801 = vmatpush.msra.mxu0 %v1740
    %1802 = vmatpush.msra.mxu0 %v1737
    %1803 = vmatpush.msra.mxu0 %v1734
    %1804 = vmatpush.msra.mxu0 %v1731
    %1805 = vmatpush.msra.mxu0 %v1728
    %1806 = vmatpush.msra.mxu0 %v1725
    %1807 = vmatpush.msra.mxu0 %v1722
    %1808 = vmatpush.msra.mxu0 %v1719
    %1809 = vmatpush.msra.mxu0 %v1716
    %1810 = vmatpush.msra.mxu0 %v1713
    %1811 = vmatpush.msra.mxu0 %v1710
    %1812 = vmatmul.f32.gmra.mxu0 %v1699
    %v1813 = vpop.f32.mrf.mxu0
    %v1814 = vadd.f32 0.0, %v1813
    %1815 = vdwg.mxu0
    %v1816 = vadd.f32 %v1705, %v1774
    %v1817 = vxor.u32 %v1816, 2147483648
    %v1818 = vmul.f32 %v1817, 1.442695
    %v1819 = vpow.pop %v1818
    %v1820 = vadd.f32 %v1819, 1.0
    %v1821 = vrcp.pop %v1820
    %v1822 = vmul.f32 %v1820, %v1821
    %v1823 = vsub.f32 1.0, %v1822
    %v1824 = vmul.f32 %v1821, %v1823
    %v1825 = vadd.f32 %v1821, %v1824
    %vm1826 = vweird.f32 %v1820
    %vm1827 = vweird.f32 %v1821
    %vm1828 = vmor %vm1826, %vm1827
    %v1829 = vsel %vm1828, %v1821, %v1825
    %v1830 = vand.u32 2147483647, %v1820
    %vm1831 = vcmp.eq.f32.partialorder %v1830, 8.507059e+37
    %v1832 = vand.u32 %v1820, 2147483648
    %v1833 = vor.u32 1.1754944e-38, %v1832
    %v1834 = vsel %vm1831, %v1833, %v1829
    %v1835 = vmul.f32 1.0, %v1834
    %v1836 = vadd.f32 %v1706, %v1794
    %v1837 = vxor.u32 %v1836, 2147483648
    %v1838 = vmul.f32 %v1837, 1.442695
    %v1839 = vpow.pop %v1838
    %v1840 = vadd.f32 %v1839, 1.0
    %v1841 = vrcp.pop %v1840
    %v1842 = vmul.f32 %v1840, %v1841
    %v1843 = vsub.f32 1.0, %v1842
    %v1844 = vmul.f32 %v1841, %v1843
    %v1845 = vadd.f32 %v1841, %v1844
    %vm1846 = vweird.f32 %v1840
    %vm1847 = vweird.f32 %v1841
    %vm1848 = vmor %vm1846, %vm1847
    %v1849 = vsel %vm1848, %v1841, %v1845
    %v1850 = vand.u32 2147483647, %v1840
    %vm1851 = vcmp.eq.f32.partialorder %v1850, 8.507059e+37
    %v1852 = vand.u32 %v1840, 2147483648
    %v1853 = vor.u32 1.1754944e-38, %v1852
    %v1854 = vsel %vm1851, %v1853, %v1849
    %v1855 = vmul.f32 1.0, %v1854
    %v1856 = vld [vmem:[%s3] sm:$0x1]
    %v1858 = vperm.slane %v1856, 0
    %v1860 = vadd.f32 %v1814, %v1858
    %v1861 = vmul.f32 %v1835, %v1860
    %v1862 = vadd.f32 %v1707, %v1861
    %v1863 = vtanh.pop %v1862
    %v1864 = vsub.f32 %v1699, %v1863
    %v1865 = vmul.f32 %v1855, %v1864
    %v1866 = vadd.f32 %v1863, %v1865
    %s1867 = scalar_lea.vmem [#allocation3], 56
    %1868 = vst [vmem:[%s1867] sm:$0xff] %v1866
    %v1869 = vld [vmem:[#allocation3] sm:$0xff]
    %v1870 = vld [vmem:[#allocation3 + $0x8] sm:$0xff]
    %v1871 = vld [vmem:[#allocation3 + $0x10] sm:$0xff]
    %v1872 = vld [vmem:[#allocation3 + $0x18] sm:$0xff]
    %v1873 = vld [vmem:[#allocation3 + $0x20] sm:$0xff]
    %v1874 = vld [vmem:[#allocation3 + $0x28] sm:$0xff]
    %v1875 = vld [vmem:[#allocation3 + $0x30] sm:$0xff]
    %v1876 = vld [vmem:[#allocation3 + $0x38] sm:$0xff]
    %v1877 = vld [vmem:[#allocation10] sm:$0xff]
    %v1878 = vld [vmem:[#allocation10 + $0x8] sm:$0xff]
    %v1879 = vld [vmem:[#allocation10 + $0x10] sm:$0xff]
    %v1880 = vld [vmem:[#allocation10 + $0x18] sm:$0xff]
    %v1881 = vld [vmem:[#allocation10 + $0x20] sm:$0xff]
    %v1882 = vld [vmem:[#allocation10 + $0x28] sm:$0xff]
    %v1883 = vld [vmem:[#allocation10 + $0x30] sm:$0xff]
    %v1884 = vld [vmem:[#allocation10 + $0x38] sm:$0xff]
    %v1885 = vld [vmem:[#allocation10 + $0x40] sm:$0xff]
    %v1886 = vld [vmem:[#allocation10 + $0x48] sm:$0xff]
    %v1887 = vld [vmem:[#allocation10 + $0x50] sm:$0xff]
    %v1888 = vld [vmem:[#allocation10 + $0x58] sm:$0xff]
    %v1889 = vld [vmem:[#allocation10 + $0x60] sm:$0xff]
    %v1890 = vld [vmem:[#allocation10 + $0x68] sm:$0xff]
    %v1891 = vld [vmem:[#allocation10 + $0x70] sm:$0xff]
    %v1892 = vld [vmem:[#allocation10 + $0x78] sm:$0xff]
    %v1893 = vld [vmem:[%s5] sm:$0x1]
    %v1895 = vperm.slane %v1893, 0
    %1897 = vmatpush.msra.mxu0 %v1892
    %1898 = vmatpush.msra.mxu0 %v1891
    %1899 = vmatpush.msra.mxu0 %v1890
    %1900 = vmatpush.msra.mxu0 %v1889
    %1901 = vmatpush.msra.mxu0 %v1888
    %1902 = vmatpush.msra.mxu0 %v1887
    %1903 = vmatpush.msra.mxu0 %v1886
    %1904 = vmatpush.msra.mxu0 %v1885
    %1905 = vmatpush.msra.mxu0 %v1884
    %1906 = vmatpush.msra.mxu0 %v1883
    %1907 = vmatpush.msra.mxu0 %v1882
    %1908 = vmatpush.msra.mxu0 %v1881
    %1909 = vmatpush.msra.mxu0 %v1880
    %1910 = vmatpush.msra.mxu0 %v1879
    %1911 = vmatpush.msra.mxu0 %v1878
    %1912 = vmatpush.msra.mxu0 %v1877
    %1913 = vmatmul.f32.gmra.mxu0 %v1869
    %v1914 = vpop.f32.mrf.mxu0
    %v1915 = vadd.f32 %v1895, %v1914
    %1916 = vmatmul.f32.gmra.mxu0 %v1870
    %v1917 = vpop.f32.mrf.mxu0
    %v1918 = vadd.f32 %v1895, %v1917
    %1919 = vmatmul.f32.gmra.mxu0 %v1871
    %v1920 = vpop.f32.mrf.mxu0
    %v1921 = vadd.f32 %v1895, %v1920
    %1922 = vmatmul.f32.gmra.mxu0 %v1872
    %v1923 = vpop.f32.mrf.mxu0
    %v1924 = vadd.f32 %v1895, %v1923
    %1925 = vmatmul.f32.gmra.mxu0 %v1873
    %v1926 = vpop.f32.mrf.mxu0
    %v1927 = vadd.f32 %v1895, %v1926
    %1928 = vmatmul.f32.gmra.mxu0 %v1874
    %v1929 = vpop.f32.mrf.mxu0
    %v1930 = vadd.f32 %v1895, %v1929
    %1931 = vmatmul.f32.gmra.mxu0 %v1875
    %v1932 = vpop.f32.mrf.mxu0
    %v1933 = vadd.f32 %v1895, %v1932
    %1934 = vmatmul.f32.gmra.mxu0 %v1876
    %v1935 = vpop.f32.mrf.mxu0
    %v1936 = vadd.f32 %v1895, %v1935
    %1937 = vdwg.mxu0
    %1938 = vst [vmem:[%s6] sm:$0xff] %v1915
    %1939 = vst [vmem:[%s6 + $0x8] sm:$0xff] %v1918
    %1940 = vst [vmem:[%s6 + $0x10] sm:$0xff] %v1921
    %1941 = vst [vmem:[%s6 + $0x18] sm:$0xff] %v1924
    %1942 = vst [vmem:[%s6 + $0x20] sm:$0xff] %v1927
    %1943 = vst [vmem:[%s6 + $0x28] sm:$0xff] %v1930
    %1944 = vst [vmem:[%s6 + $0x30] sm:$0xff] %v1933
    %1945 = vst [vmem:[%s6 + $0x38] sm:$0xff] %v1936
    // Predicated region
    $region42: #{surname_generation_forward.1} parent=1 // pred_check
      _
    $region43: #{surname_generation_forward.1} parent=1 // pred_check_branch
      %1947 = sbr.rel (0) target = $region45
    $region44: #{surname_generation_forward.1} parent=1 // pred_region
      _
    $region45: #{surname_generation_forward.1} parent=1 // pred_fallthru
      _
    // Predicated region
    $region46: #{surname_generation_forward.1} parent=1 // pred_check
      _
    $region47: #{surname_generation_forward.1} parent=1 // pred_check_branch
      %1949 = sbr.rel (0) target = $region49
    $region48: #{surname_generation_forward.1} parent=1 // pred_region
      _
    $region49: #{surname_generation_forward.1} parent=1 // pred_fallthru
      _
    %1950 = vsyncpa [#allocation5], 1
    %1951 = vsyncpa [#allocation9], 1
    %1952 = vsyncpa [#allocation6], 1

</llo_original>
